<compile_context>
chip_gen: v7x
topology: tpu7x:2x2x1
jax: 0.10.0
libtpu: 0.0.40
codegen_flags: <defaults>
</compile_context>

<pallas_src>
import functools
import math

import jax
import jax.numpy as jnp
from jax.experimental import pallas as pl
from jax.experimental.pallas import tpu as pltpu

# `None` in block_shape is the long-standing "squeeze this dim" spelling; prefer the
# explicit pl.Squeezed() when available.
_SQUEEZE = pl.Squeezed() if hasattr(pl, "Squeezed") else None


# ----------------------------------------------------------------------------
# Pallas kernel: full encoder stack, one (Bt, S, D) batch tile per grid step,
# one layer per inner grid step (activation resident in VMEM scratch).
# ----------------------------------------------------------------------------
def _encoder_stack_kernel(
    x_ref,                     # (Bt, S, D)  f32 embeddings
    wq_ref, wk_ref, wv_ref,    # (H, D, dh)  bf16 per-head projection slabs
    wo_ref,                    # (H, dh, D)  bf16 per-head output-proj slabs
    w1_ref, w2_ref,            # (D, Hh), (Hh, D)  bf16 FFN weights
    qkvb_ref,                  # (H, 3, dh)  f32 packed per-head q/k/v biases
    vec_ref,                   # (6, D)      f32 packed: bo, g1, be1, b2, g2, be2
    b1_ref,                    # (1, Hh)     f32 FFN hidden bias
    o_ref,                     # (Bt, S, D)  f32 output
    act_ref,                   # (Bt*S, D)   f32 VMEM scratch (resident residual stream)
    *, n_heads: int, bt: int, seq: int, d_model: int, d_head: int,
):
    l = pl.program_id(1)
    n_layers = pl.num_programs(1)
    M = bt * seq
    scale = 1.0 / math.sqrt(d_head)
    bf16 = jnp.bfloat16

    # Load the embedding block into the resident activation on the first layer.
    @pl.when(l == 0)
    def _():
        act_ref[...] = x_ref[...].reshape(M, d_model)

    x0 = act_ref[...]                       # (M, D) f32 residual stream
    xb = x0.astype(bf16)                    # bf16 MXU operand

    vecs = vec_ref[...]                     # (6, D) f32
    bo, g1, be1 = vecs[0:1], vecs[1:2], vecs[2:3]
    b2, g2, be2 = vecs[3:4], vecs[4:5], vecs[5:6]

    # ---- multi-head self-attention (query = key = value = x, mask = None) ----
    # TODO(synk): attention-mask path omitted (Encoder example forwards mask=None).
    attn = jnp.zeros((M, d_model), jnp.float32)
    for h in range(n_heads):                # static unroll; no lane slicing / concat
        b_h = qkvb_ref[h]                   # (3, dh)
        q = jnp.dot(xb, wq_ref[h], preferred_element_type=jnp.float32) + b_h[0:1]
        k = jnp.dot(xb, wk_ref[h], preferred_element_type=jnp.float32) + b_h[1:2]
        v = jnp.dot(xb, wv_ref[h], preferred_element_type=jnp.float32) + b_h[2:3]
        # split folded batch back out (leading-dim reshape only; minor dim untouched)
        q3 = q.reshape(bt, seq, d_head).astype(bf16)
        k3 = k.reshape(bt, seq, d_head).astype(bf16)
        v3 = v.reshape(bt, seq, d_head).astype(bf16)

        s = jnp.einsum("bqd,bkd->bqk", q3, k3,
                       preferred_element_type=jnp.float32) * scale   # (Bt, S, S) f32
        s = s - jnp.max(s, axis=-1, keepdims=True)
        p = jnp.exp(s)
        p = p * pl.reciprocal(jnp.sum(p, axis=-1, keepdims=True), approx=True)
        ctx = jnp.einsum("bqk,bkd->bqd", p.astype(bf16), v3,
                         preferred_element_type=jnp.float32)          # (Bt, S, dh)
        # accumulate output projection per head (replaces concat + single wo matmul)
        attn = attn + jnp.dot(ctx.reshape(M, d_head).astype(bf16), wo_ref[h],
                              preferred_element_type=jnp.float32)
    attn = attn + bo

    def layer_norm(val, gamma, beta):       # f32 statistics
        mu = jnp.mean(val, axis=-1, keepdims=True)
        var = jnp.mean(jnp.square(val - mu), axis=-1, keepdims=True)
        return (val - mu) * jax.lax.rsqrt(var + 1e-5) * gamma + beta

    # residual + LN1   (dropout1 == identity)
    y = layer_norm(x0 + attn, g1, be1)

    # ---- position-wise feed-forward ----
    h1 = jnp.dot(y.astype(bf16), w1_ref[...],
                 preferred_element_type=jnp.float32) + b1_ref[...]
    h1 = jnp.maximum(h1, 0.0)               # ReLU (dropout == identity)
    ff = jnp.dot(h1.astype(bf16), w2_ref[...],
                 preferred_element_type=jnp.float32) + b2

    # residual + LN2   (dropout2 == identity)
    z = layer_norm(y + ff, g2, be2)

    act_ref[...] = z                        # stays resident for the next layer

    @pl.when(l == n_layers - 1)
    def _():
        o_ref[...] = z.reshape(bt, seq, d_model).astype(o_ref.dtype)


# ----------------------------------------------------------------------------
# Wrapper
# ----------------------------------------------------------------------------
def _pick_block_batch(B, S, target_rows=256):
    """Largest divisor of B (scanning up) such that bt*S reaches ~target MXU rows."""
    bt = 1
    for cand in range(1, B + 1):
        if B % cand == 0:
            bt = cand
            if cand * S >= target_rows:
                break
    return bt


def _vmem_limit_bytes(M, D, Hh, n_heads, dh):
    """Rough scoped-VMEM budget: double-buffered blocks + resident scratch + headroom."""
    lane = 128
    pad = lambda n: max(n, lane)
    act = M * pad(D) * 4
    wts = (3 * n_heads * D * pad(dh) + n_heads * dh * pad(D)
           + D * pad(Hh) + Hh * pad(D)) * 2                       # bf16 weights
    small = (n_heads * 8 * pad(dh) + 8 * pad(D) + 8 * pad(Hh)) * 4
    est = 2 * (act + wts + small) + 2 * act + act + (16 << 20)    # headroom
    return int(min(max(est, 16 << 20), 64 << 20))                 # <= v7x physical VMEM


def _stack_params(layer_params, n_heads):
    """Stack per-layer params along a leading layer axis; bf16 weights, packed vectors."""
    d_model = layer_params[0]["wq"].shape[0]
    dh = d_model // n_heads
    bf16 = jnp.bfloat16

    def per_head_in(w):    # (D, D) -> (H, D, dh): split output columns per head
        return jnp.transpose(w.reshape(d_model, n_heads, dh), (1, 0, 2))

    def per_head_out(w):   # (D, D) -> (H, dh, D): split input rows per head
        return w.reshape(n_heads, dh, d_model)

    wq = jnp.stack([per_head_in(p["wq"]) for p in layer_params]).astype(bf16)
    wk = jnp.stack([per_head_in(p["wk"]) for p in layer_params]).astype(bf16)
    wv = jnp.stack([per_head_in(p["wv"]) for p in layer_params]).astype(bf16)
    wo = jnp.stack([per_head_out(p["wo"]) for p in layer_params]).astype(bf16)
    w1 = jnp.stack([p["w1"] for p in layer_params]).astype(bf16)   # (L, D, Hh)
    w2 = jnp.stack([p["w2"] for p in layer_params]).astype(bf16)   # (L, Hh, D)

    def qkv_bias(p):  # (H, 3, dh)
        return jnp.stack([p["bq"].reshape(n_heads, dh),
                          p["bk"].reshape(n_heads, dh),
                          p["bv"].reshape(n_heads, dh)], axis=1)

    qkv_b = jnp.stack([qkv_bias(p) for p in layer_params])         # (L, H, 3, dh) f32
    vecs = jnp.stack([jnp.concatenate([p["bo"], p["g1"], p["be1"],
                                       p["b2"], p["g2"], p["be2"]], axis=0)
                      for p in layer_params])                       # (L, 6, D) f32
    b1 = jnp.stack([p["b1"] for p in layer_params])                 # (L, 1, Hh) f32
    return dict(wq=wq, wk=wk, wv=wv, wo=wo, w1=w1, w2=w2,
                qkv_b=qkv_b, vecs=vecs, b1=b1)


def encoder_layers(x, stacked, *, n_heads, block_batch=None):
    """x: (B, S, D) f32 embeddings.  stacked: dict from _stack_params.  -> (B, S, D)."""
    B, S, D = x.shape
    L = stacked["wq"].shape[0]
    dh = stacked["wq"].shape[3]
    Hh = stacked["w1"].shape[2]
    bt = block_batch or _pick_block_batch(B, S)
    assert B % bt == 0
    M = bt * S
    grid = (B // bt, L)

    xmap = lambda b, l: (b, 0, 0)
    wmap3 = lambda b, l: (l, 0, 0)
    wmap4 = lambda b, l: (l, 0, 0, 0)

    in_specs = [
        pl.BlockSpec((bt, S, D), xmap),                              # embeddings
        pl.BlockSpec((_SQUEEZE, n_heads, D, dh), wmap4),             # wq (per head)
        pl.BlockSpec((_SQUEEZE, n_heads, D, dh), wmap4),             # wk
        pl.BlockSpec((_SQUEEZE, n_heads, D, dh), wmap4),             # wv
        pl.BlockSpec((_SQUEEZE, n_heads, dh, D), wmap4),             # wo
        pl.BlockSpec((_SQUEEZE, D, Hh), wmap3),                      # w1
        pl.BlockSpec((_SQUEEZE, Hh, D), wmap3),                      # w2
        pl.BlockSpec((_SQUEEZE, n_heads, 3, dh), wmap4),             # packed q/k/v biases
        pl.BlockSpec((_SQUEEZE, 6, D), wmap3),                       # packed D-sized vectors
        pl.BlockSpec((_SQUEEZE, 1, Hh), wmap3),                      # b1
    ]
    out_specs = pl.BlockSpec((bt, S, D), xmap)

    kernel = functools.partial(_encoder_stack_kernel, n_heads=n_heads, bt=bt,
                               seq=S, d_model=D, d_head=dh)
    return pl.pallas_call(
        kernel,
        out_shape=jax.ShapeDtypeStruct((B, S, D), x.dtype),
        grid_spec=pltpu.PrefetchScalarGridSpec(
            num_scalar_prefetch=0,
            grid=grid,
            in_specs=in_specs,
            out_specs=out_specs,
            scratch_shapes=[pltpu.VMEM((M, D), jnp.float32)],
        ),
        compiler_params=pltpu.CompilerParams(
            dimension_semantics=("parallel", "arbitrary"),
            vmem_limit_bytes=_vmem_limit_bytes(M, D, Hh, n_heads, dh),
        ),
    )(x, stacked["wq"], stacked["wk"], stacked["wv"], stacked["wo"],
      stacked["w1"], stacked["w2"], stacked["qkv_b"], stacked["vecs"],
      stacked["b1"])


# ----------------------------------------------------------------------------
# Glue: embedding (token lookup + sinusoidal positional encoding)
# ----------------------------------------------------------------------------
def sinusoidal_pos_encoding(seq_length, d_model):
    pos = jnp.arange(seq_length, dtype=jnp.float32)[:, None]
    i = jnp.arange(0, d_model, 2, dtype=jnp.float32)[None, :]
    angle = pos / jnp.power(10000.0, i / d_model)
    pe = jnp.zeros((seq_length, d_model), jnp.float32)
    pe = pe.at[:, 0::2].set(jnp.sin(angle))
    pe = pe.at[:, 1::2].set(jnp.cos(angle))
    return pe


def transformer_embedding(token_ids, emb_table, pos_table):
    # token_ids: (B, S) int32 -> (B, S, D).  Gather stays in plain JAX (glue).
    tok = jnp.take(emb_table, token_ids, axis=0)
    S = token_ids.shape[1]
    return tok + pos_table[:S][None, :, :]


# ----------------------------------------------------------------------------
# Parameter init (deterministic, synthetic) and full forward
# ----------------------------------------------------------------------------
def init_layer_params(key, d_model, d_hidden):
    ks = jax.random.split(key, 6)
    s = 0.02
    return {
        "wq": s * jax.random.normal(ks[0], (d_model, d_model), jnp.float32),
        "bq": jnp.zeros((1, d_model), jnp.float32),
        "wk": s * jax.random.normal(ks[1], (d_model, d_model), jnp.float32),
        "bk": jnp.zeros((1, d_model), jnp.float32),
        "wv": s * jax.random.normal(ks[2], (d_model, d_model), jnp.float32),
        "bv": jnp.zeros((1, d_model), jnp.float32),
        "wo": s * jax.random.normal(ks[3], (d_model, d_model), jnp.float32),
        "bo": jnp.zeros((1, d_model), jnp.float32),
        "g1": jnp.ones((1, d_model), jnp.float32),
        "be1": jnp.zeros((1, d_model), jnp.float32),
        "w1": s * jax.random.normal(ks[4], (d_model, d_hidden), jnp.float32),
        "b1": jnp.zeros((1, d_hidden), jnp.float32),
        "w2": s * jax.random.normal(ks[5], (d_hidden, d_model), jnp.float32),
        "b2": jnp.zeros((1, d_model), jnp.float32),
        "g2": jnp.ones((1, d_model), jnp.float32),
        "be2": jnp.zeros((1, d_model), jnp.float32),
    }


def encoder_forward(token_ids, emb_table, pos_table, layer_params, *, n_heads):
    x = transformer_embedding(token_ids, emb_table, pos_table)  # dropout = identity
    stacked = _stack_params(layer_params, n_heads)
    # TODO(synk): D=32 is left unpadded (lane-underfilled) for these toy shapes; for
    # real model dims pad D/H to multiples of 128 in the wrapper for lane-dense stores.
    return encoder_layers(x, stacked, n_heads=n_heads)


# ----------------------------------------------------------------------------
if __name__ == "__main__":
    # small shapes consistent with the module
    B, S = 2, 8
    V_SIZE, SEQ_LEN = 50, 16
    D_MODEL, D_HIDDEN, N_HEADS, N_LAYERS = 32, 64, 4, 2

    root = jax.random.PRNGKey(0)
    k_ids, k_emb, k_layers = jax.random.split(root, 3)

    token_ids = jax.random.randint(k_ids, (B, S), 0, V_SIZE, dtype=jnp.int32)
    emb_table = 0.02 * jax.random.normal(k_emb, (V_SIZE, D_MODEL), jnp.float32)
    pos_table = sinusoidal_pos_encoding(SEQ_LEN, D_MODEL)
    layer_params = [
        init_layer_params(k, D_MODEL, D_HIDDEN)
        for k in jax.random.split(k_layers, N_LAYERS)
    ]

    out = encoder_forward(token_ids, emb_table, pos_table, layer_params,
                          n_heads=N_HEADS)
    out = jax.block_until_ready(out)
    assert out.shape == (B, S, D_MODEL)
    assert bool(jnp.all(jnp.isfinite(out)))
    print("KERNEL_OK")
</pallas_src>

<mosaic_0001>
module attributes {stable_mosaic.version = 11 : i64} {
  func.func @_encoder_stack_kernel(%arg0: i32, %arg1: i32, %arg2: memref<2x8x32xf32, #tpu.memory_space<vmem>>, %arg3: memref<1x4x32x8xbf16, #tpu.memory_space<vmem>>, %arg4: memref<1x4x32x8xbf16, #tpu.memory_space<vmem>>, %arg5: memref<1x4x32x8xbf16, #tpu.memory_space<vmem>>, %arg6: memref<1x4x8x32xbf16, #tpu.memory_space<vmem>>, %arg7: memref<1x32x64xbf16, #tpu.memory_space<vmem>>, %arg8: memref<1x64x32xbf16, #tpu.memory_space<vmem>>, %arg9: memref<1x4x3x8xf32, #tpu.memory_space<vmem>>, %arg10: memref<1x6x32xf32, #tpu.memory_space<vmem>>, %arg11: memref<1x1x64xf32, #tpu.memory_space<vmem>>, %arg12: memref<2x8x32xf32, #tpu.memory_space<vmem>>, %arg13: memref<16x32xf32, #tpu.memory_space<vmem>>) attributes {dimension_semantics = [#tpu.dimension_semantics<parallel>, #tpu.dimension_semantics<arbitrary>], iteration_bounds = array<i64: 1, 2>, scalar_prefetch = 0 : i64, scratch_operands = 1 : i64, tpu.core_type = #tpu.core_type<tc>, window_params = [{transform_indices = @transform_0, window_bounds = array<i64: 2, 8, 32>}, {transform_indices = @transform_1, window_bounds = array<i64: 1, 4, 32, 8>}, {transform_indices = @transform_2, window_bounds = array<i64: 1, 4, 32, 8>}, {transform_indices = @transform_3, window_bounds = array<i64: 1, 4, 32, 8>}, {transform_indices = @transform_4, window_bounds = array<i64: 1, 4, 8, 32>}, {transform_indices = @transform_5, window_bounds = array<i64: 1, 32, 64>}, {transform_indices = @transform_6, window_bounds = array<i64: 1, 64, 32>}, {transform_indices = @transform_7, window_bounds = array<i64: 1, 4, 3, 8>}, {transform_indices = @transform_8, window_bounds = array<i64: 1, 6, 32>}, {transform_indices = @transform_9, window_bounds = array<i64: 1, 1, 64>}, {transform_indices = @transform_10, window_bounds = array<i64: 2, 8, 32>}]} {
    %c0_i32 = arith.constant 0 : i32
    %0 = arith.cmpi eq, %arg1, %c0_i32 : i32
    %1 = arith.extui %0 : i1 to i32
    %c0_i32_0 = arith.constant 0 : i32
    %2 = arith.cmpi ne, %1, %c0_i32_0 : i32
    scf.if %2 {
      %c0_143 = arith.constant 0 : index
      %c0_144 = arith.constant 0 : index
      %c0_145 = arith.constant 0 : index
      %270 = vector.load %arg2[%c0_143, %c0_144, %c0_145] : memref<2x8x32xf32, #tpu.memory_space<vmem>>, vector<2x8x32xf32>
      %271 = vector.shape_cast %270 : vector<2x8x32xf32> to vector<16x32xf32>
      %c0_146 = arith.constant 0 : index
      %c0_147 = arith.constant 0 : index
      %272 = vector.load %arg13[%c0_146, %c0_147] : memref<16x32xf32, #tpu.memory_space<vmem>>, vector<16x32xf32>
      tpu.vector_store %arg13[%c0_146, %c0_147], %271 {strides = array<i32>} : memref<16x32xf32, #tpu.memory_space<vmem>>, vector<16x32xf32>,
    } else {
    }
    %c0 = arith.constant 0 : index
    %c0_1 = arith.constant 0 : index
    %3 = vector.load %arg13[%c0, %c0_1] : memref<16x32xf32, #tpu.memory_space<vmem>>, vector<16x32xf32>
    %4 = arith.truncf %3 : vector<16x32xf32> to vector<16x32xbf16>
    %c0_2 = arith.constant 0 : index
    %c0_3 = arith.constant 0 : index
    %c0_4 = arith.constant 0 : index
    %5 = vector.load %arg10[%c0_2, %c0_3, %c0_4] : memref<1x6x32xf32, #tpu.memory_space<vmem>>, vector<1x6x32xf32>
    %6 = vector.shape_cast %5 : vector<1x6x32xf32> to vector<6x32xf32>
    %7 = vector.extract_strided_slice %6 {offsets = [0, 0], sizes = [1, 32], strides = [1, 1]} : vector<6x32xf32> to vector<1x32xf32>
    %8 = vector.extract_strided_slice %6 {offsets = [1, 0], sizes = [1, 32], strides = [1, 1]} : vector<6x32xf32> to vector<1x32xf32>
    %9 = vector.extract_strided_slice %6 {offsets = [2, 0], sizes = [1, 32], strides = [1, 1]} : vector<6x32xf32> to vector<1x32xf32>
    %10 = vector.extract_strided_slice %6 {offsets = [3, 0], sizes = [1, 32], strides = [1, 1]} : vector<6x32xf32> to vector<1x32xf32>
    %11 = vector.extract_strided_slice %6 {offsets = [4, 0], sizes = [1, 32], strides = [1, 1]} : vector<6x32xf32> to vector<1x32xf32>
    %12 = vector.extract_strided_slice %6 {offsets = [5, 0], sizes = [1, 32], strides = [1, 1]} : vector<6x32xf32> to vector<1x32xf32>
    %cst = arith.constant 0.000000e+00 : f32
    %13 = vector.broadcast %cst : f32 to vector<16x32xf32>
    %c0_5 = arith.constant 0 : index
    %c0_6 = arith.constant 0 : index
    %c0_7 = arith.constant 0 : index
    %c0_8 = arith.constant 0 : index
    %14 = vector.load %arg9[%c0_5, %c0_6, %c0_7, %c0_8] : memref<1x4x3x8xf32, #tpu.memory_space<vmem>>, vector<1x1x3x8xf32>
    %15 = vector.shape_cast %14 : vector<1x1x3x8xf32> to vector<3x8xf32>
    %c0_9 = arith.constant 0 : index
    %c0_10 = arith.constant 0 : index
    %c0_11 = arith.constant 0 : index
    %c0_12 = arith.constant 0 : index
    %16 = vector.load %arg3[%c0_9, %c0_10, %c0_11, %c0_12] : memref<1x4x32x8xbf16, #tpu.memory_space<vmem>>, vector<1x1x32x8xbf16>
    %17 = vector.shape_cast %16 : vector<1x1x32x8xbf16> to vector<32x8xbf16>
    %cst_13 = arith.constant dense<0.000000e+00> : vector<16x8xf32>
    %18 = tpu.matmul %4, %17, %cst_13 {dimension_numbers = #tpu.dot_dimension_numbers<[1], [0], [0], [1], [0, 0, 1, 1], [], []>} : vector<16x32xbf16>, vector<32x8xbf16>, vector<16x8xf32> -> vector<16x8xf32>
    %19 = vector.extract_strided_slice %15 {offsets = [0, 0], sizes = [1, 8], strides = [1, 1]} : vector<3x8xf32> to vector<1x8xf32>
    %20 = vector.broadcast %19 : vector<1x8xf32> to vector<16x8xf32>
    %21 = arith.addf %18, %20 : vector<16x8xf32>
    %c0_14 = arith.constant 0 : index
    %c0_15 = arith.constant 0 : index
    %c0_16 = arith.constant 0 : index
    %c0_17 = arith.constant 0 : index
    %22 = vector.load %arg4[%c0_14, %c0_15, %c0_16, %c0_17] : memref<1x4x32x8xbf16, #tpu.memory_space<vmem>>, vector<1x1x32x8xbf16>
    %23 = vector.shape_cast %22 : vector<1x1x32x8xbf16> to vector<32x8xbf16>
    %cst_18 = arith.constant dense<0.000000e+00> : vector<16x8xf32>
    %24 = tpu.matmul %4, %23, %cst_18 {dimension_numbers = #tpu.dot_dimension_numbers<[1], [0], [0], [1], [0, 0, 1, 1], [], []>} : vector<16x32xbf16>, vector<32x8xbf16>, vector<16x8xf32> -> vector<16x8xf32>
    %25 = vector.extract_strided_slice %15 {offsets = [1, 0], sizes = [1, 8], strides = [1, 1]} : vector<3x8xf32> to vector<1x8xf32>
    %26 = vector.broadcast %25 : vector<1x8xf32> to vector<16x8xf32>
    %27 = arith.addf %24, %26 : vector<16x8xf32>
    %c0_19 = arith.constant 0 : index
    %c0_20 = arith.constant 0 : index
    %c0_21 = arith.constant 0 : index
    %c0_22 = arith.constant 0 : index
    %28 = vector.load %arg5[%c0_19, %c0_20, %c0_21, %c0_22] : memref<1x4x32x8xbf16, #tpu.memory_space<vmem>>, vector<1x1x32x8xbf16>
    %29 = vector.shape_cast %28 : vector<1x1x32x8xbf16> to vector<32x8xbf16>
    %cst_23 = arith.constant dense<0.000000e+00> : vector<16x8xf32>
    %30 = tpu.matmul %4, %29, %cst_23 {dimension_numbers = #tpu.dot_dimension_numbers<[1], [0], [0], [1], [0, 0, 1, 1], [], []>} : vector<16x32xbf16>, vector<32x8xbf16>, vector<16x8xf32> -> vector<16x8xf32>
    %31 = vector.extract_strided_slice %15 {offsets = [2, 0], sizes = [1, 8], strides = [1, 1]} : vector<3x8xf32> to vector<1x8xf32>
    %32 = vector.broadcast %31 : vector<1x8xf32> to vector<16x8xf32>
    %33 = arith.addf %30, %32 : vector<16x8xf32>
    %34 = vector.shape_cast %21 : vector<16x8xf32> to vector<2x8x8xf32>
    %35 = arith.truncf %34 : vector<2x8x8xf32> to vector<2x8x8xbf16>
    %36 = vector.shape_cast %27 : vector<16x8xf32> to vector<2x8x8xf32>
    %37 = arith.truncf %36 : vector<2x8x8xf32> to vector<2x8x8xbf16>
    %38 = vector.shape_cast %33 : vector<16x8xf32> to vector<2x8x8xf32>
    %39 = arith.truncf %38 : vector<2x8x8xf32> to vector<2x8x8xbf16>
    "tpu.trace_start"() <{level = 10 : i32, message = "bqd,bkd->bqk"}> : () -> ()
    %cst_24 = arith.constant dense<0.000000e+00> : vector<2x8x8xf32>
    %40 = tpu.matmul %35, %37, %cst_24 {dimension_numbers = #tpu.dot_dimension_numbers<[2], [2], [1], [1], [0, 0, 0, 1, 1, 1], [0], [0]>} : vector<2x8x8xbf16>, vector<2x8x8xbf16>, vector<2x8x8xf32> -> vector<2x8x8xf32>
    "tpu.trace_stop"() : () -> ()
    %cst_25 = arith.constant 0.353553385 : f32
    %41 = vector.broadcast %cst_25 : f32 to vector<2x8x8xf32>
    %42 = arith.mulf %40, %41 : vector<2x8x8xf32>
    %cst_26 = arith.constant dense<0xFF800000> : vector<2x8xf32>
    %43 = vector.multi_reduction <maximumf>, %42, %cst_26 [2] : vector<2x8x8xf32> to vector<2x8xf32>
    %44 = vector.shape_cast %43 : vector<2x8xf32> to vector<2x8x1xf32>
    %45 = vector.broadcast %44 : vector<2x8x1xf32> to vector<2x8x8xf32>
    %46 = arith.subf %42, %45 : vector<2x8x8xf32>
    %47 = math.exp %46 : vector<2x8x8xf32>
    %cst_27 = arith.constant dense<0.000000e+00> : vector<2x8xf32>
    %48 = vector.multi_reduction <add>, %47, %cst_27 [2] : vector<2x8x8xf32> to vector<2x8xf32>
    %49 = vector.shape_cast %48 : vector<2x8xf32> to vector<2x8x1xf32>
    %50 = tpu.reciprocal %49 {approx = true} : vector<2x8x1xf32> -> vector<2x8x1xf32>
    %51 = vector.broadcast %50 : vector<2x8x1xf32> to vector<2x8x8xf32>
    %52 = arith.mulf %47, %51 : vector<2x8x8xf32>
    %53 = arith.truncf %52 : vector<2x8x8xf32> to vector<2x8x8xbf16>
    "tpu.trace_start"() <{level = 10 : i32, message = "bqk,bkd->bqd"}> : () -> ()
    %cst_28 = arith.constant dense<0.000000e+00> : vector<2x8x8xf32>
    %54 = tpu.matmul %53, %39, %cst_28 {dimension_numbers = #tpu.dot_dimension_numbers<[2], [1], [1], [2], [0, 0, 0, 1, 1, 2], [0], [0]>} : vector<2x8x8xbf16>, vector<2x8x8xbf16>, vector<2x8x8xf32> -> vector<2x8x8xf32>
    "tpu.trace_stop"() : () -> ()
    %55 = vector.shape_cast %54 : vector<2x8x8xf32> to vector<16x8xf32>
    %56 = arith.truncf %55 : vector<16x8xf32> to vector<16x8xbf16>
    %c0_29 = arith.constant 0 : index
    %c0_30 = arith.constant 0 : index
    %c0_31 = arith.constant 0 : index
    %c0_32 = arith.constant 0 : index
    %57 = vector.load %arg6[%c0_29, %c0_30, %c0_31, %c0_32] : memref<1x4x8x32xbf16, #tpu.memory_space<vmem>>, vector<1x1x8x32xbf16>
    %58 = vector.shape_cast %57 : vector<1x1x8x32xbf16> to vector<8x32xbf16>
    %cst_33 = arith.constant dense<0.000000e+00> : vector<16x32xf32>
    %59 = tpu.matmul %56, %58, %cst_33 {dimension_numbers = #tpu.dot_dimension_numbers<[1], [0], [0], [1], [0, 0, 1, 1], [], []>} : vector<16x8xbf16>, vector<8x32xbf16>, vector<16x32xf32> -> vector<16x32xf32>
    %60 = arith.addf %13, %59 : vector<16x32xf32>
    %c0_34 = arith.constant 0 : index
    %c1 = arith.constant 1 : index
    %c0_35 = arith.constant 0 : index
    %c0_36 = arith.constant 0 : index
    %61 = vector.load %arg9[%c0_34, %c1, %c0_35, %c0_36] : memref<1x4x3x8xf32, #tpu.memory_space<vmem>>, vector<1x1x3x8xf32>
    %62 = vector.shape_cast %61 : vector<1x1x3x8xf32> to vector<3x8xf32>
    %c0_37 = arith.constant 0 : index
    %c1_38 = arith.constant 1 : index
    %c0_39 = arith.constant 0 : index
    %c0_40 = arith.constant 0 : index
    %63 = vector.load %arg3[%c0_37, %c1_38, %c0_39, %c0_40] : memref<1x4x32x8xbf16, #tpu.memory_space<vmem>>, vector<1x1x32x8xbf16>
    %64 = vector.shape_cast %63 : vector<1x1x32x8xbf16> to vector<32x8xbf16>
    %cst_41 = arith.constant dense<0.000000e+00> : vector<16x8xf32>
    %65 = tpu.matmul %4, %64, %cst_41 {dimension_numbers = #tpu.dot_dimension_numbers<[1], [0], [0], [1], [0, 0, 1, 1], [], []>} : vector<16x32xbf16>, vector<32x8xbf16>, vector<16x8xf32> -> vector<16x8xf32>
    %66 = vector.extract_strided_slice %62 {offsets = [0, 0], sizes = [1, 8], strides = [1, 1]} : vector<3x8xf32> to vector<1x8xf32>
    %67 = vector.broadcast %66 : vector<1x8xf32> to vector<16x8xf32>
    %68 = arith.addf %65, %67 : vector<16x8xf32>
    %c0_42 = arith.constant 0 : index
    %c1_43 = arith.constant 1 : index
    %c0_44 = arith.constant 0 : index
    %c0_45 = arith.constant 0 : index
    %69 = vector.load %arg4[%c0_42, %c1_43, %c0_44, %c0_45] : memref<1x4x32x8xbf16, #tpu.memory_space<vmem>>, vector<1x1x32x8xbf16>
    %70 = vector.shape_cast %69 : vector<1x1x32x8xbf16> to vector<32x8xbf16>
    %cst_46 = arith.constant dense<0.000000e+00> : vector<16x8xf32>
    %71 = tpu.matmul %4, %70, %cst_46 {dimension_numbers = #tpu.dot_dimension_numbers<[1], [0], [0], [1], [0, 0, 1, 1], [], []>} : vector<16x32xbf16>, vector<32x8xbf16>, vector<16x8xf32> -> vector<16x8xf32>
    %72 = vector.extract_strided_slice %62 {offsets = [1, 0], sizes = [1, 8], strides = [1, 1]} : vector<3x8xf32> to vector<1x8xf32>
    %73 = vector.broadcast %72 : vector<1x8xf32> to vector<16x8xf32>
    %74 = arith.addf %71, %73 : vector<16x8xf32>
    %c0_47 = arith.constant 0 : index
    %c1_48 = arith.constant 1 : index
    %c0_49 = arith.constant 0 : index
    %c0_50 = arith.constant 0 : index
    %75 = vector.load %arg5[%c0_47, %c1_48, %c0_49, %c0_50] : memref<1x4x32x8xbf16, #tpu.memory_space<vmem>>, vector<1x1x32x8xbf16>
    %76 = vector.shape_cast %75 : vector<1x1x32x8xbf16> to vector<32x8xbf16>
    %cst_51 = arith.constant dense<0.000000e+00> : vector<16x8xf32>
    %77 = tpu.matmul %4, %76, %cst_51 {dimension_numbers = #tpu.dot_dimension_numbers<[1], [0], [0], [1], [0, 0, 1, 1], [], []>} : vector<16x32xbf16>, vector<32x8xbf16>, vector<16x8xf32> -> vector<16x8xf32>
    %78 = vector.extract_strided_slice %62 {offsets = [2, 0], sizes = [1, 8], strides = [1, 1]} : vector<3x8xf32> to vector<1x8xf32>
    %79 = vector.broadcast %78 : vector<1x8xf32> to vector<16x8xf32>
    %80 = arith.addf %77, %79 : vector<16x8xf32>
    %81 = vector.shape_cast %68 : vector<16x8xf32> to vector<2x8x8xf32>
    %82 = arith.truncf %81 : vector<2x8x8xf32> to vector<2x8x8xbf16>
    %83 = vector.shape_cast %74 : vector<16x8xf32> to vector<2x8x8xf32>
    %84 = arith.truncf %83 : vector<2x8x8xf32> to vector<2x8x8xbf16>
    %85 = vector.shape_cast %80 : vector<16x8xf32> to vector<2x8x8xf32>
    %86 = arith.truncf %85 : vector<2x8x8xf32> to vector<2x8x8xbf16>
    "tpu.trace_start"() <{level = 10 : i32, message = "bqd,bkd->bqk"}> : () -> ()
    %cst_52 = arith.constant dense<0.000000e+00> : vector<2x8x8xf32>
    %87 = tpu.matmul %82, %84, %cst_52 {dimension_numbers = #tpu.dot_dimension_numbers<[2], [2], [1], [1], [0, 0, 0, 1, 1, 1], [0], [0]>} : vector<2x8x8xbf16>, vector<2x8x8xbf16>, vector<2x8x8xf32> -> vector<2x8x8xf32>
    "tpu.trace_stop"() : () -> ()
    %cst_53 = arith.constant 0.353553385 : f32
    %88 = vector.broadcast %cst_53 : f32 to vector<2x8x8xf32>
    %89 = arith.mulf %87, %88 : vector<2x8x8xf32>
    %cst_54 = arith.constant dense<0xFF800000> : vector<2x8xf32>
    %90 = vector.multi_reduction <maximumf>, %89, %cst_54 [2] : vector<2x8x8xf32> to vector<2x8xf32>
    %91 = vector.shape_cast %90 : vector<2x8xf32> to vector<2x8x1xf32>
    %92 = vector.broadcast %91 : vector<2x8x1xf32> to vector<2x8x8xf32>
    %93 = arith.subf %89, %92 : vector<2x8x8xf32>
    %94 = math.exp %93 : vector<2x8x8xf32>
    %cst_55 = arith.constant dense<0.000000e+00> : vector<2x8xf32>
    %95 = vector.multi_reduction <add>, %94, %cst_55 [2] : vector<2x8x8xf32> to vector<2x8xf32>
    %96 = vector.shape_cast %95 : vector<2x8xf32> to vector<2x8x1xf32>
    %97 = tpu.reciprocal %96 {approx = true} : vector<2x8x1xf32> -> vector<2x8x1xf32>
    %98 = vector.broadcast %97 : vector<2x8x1xf32> to vector<2x8x8xf32>
    %99 = arith.mulf %94, %98 : vector<2x8x8xf32>
    %100 = arith.truncf %99 : vector<2x8x8xf32> to vector<2x8x8xbf16>
    "tpu.trace_start"() <{level = 10 : i32, message = "bqk,bkd->bqd"}> : () -> ()
    %cst_56 = arith.constant dense<0.000000e+00> : vector<2x8x8xf32>
    %101 = tpu.matmul %100, %86, %cst_56 {dimension_numbers = #tpu.dot_dimension_numbers<[2], [1], [1], [2], [0, 0, 0, 1, 1, 2], [0], [0]>} : vector<2x8x8xbf16>, vector<2x8x8xbf16>, vector<2x8x8xf32> -> vector<2x8x8xf32>
    "tpu.trace_stop"() : () -> ()
    %102 = vector.shape_cast %101 : vector<2x8x8xf32> to vector<16x8xf32>
    %103 = arith.truncf %102 : vector<16x8xf32> to vector<16x8xbf16>
    %c0_57 = arith.constant 0 : index
    %c1_58 = arith.constant 1 : index
    %c0_59 = arith.constant 0 : index
    %c0_60 = arith.constant 0 : index
    %104 = vector.load %arg6[%c0_57, %c1_58, %c0_59, %c0_60] : memref<1x4x8x32xbf16, #tpu.memory_space<vmem>>, vector<1x1x8x32xbf16>
    %105 = vector.shape_cast %104 : vector<1x1x8x32xbf16> to vector<8x32xbf16>
    %cst_61 = arith.constant dense<0.000000e+00> : vector<16x32xf32>
    %106 = tpu.matmul %103, %105, %cst_61 {dimension_numbers = #tpu.dot_dimension_numbers<[1], [0], [0], [1], [0, 0, 1, 1], [], []>} : vector<16x8xbf16>, vector<8x32xbf16>, vector<16x32xf32> -> vector<16x32xf32>
    %107 = arith.addf %60, %106 : vector<16x32xf32>
    %c0_62 = arith.constant 0 : index
    %c2 = arith.constant 2 : index
    %c0_63 = arith.constant 0 : index
    %c0_64 = arith.constant 0 : index
    %108 = vector.load %arg9[%c0_62, %c2, %c0_63, %c0_64] : memref<1x4x3x8xf32, #tpu.memory_space<vmem>>, vector<1x1x3x8xf32>
    %109 = vector.shape_cast %108 : vector<1x1x3x8xf32> to vector<3x8xf32>
    %c0_65 = arith.constant 0 : index
    %c2_66 = arith.constant 2 : index
    %c0_67 = arith.constant 0 : index
    %c0_68 = arith.constant 0 : index
    %110 = vector.load %arg3[%c0_65, %c2_66, %c0_67, %c0_68] : memref<1x4x32x8xbf16, #tpu.memory_space<vmem>>, vector<1x1x32x8xbf16>
    %111 = vector.shape_cast %110 : vector<1x1x32x8xbf16> to vector<32x8xbf16>
    %cst_69 = arith.constant dense<0.000000e+00> : vector<16x8xf32>
    %112 = tpu.matmul %4, %111, %cst_69 {dimension_numbers = #tpu.dot_dimension_numbers<[1], [0], [0], [1], [0, 0, 1, 1], [], []>} : vector<16x32xbf16>, vector<32x8xbf16>, vector<16x8xf32> -> vector<16x8xf32>
    %113 = vector.extract_strided_slice %109 {offsets = [0, 0], sizes = [1, 8], strides = [1, 1]} : vector<3x8xf32> to vector<1x8xf32>
    %114 = vector.broadcast %113 : vector<1x8xf32> to vector<16x8xf32>
    %115 = arith.addf %112, %114 : vector<16x8xf32>
    %c0_70 = arith.constant 0 : index
    %c2_71 = arith.constant 2 : index
    %c0_72 = arith.constant 0 : index
    %c0_73 = arith.constant 0 : index
    %116 = vector.load %arg4[%c0_70, %c2_71, %c0_72, %c0_73] : memref<1x4x32x8xbf16, #tpu.memory_space<vmem>>, vector<1x1x32x8xbf16>
    %117 = vector.shape_cast %116 : vector<1x1x32x8xbf16> to vector<32x8xbf16>
    %cst_74 = arith.constant dense<0.000000e+00> : vector<16x8xf32>
    %118 = tpu.matmul %4, %117, %cst_74 {dimension_numbers = #tpu.dot_dimension_numbers<[1], [0], [0], [1], [0, 0, 1, 1], [], []>} : vector<16x32xbf16>, vector<32x8xbf16>, vector<16x8xf32> -> vector<16x8xf32>
    %119 = vector.extract_strided_slice %109 {offsets = [1, 0], sizes = [1, 8], strides = [1, 1]} : vector<3x8xf32> to vector<1x8xf32>
    %120 = vector.broadcast %119 : vector<1x8xf32> to vector<16x8xf32>
    %121 = arith.addf %118, %120 : vector<16x8xf32>
    %c0_75 = arith.constant 0 : index
    %c2_76 = arith.constant 2 : index
    %c0_77 = arith.constant 0 : index
    %c0_78 = arith.constant 0 : index
    %122 = vector.load %arg5[%c0_75, %c2_76, %c0_77, %c0_78] : memref<1x4x32x8xbf16, #tpu.memory_space<vmem>>, vector<1x1x32x8xbf16>
    %123 = vector.shape_cast %122 : vector<1x1x32x8xbf16> to vector<32x8xbf16>
    %cst_79 = arith.constant dense<0.000000e+00> : vector<16x8xf32>
    %124 = tpu.matmul %4, %123, %cst_79 {dimension_numbers = #tpu.dot_dimension_numbers<[1], [0], [0], [1], [0, 0, 1, 1], [], []>} : vector<16x32xbf16>, vector<32x8xbf16>, vector<16x8xf32> -> vector<16x8xf32>
    %125 = vector.extract_strided_slice %109 {offsets = [2, 0], sizes = [1, 8], strides = [1, 1]} : vector<3x8xf32> to vector<1x8xf32>
    %126 = vector.broadcast %125 : vector<1x8xf32> to vector<16x8xf32>
    %127 = arith.addf %124, %126 : vector<16x8xf32>
    %128 = vector.shape_cast %115 : vector<16x8xf32> to vector<2x8x8xf32>
    %129 = arith.truncf %128 : vector<2x8x8xf32> to vector<2x8x8xbf16>
    %130 = vector.shape_cast %121 : vector<16x8xf32> to vector<2x8x8xf32>
    %131 = arith.truncf %130 : vector<2x8x8xf32> to vector<2x8x8xbf16>
    %132 = vector.shape_cast %127 : vector<16x8xf32> to vector<2x8x8xf32>
    %133 = arith.truncf %132 : vector<2x8x8xf32> to vector<2x8x8xbf16>
    "tpu.trace_start"() <{level = 10 : i32, message = "bqd,bkd->bqk"}> : () -> ()
    %cst_80 = arith.constant dense<0.000000e+00> : vector<2x8x8xf32>
    %134 = tpu.matmul %129, %131, %cst_80 {dimension_numbers = #tpu.dot_dimension_numbers<[2], [2], [1], [1], [0, 0, 0, 1, 1, 1], [0], [0]>} : vector<2x8x8xbf16>, vector<2x8x8xbf16>, vector<2x8x8xf32> -> vector<2x8x8xf32>
    "tpu.trace_stop"() : () -> ()
    %cst_81 = arith.constant 0.353553385 : f32
    %135 = vector.broadcast %cst_81 : f32 to vector<2x8x8xf32>
    %136 = arith.mulf %134, %135 : vector<2x8x8xf32>
    %cst_82 = arith.constant dense<0xFF800000> : vector<2x8xf32>
    %137 = vector.multi_reduction <maximumf>, %136, %cst_82 [2] : vector<2x8x8xf32> to vector<2x8xf32>
    %138 = vector.shape_cast %137 : vector<2x8xf32> to vector<2x8x1xf32>
    %139 = vector.broadcast %138 : vector<2x8x1xf32> to vector<2x8x8xf32>
    %140 = arith.subf %136, %139 : vector<2x8x8xf32>
    %141 = math.exp %140 : vector<2x8x8xf32>
    %cst_83 = arith.constant dense<0.000000e+00> : vector<2x8xf32>
    %142 = vector.multi_reduction <add>, %141, %cst_83 [2] : vector<2x8x8xf32> to vector<2x8xf32>
    %143 = vector.shape_cast %142 : vector<2x8xf32> to vector<2x8x1xf32>
    %144 = tpu.reciprocal %143 {approx = true} : vector<2x8x1xf32> -> vector<2x8x1xf32>
    %145 = vector.broadcast %144 : vector<2x8x1xf32> to vector<2x8x8xf32>
    %146 = arith.mulf %141, %145 : vector<2x8x8xf32>
    %147 = arith.truncf %146 : vector<2x8x8xf32> to vector<2x8x8xbf16>
    "tpu.trace_start"() <{level = 10 : i32, message = "bqk,bkd->bqd"}> : () -> ()
    %cst_84 = arith.constant dense<0.000000e+00> : vector<2x8x8xf32>
    %148 = tpu.matmul %147, %133, %cst_84 {dimension_numbers = #tpu.dot_dimension_numbers<[2], [1], [1], [2], [0, 0, 0, 1, 1, 2], [0], [0]>} : vector<2x8x8xbf16>, vector<2x8x8xbf16>, vector<2x8x8xf32> -> vector<2x8x8xf32>
    "tpu.trace_stop"() : () -> ()
    %149 = vector.shape_cast %148 : vector<2x8x8xf32> to vector<16x8xf32>
    %150 = arith.truncf %149 : vector<16x8xf32> to vector<16x8xbf16>
    %c0_85 = arith.constant 0 : index
    %c2_86 = arith.constant 2 : index
    %c0_87 = arith.constant 0 : index
    %c0_88 = arith.constant 0 : index
    %151 = vector.load %arg6[%c0_85, %c2_86, %c0_87, %c0_88] : memref<1x4x8x32xbf16, #tpu.memory_space<vmem>>, vector<1x1x8x32xbf16>
    %152 = vector.shape_cast %151 : vector<1x1x8x32xbf16> to vector<8x32xbf16>
    %cst_89 = arith.constant dense<0.000000e+00> : vector<16x32xf32>
    %153 = tpu.matmul %150, %152, %cst_89 {dimension_numbers = #tpu.dot_dimension_numbers<[1], [0], [0], [1], [0, 0, 1, 1], [], []>} : vector<16x8xbf16>, vector<8x32xbf16>, vector<16x32xf32> -> vector<16x32xf32>
    %154 = arith.addf %107, %153 : vector<16x32xf32>
    %c0_90 = arith.constant 0 : index
    %c3 = arith.constant 3 : index
    %c0_91 = arith.constant 0 : index
    %c0_92 = arith.constant 0 : index
    %155 = vector.load %arg9[%c0_90, %c3, %c0_91, %c0_92] : memref<1x4x3x8xf32, #tpu.memory_space<vmem>>, vector<1x1x3x8xf32>
    %156 = vector.shape_cast %155 : vector<1x1x3x8xf32> to vector<3x8xf32>
    %c0_93 = arith.constant 0 : index
    %c3_94 = arith.constant 3 : index
    %c0_95 = arith.constant 0 : index
    %c0_96 = arith.constant 0 : index
    %157 = vector.load %arg3[%c0_93, %c3_94, %c0_95, %c0_96] : memref<1x4x32x8xbf16, #tpu.memory_space<vmem>>, vector<1x1x32x8xbf16>
    %158 = vector.shape_cast %157 : vector<1x1x32x8xbf16> to vector<32x8xbf16>
    %cst_97 = arith.constant dense<0.000000e+00> : vector<16x8xf32>
    %159 = tpu.matmul %4, %158, %cst_97 {dimension_numbers = #tpu.dot_dimension_numbers<[1], [0], [0], [1], [0, 0, 1, 1], [], []>} : vector<16x32xbf16>, vector<32x8xbf16>, vector<16x8xf32> -> vector<16x8xf32>
    %160 = vector.extract_strided_slice %156 {offsets = [0, 0], sizes = [1, 8], strides = [1, 1]} : vector<3x8xf32> to vector<1x8xf32>
    %161 = vector.broadcast %160 : vector<1x8xf32> to vector<16x8xf32>
    %162 = arith.addf %159, %161 : vector<16x8xf32>
    %c0_98 = arith.constant 0 : index
    %c3_99 = arith.constant 3 : index
    %c0_100 = arith.constant 0 : index
    %c0_101 = arith.constant 0 : index
    %163 = vector.load %arg4[%c0_98, %c3_99, %c0_100, %c0_101] : memref<1x4x32x8xbf16, #tpu.memory_space<vmem>>, vector<1x1x32x8xbf16>
    %164 = vector.shape_cast %163 : vector<1x1x32x8xbf16> to vector<32x8xbf16>
    %cst_102 = arith.constant dense<0.000000e+00> : vector<16x8xf32>
    %165 = tpu.matmul %4, %164, %cst_102 {dimension_numbers = #tpu.dot_dimension_numbers<[1], [0], [0], [1], [0, 0, 1, 1], [], []>} : vector<16x32xbf16>, vector<32x8xbf16>, vector<16x8xf32> -> vector<16x8xf32>
    %166 = vector.extract_strided_slice %156 {offsets = [1, 0], sizes = [1, 8], strides = [1, 1]} : vector<3x8xf32> to vector<1x8xf32>
    %167 = vector.broadcast %166 : vector<1x8xf32> to vector<16x8xf32>
    %168 = arith.addf %165, %167 : vector<16x8xf32>
    %c0_103 = arith.constant 0 : index
    %c3_104 = arith.constant 3 : index
    %c0_105 = arith.constant 0 : index
    %c0_106 = arith.constant 0 : index
    %169 = vector.load %arg5[%c0_103, %c3_104, %c0_105, %c0_106] : memref<1x4x32x8xbf16, #tpu.memory_space<vmem>>, vector<1x1x32x8xbf16>
    %170 = vector.shape_cast %169 : vector<1x1x32x8xbf16> to vector<32x8xbf16>
    %cst_107 = arith.constant dense<0.000000e+00> : vector<16x8xf32>
    %171 = tpu.matmul %4, %170, %cst_107 {dimension_numbers = #tpu.dot_dimension_numbers<[1], [0], [0], [1], [0, 0, 1, 1], [], []>} : vector<16x32xbf16>, vector<32x8xbf16>, vector<16x8xf32> -> vector<16x8xf32>
    %172 = vector.extract_strided_slice %156 {offsets = [2, 0], sizes = [1, 8], strides = [1, 1]} : vector<3x8xf32> to vector<1x8xf32>
    %173 = vector.broadcast %172 : vector<1x8xf32> to vector<16x8xf32>
    %174 = arith.addf %171, %173 : vector<16x8xf32>
    %175 = vector.shape_cast %162 : vector<16x8xf32> to vector<2x8x8xf32>
    %176 = arith.truncf %175 : vector<2x8x8xf32> to vector<2x8x8xbf16>
    %177 = vector.shape_cast %168 : vector<16x8xf32> to vector<2x8x8xf32>
    %178 = arith.truncf %177 : vector<2x8x8xf32> to vector<2x8x8xbf16>
    %179 = vector.shape_cast %174 : vector<16x8xf32> to vector<2x8x8xf32>
    %180 = arith.truncf %179 : vector<2x8x8xf32> to vector<2x8x8xbf16>
    "tpu.trace_start"() <{level = 10 : i32, message = "bqd,bkd->bqk"}> : () -> ()
    %cst_108 = arith.constant dense<0.000000e+00> : vector<2x8x8xf32>
    %181 = tpu.matmul %176, %178, %cst_108 {dimension_numbers = #tpu.dot_dimension_numbers<[2], [2], [1], [1], [0, 0, 0, 1, 1, 1], [0], [0]>} : vector<2x8x8xbf16>, vector<2x8x8xbf16>, vector<2x8x8xf32> -> vector<2x8x8xf32>
    "tpu.trace_stop"() : () -> ()
    %cst_109 = arith.constant 0.353553385 : f32
    %182 = vector.broadcast %cst_109 : f32 to vector<2x8x8xf32>
    %183 = arith.mulf %181, %182 : vector<2x8x8xf32>
    %cst_110 = arith.constant dense<0xFF800000> : vector<2x8xf32>
    %184 = vector.multi_reduction <maximumf>, %183, %cst_110 [2] : vector<2x8x8xf32> to vector<2x8xf32>
    %185 = vector.shape_cast %184 : vector<2x8xf32> to vector<2x8x1xf32>
    %186 = vector.broadcast %185 : vector<2x8x1xf32> to vector<2x8x8xf32>
    %187 = arith.subf %183, %186 : vector<2x8x8xf32>
    %188 = math.exp %187 : vector<2x8x8xf32>
    %cst_111 = arith.constant dense<0.000000e+00> : vector<2x8xf32>
    %189 = vector.multi_reduction <add>, %188, %cst_111 [2] : vector<2x8x8xf32> to vector<2x8xf32>
    %190 = vector.shape_cast %189 : vector<2x8xf32> to vector<2x8x1xf32>
    %191 = tpu.reciprocal %190 {approx = true} : vector<2x8x1xf32> -> vector<2x8x1xf32>
    %192 = vector.broadcast %191 : vector<2x8x1xf32> to vector<2x8x8xf32>
    %193 = arith.mulf %188, %192 : vector<2x8x8xf32>
    %194 = arith.truncf %193 : vector<2x8x8xf32> to vector<2x8x8xbf16>
    "tpu.trace_start"() <{level = 10 : i32, message = "bqk,bkd->bqd"}> : () -> ()
    %cst_112 = arith.constant dense<0.000000e+00> : vector<2x8x8xf32>
    %195 = tpu.matmul %194, %180, %cst_112 {dimension_numbers = #tpu.dot_dimension_numbers<[2], [1], [1], [2], [0, 0, 0, 1, 1, 2], [0], [0]>} : vector<2x8x8xbf16>, vector<2x8x8xbf16>, vector<2x8x8xf32> -> vector<2x8x8xf32>
    "tpu.trace_stop"() : () -> ()
    %196 = vector.shape_cast %195 : vector<2x8x8xf32> to vector<16x8xf32>
    %197 = arith.truncf %196 : vector<16x8xf32> to vector<16x8xbf16>
    %c0_113 = arith.constant 0 : index
    %c3_114 = arith.constant 3 : index
    %c0_115 = arith.constant 0 : index
    %c0_116 = arith.constant 0 : index
    %198 = vector.load %arg6[%c0_113, %c3_114, %c0_115, %c0_116] : memref<1x4x8x32xbf16, #tpu.memory_space<vmem>>, vector<1x1x8x32xbf16>
    %199 = vector.shape_cast %198 : vector<1x1x8x32xbf16> to vector<8x32xbf16>
    %cst_117 = arith.constant dense<0.000000e+00> : vector<16x32xf32>
    %200 = tpu.matmul %197, %199, %cst_117 {dimension_numbers = #tpu.dot_dimension_numbers<[1], [0], [0], [1], [0, 0, 1, 1], [], []>} : vector<16x8xbf16>, vector<8x32xbf16>, vector<16x32xf32> -> vector<16x32xf32>
    %201 = arith.addf %154, %200 : vector<16x32xf32>
    %202 = vector.broadcast %7 : vector<1x32xf32> to vector<16x32xf32>
    %203 = arith.addf %201, %202 : vector<16x32xf32>
    %204 = arith.addf %3, %203 : vector<16x32xf32>
    %cst_118 = arith.constant dense<0.000000e+00> : vector<16xf32>
    %205 = vector.multi_reduction <add>, %204, %cst_118 [1] : vector<16x32xf32> to vector<16xf32>
    %206 = vector.shape_cast %205 : vector<16xf32> to vector<16x1xf32>
    %cst_119 = arith.constant 3.200000e+01 : f32
    %207 = vector.broadcast %cst_119 : f32 to vector<16x1xf32>
    %208 = arith.divf %206, %207 : vector<16x1xf32>
    %209 = vector.broadcast %208 : vector<16x1xf32> to vector<16x32xf32>
    %210 = arith.subf %204, %209 : vector<16x32xf32>
    %211 = arith.mulf %210, %210 : vector<16x32xf32>
    %cst_120 = arith.constant dense<0.000000e+00> : vector<16xf32>
    %212 = vector.multi_reduction <add>, %211, %cst_120 [1] : vector<16x32xf32> to vector<16xf32>
    %213 = vector.shape_cast %212 : vector<16xf32> to vector<16x1xf32>
    %cst_121 = arith.constant 3.200000e+01 : f32
    %214 = vector.broadcast %cst_121 : f32 to vector<16x1xf32>
    %215 = arith.divf %213, %214 : vector<16x1xf32>
    %216 = vector.broadcast %208 : vector<16x1xf32> to vector<16x32xf32>
    %217 = arith.subf %204, %216 : vector<16x32xf32>
    %cst_122 = arith.constant 9.99999974E-6 : f32
    %218 = vector.broadcast %cst_122 : f32 to vector<16x1xf32>
    %219 = arith.addf %215, %218 : vector<16x1xf32>
    %220 = math.rsqrt %219 : vector<16x1xf32>
    %221 = vector.broadcast %220 : vector<16x1xf32> to vector<16x32xf32>
    %222 = arith.mulf %217, %221 : vector<16x32xf32>
    %223 = vector.broadcast %8 : vector<1x32xf32> to vector<16x32xf32>
    %224 = arith.mulf %222, %223 : vector<16x32xf32>
    %225 = vector.broadcast %9 : vector<1x32xf32> to vector<16x32xf32>
    %226 = arith.addf %224, %225 : vector<16x32xf32>
    %227 = arith.truncf %226 : vector<16x32xf32> to vector<16x32xbf16>
    %c0_123 = arith.constant 0 : index
    %c0_124 = arith.constant 0 : index
    %c0_125 = arith.constant 0 : index
    %228 = vector.load %arg7[%c0_123, %c0_124, %c0_125] : memref<1x32x64xbf16, #tpu.memory_space<vmem>>, vector<1x32x64xbf16>
    %229 = vector.shape_cast %228 : vector<1x32x64xbf16> to vector<32x64xbf16>
    %cst_126 = arith.constant dense<0.000000e+00> : vector<16x64xf32>
    %230 = tpu.matmul %227, %229, %cst_126 {dimension_numbers = #tpu.dot_dimension_numbers<[1], [0], [0], [1], [0, 0, 1, 1], [], []>} : vector<16x32xbf16>, vector<32x64xbf16>, vector<16x64xf32> -> vector<16x64xf32>
    %c0_127 = arith.constant 0 : index
    %c0_128 = arith.constant 0 : index
    %c0_129 = arith.constant 0 : index
    %231 = vector.load %arg11[%c0_127, %c0_128, %c0_129] : memref<1x1x64xf32, #tpu.memory_space<vmem>>, vector<1x1x64xf32>
    %232 = vector.shape_cast %231 : vector<1x1x64xf32> to vector<1x64xf32>
    %233 = vector.broadcast %232 : vector<1x64xf32> to vector<16x64xf32>
    %234 = arith.addf %230, %233 : vector<16x64xf32>
    %cst_130 = arith.constant 0.000000e+00 : f32
    %235 = vector.broadcast %cst_130 : f32 to vector<16x64xf32>
    %236 = arith.maximumf %234, %235 : vector<16x64xf32>
    %237 = arith.truncf %236 : vector<16x64xf32> to vector<16x64xbf16>
    %c0_131 = arith.constant 0 : index
    %c0_132 = arith.constant 0 : index
    %c0_133 = arith.constant 0 : index
    %238 = vector.load %arg8[%c0_131, %c0_132, %c0_133] : memref<1x64x32xbf16, #tpu.memory_space<vmem>>, vector<1x64x32xbf16>
    %239 = vector.shape_cast %238 : vector<1x64x32xbf16> to vector<64x32xbf16>
    %cst_134 = arith.constant dense<0.000000e+00> : vector<16x32xf32>
    %240 = tpu.matmul %237, %239, %cst_134 {dimension_numbers = #tpu.dot_dimension_numbers<[1], [0], [0], [1], [0, 0, 1, 1], [], []>} : vector<16x64xbf16>, vector<64x32xbf16>, vector<16x32xf32> -> vector<16x32xf32>
    %241 = vector.broadcast %10 : vector<1x32xf32> to vector<16x32xf32>
    %242 = arith.addf %240, %241 : vector<16x32xf32>
    %243 = arith.addf %226, %242 : vector<16x32xf32>
    %cst_135 = arith.constant dense<0.000000e+00> : vector<16xf32>
    %244 = vector.multi_reduction <add>, %243, %cst_135 [1] : vector<16x32xf32> to vector<16xf32>
    %245 = vector.shape_cast %244 : vector<16xf32> to vector<16x1xf32>
    %cst_136 = arith.constant 3.200000e+01 : f32
    %246 = vector.broadcast %cst_136 : f32 to vector<16x1xf32>
    %247 = arith.divf %245, %246 : vector<16x1xf32>
    %248 = vector.broadcast %247 : vector<16x1xf32> to vector<16x32xf32>
    %249 = arith.subf %243, %248 : vector<16x32xf32>
    %250 = arith.mulf %249, %249 : vector<16x32xf32>
    %cst_137 = arith.constant dense<0.000000e+00> : vector<16xf32>
    %251 = vector.multi_reduction <add>, %250, %cst_137 [1] : vector<16x32xf32> to vector<16xf32>
    %252 = vector.shape_cast %251 : vector<16xf32> to vector<16x1xf32>
    %cst_138 = arith.constant 3.200000e+01 : f32
    %253 = vector.broadcast %cst_138 : f32 to vector<16x1xf32>
    %254 = arith.divf %252, %253 : vector<16x1xf32>
    %255 = vector.broadcast %247 : vector<16x1xf32> to vector<16x32xf32>
    %256 = arith.subf %243, %255 : vector<16x32xf32>
    %cst_139 = arith.constant 9.99999974E-6 : f32
    %257 = vector.broadcast %cst_139 : f32 to vector<16x1xf32>
    %258 = arith.addf %254, %257 : vector<16x1xf32>
    %259 = math.rsqrt %258 : vector<16x1xf32>
    %260 = vector.broadcast %259 : vector<16x1xf32> to vector<16x32xf32>
    %261 = arith.mulf %256, %260 : vector<16x32xf32>
    %262 = vector.broadcast %11 : vector<1x32xf32> to vector<16x32xf32>
    %263 = arith.mulf %261, %262 : vector<16x32xf32>
    %264 = vector.broadcast %12 : vector<1x32xf32> to vector<16x32xf32>
    %265 = arith.addf %263, %264 : vector<16x32xf32>
    %c0_140 = arith.constant 0 : index
    %c0_141 = arith.constant 0 : index
    %266 = vector.load %arg13[%c0_140, %c0_141] : memref<16x32xf32, #tpu.memory_space<vmem>>, vector<16x32xf32>
    tpu.vector_store %arg13[%c0_140, %c0_141], %265 {strides = array<i32>} : memref<16x32xf32, #tpu.memory_space<vmem>>, vector<16x32xf32>,
    %c1_i32 = arith.constant 1 : i32
    %267 = arith.cmpi eq, %arg1, %c1_i32 : i32
    %268 = arith.extui %267 : i1 to i32
    %c0_i32_142 = arith.constant 0 : i32
    %269 = arith.cmpi ne, %268, %c0_i32_142 : i32
    scf.if %269 {
      %270 = vector.shape_cast %265 : vector<16x32xf32> to vector<2x8x32xf32>
      %c0_143 = arith.constant 0 : index
      %c0_144 = arith.constant 0 : index
      %c0_145 = arith.constant 0 : index
      %271 = vector.load %arg12[%c0_143, %c0_144, %c0_145] : memref<2x8x32xf32, #tpu.memory_space<vmem>>, vector<2x8x32xf32>
      tpu.vector_store %arg12[%c0_143, %c0_144, %c0_145], %270 {strides = array<i32>} : memref<2x8x32xf32, #tpu.memory_space<vmem>>, vector<2x8x32xf32>,
    } else {
    }
    return
  }
  func.func @transform_0(%arg0: i32, %arg1: i32) -> (i32, i32, i32) {
    %c0_i32 = arith.constant 0 : i32
    %c0_i32_0 = arith.constant 0 : i32
    %c0_i32_1 = arith.constant 0 : i32
    return %arg0, %c0_i32, %c0_i32_0 : i32, i32, i32
  }
  func.func @transform_1(%arg0: i32, %arg1: i32) -> (i32, i32, i32, i32) {
    %c0_i32 = arith.constant 0 : i32
    %c0_i32_0 = arith.constant 0 : i32
    %c0_i32_1 = arith.constant 0 : i32
    %c0_i32_2 = arith.constant 0 : i32
    return %arg1, %c0_i32, %c0_i32_0, %c0_i32_1 : i32, i32, i32, i32
  }
  func.func @transform_2(%arg0: i32, %arg1: i32) -> (i32, i32, i32, i32) {
    %c0_i32 = arith.constant 0 : i32
    %c0_i32_0 = arith.constant 0 : i32
    %c0_i32_1 = arith.constant 0 : i32
    %c0_i32_2 = arith.constant 0 : i32
    return %arg1, %c0_i32, %c0_i32_0, %c0_i32_1 : i32, i32, i32, i32
  }
  func.func @transform_3(%arg0: i32, %arg1: i32) -> (i32, i32, i32, i32) {
    %c0_i32 = arith.constant 0 : i32
    %c0_i32_0 = arith.constant 0 : i32
    %c0_i32_1 = arith.constant 0 : i32
    %c0_i32_2 = arith.constant 0 : i32
    return %arg1, %c0_i32, %c0_i32_0, %c0_i32_1 : i32, i32, i32, i32
  }
  func.func @transform_4(%arg0: i32, %arg1: i32) -> (i32, i32, i32, i32) {
    %c0_i32 = arith.constant 0 : i32
    %c0_i32_0 = arith.constant 0 : i32
    %c0_i32_1 = arith.constant 0 : i32
    %c0_i32_2 = arith.constant 0 : i32
    return %arg1, %c0_i32, %c0_i32_0, %c0_i32_1 : i32, i32, i32, i32
  }
  func.func @transform_5(%arg0: i32, %arg1: i32) -> (i32, i32, i32) {
    %c0_i32 = arith.constant 0 : i32
    %c0_i32_0 = arith.constant 0 : i32
    %c0_i32_1 = arith.constant 0 : i32
    return %arg1, %c0_i32, %c0_i32_0 : i32, i32, i32
  }
  func.func @transform_6(%arg0: i32, %arg1: i32) -> (i32, i32, i32) {
    %c0_i32 = arith.constant 0 : i32
    %c0_i32_0 = arith.constant 0 : i32
    %c0_i32_1 = arith.constant 0 : i32
    return %arg1, %c0_i32, %c0_i32_0 : i32, i32, i32
  }
  func.func @transform_7(%arg0: i32, %arg1: i32) -> (i32, i32, i32, i32) {
    %c0_i32 = arith.constant 0 : i32
    %c0_i32_0 = arith.constant 0 : i32
    %c0_i32_1 = arith.constant 0 : i32
    %c0_i32_2 = arith.constant 0 : i32
    return %arg1, %c0_i32, %c0_i32_0, %c0_i32_1 : i32, i32, i32, i32
  }
  func.func @transform_8(%arg0: i32, %arg1: i32) -> (i32, i32, i32) {
    %c0_i32 = arith.constant 0 : i32
    %c0_i32_0 = arith.constant 0 : i32
    %c0_i32_1 = arith.constant 0 : i32
    return %arg1, %c0_i32, %c0_i32_0 : i32, i32, i32
  }
  func.func @transform_9(%arg0: i32, %arg1: i32) -> (i32, i32, i32) {
    %c0_i32 = arith.constant 0 : i32
    %c0_i32_0 = arith.constant 0 : i32
    %c0_i32_1 = arith.constant 0 : i32
    return %arg1, %c0_i32, %c0_i32_0 : i32, i32, i32
  }
  func.func @transform_10(%arg0: i32, %arg1: i32) -> (i32, i32, i32) {
    %c0_i32 = arith.constant 0 : i32
    %c0_i32_0 = arith.constant 0 : i32
    %c0_i32_1 = arith.constant 0 : i32
    return %arg0, %c0_i32, %c0_i32_0 : i32, i32, i32
  }
}

</mosaic_0001>

<llo_original>
// kernel: tpu_custom_call.1
$region0: #{tpu_custom_call.1}
  #allocation0 [shape = 'u32[]', space=smem, size = 0x4, offset = 0x4, fixed_abs, tag = 'smem constant byte address 0x4 - core index']
  #allocation1 [shape = 'u32[144,128]{1,0:T(1,128)}', space=vmem, size = 0x12000, scoped, tag = 'internal scratch']
  #allocation2 [shape = 'f32[16,32]{1,0:T(8,128)}', space=vmem, size = 0x2000, scoped, tag = 'scratch operand']
  %s0 = inlined_call_operand.vmem [shape: f32[2,8,32], index: 0, kind: input, shape index: {}]
  %s1 = inlined_call_operand.vmem [shape: bf16[2,4,32,8], index: 1, kind: input, shape index: {}]
  %s2 = inlined_call_operand.vmem [shape: bf16[2,4,32,8], index: 2, kind: input, shape index: {}]
  %s3 = inlined_call_operand.vmem [shape: bf16[2,4,32,8], index: 3, kind: input, shape index: {}]
  %s4 = inlined_call_operand.vmem [shape: bf16[2,4,8,32], index: 4, kind: input, shape index: {}]
  %s5 = inlined_call_operand.vmem [shape: bf16[2,32,64], index: 5, kind: input, shape index: {}]
  %s6 = inlined_call_operand.vmem [shape: bf16[2,64,32], index: 6, kind: input, shape index: {}]
  %s7 = inlined_call_operand.vmem [shape: f32[2,4,3,8], index: 7, kind: input, shape index: {}]
  %s8 = inlined_call_operand.vmem [shape: f32[2,6,32], index: 8, kind: input, shape index: {}]
  %s9 = inlined_call_operand.vmem [shape: f32[2,1,64], index: 9, kind: input, shape index: {}]
  %s10 = inlined_call_operand.hbm [shape: f32[2,8,32], index: 10, kind: output, shape index: {}]
  %s11 = sld [smem:[#allocation0]]
  $region81: #{tpu_custom_call.1} parent=0
    _
  %s13 = ssub.s32 1, %s11
  %s14 = scalar_select 0, %s13, %s11
  $region1: #{tpu_custom_call.1} parent=0
    #allocation3 [shape = 'u8[8192]{0}', space=vmem, size = 0x2000, scoped, tag = 'output window, operand 0, single buffered']
    #allocation4 [shape = 's32[2]{0}', space=sflag, size = 0x8, scoped, tag = 'scoped memory for tpu_custom_call.1']
    %15 = vsyncpa [#allocation4], 0
    loop: start=0, step=1, limit=4
    $region2: #{tpu_custom_call.1} parent=1 // loop_pre_header
      _
    $region3: #{tpu_custom_call.1} parent=1 // loop_header
      %s17 = sphi 0, %s21
      %p18 = scmp.ge.s32.totalorder %s17, 4
      %s24 = sphi 0, %s36
      %s25 = sphi 0, %s32
      %s26 = sphi 0, %s24
      %s27 = sphi 0, %s25
      %s28 = sphi 0, %s26
      %s29 = sphi 0, %s27
      %s39 = sphi 0, %s41
      %s42 = sphi 0, %s39
      %s43 = sphi 0, %s42
      %s59 = sphi 0, %s43
      %s65 = sphi 0, %s67
      %s68 = sphi 0, %s65
      %s69 = sphi 0, %s68
      %s85 = sphi 0, %s69
      %s91 = sphi 0, %s93
      %s94 = sphi 0, %s91
      %s95 = sphi 0, %s94
      %s111 = sphi 0, %s95
      %s117 = sphi 0, %s119
      %s120 = sphi 0, %s117
      %s121 = sphi 0, %s120
      %s137 = sphi 0, %s121
      %s143 = sphi 0, %s145
      %s146 = sphi 0, %s143
      %s147 = sphi 0, %s146
      %s163 = sphi 0, %s147
      %s169 = sphi 0, %s171
      %s172 = sphi 0, %s169
      %s173 = sphi 0, %s172
      %s189 = sphi 0, %s173
      %s195 = sphi 0, %s197
      %s198 = sphi 0, %s195
      %s199 = sphi 0, %s198
      %s215 = sphi 0, %s199
      %s221 = sphi 0, %s223
      %s224 = sphi 0, %s221
      %s225 = sphi 0, %s224
      %s241 = sphi 0, %s225
      %s247 = sphi 0, %s249
      %s250 = sphi 0, %s247
      %s251 = sphi 0, %s250
      %s267 = sphi 0, %s251
      %s273 = sphi 0, %s275
      %s276 = sphi 0, %s273
      %s277 = sphi 0, %s276
      %s293 = sphi 0, %s277
      %s299 = sphi 0, %s301
      %s302 = sphi 0, %s299
      %s303 = sphi 0, %s302
      %s319 = sphi 0, %s303
    $region4: #{tpu_custom_call.1} parent=1 // loop_header_branch
      %20 = sbr.rel (%p18) target = $region8
    $region5: #{tpu_custom_call.1} parent=1 // loop_body
      %s22 = ssub.s32 %s17, 1
      %s23 = ssub.s32 %s17, 2
      %s30 = sadd.s32 1, %s25
      %p31 = scmp.ge.s32.totalorder %s30, 2
      %s32 = scalar_select %p31, 0, %s30
      %s33 = sadd.s32 1, %s24
      %s34 = scalar_select %p31, %s33, %s24
      %p35 = scmp.ge.s32.totalorder %s34, 1
      %s36 = scalar_select %p35, 0, %s34
      %s37 = ssub.s32 %s24, %s36
      %p38 = scmp.eq.s32.totalorder %s37, 0
      %s40 = sadd.s32 %s39, 1
      %s41 = scalar_select %p38, %s39, %s40
      %p44 = pneg %p38
      %p45 = scmp.eq.s32.totalorder %s17, 1
      %p46 = por %p44, %p45
      %p47 = scmp.ne.s32.totalorder %s39, %s42
      %p48 = scmp.eq.s32.totalorder %s17, 0
      %p49 = por %p47, %p48
      %p50 = scmp.ne.s32.totalorder %s39, %s42
      %p51 = scmp.eq.s32.totalorder %s22, 1
      %p52 = por %p50, %p51
      %p53 = scmp.ne.s32.totalorder %s42, %s43
      %p54 = scmp.eq.s32.totalorder %s22, 0
      %p55 = por %p53, %p54
      %p56 = scmp.ne.s32.totalorder %s42, %s43
      %p57 = scmp.eq.s32.totalorder %s23, 1
      %p58 = por %p56, %p57
      %p60 = scmp.ne.s32.totalorder %s43, %s59
      %p61 = scmp.eq.s32.totalorder %s23, 0
      %p62 = por %p60, %p61
      %s63 = ssub.s32 %s25, %s32
      %p64 = scmp.eq.s32.totalorder %s63, 0
      %s66 = sadd.s32 %s65, 1
      %s67 = scalar_select %p64, %s65, %s66
      %p70 = pneg %p64
      %p71 = scmp.eq.s32.totalorder %s17, 1
      %p72 = por %p70, %p71
      %p73 = scmp.ne.s32.totalorder %s65, %s68
      %p74 = scmp.eq.s32.totalorder %s17, 0
      %p75 = por %p73, %p74
      %p76 = scmp.ne.s32.totalorder %s65, %s68
      %p77 = scmp.eq.s32.totalorder %s22, 1
      %p78 = por %p76, %p77
      %p79 = scmp.ne.s32.totalorder %s68, %s69
      %p80 = scmp.eq.s32.totalorder %s22, 0
      %p81 = por %p79, %p80
      %p82 = scmp.ne.s32.totalorder %s68, %s69
      %p83 = scmp.eq.s32.totalorder %s23, 1
      %p84 = por %p82, %p83
      %p86 = scmp.ne.s32.totalorder %s69, %s85
      %p87 = scmp.eq.s32.totalorder %s23, 0
      %p88 = por %p86, %p87
      %s89 = ssub.s32 %s25, %s32
      %p90 = scmp.eq.s32.totalorder %s89, 0
      %s92 = sadd.s32 %s91, 1
      %s93 = scalar_select %p90, %s91, %s92
      %p96 = pneg %p90
      %p97 = scmp.eq.s32.totalorder %s17, 1
      %p98 = por %p96, %p97
      %p99 = scmp.ne.s32.totalorder %s91, %s94
      %p100 = scmp.eq.s32.totalorder %s17, 0
      %p101 = por %p99, %p100
      %p102 = scmp.ne.s32.totalorder %s91, %s94
      %p103 = scmp.eq.s32.totalorder %s22, 1
      %p104 = por %p102, %p103
      %p105 = scmp.ne.s32.totalorder %s94, %s95
      %p106 = scmp.eq.s32.totalorder %s22, 0
      %p107 = por %p105, %p106
      %p108 = scmp.ne.s32.totalorder %s94, %s95
      %p109 = scmp.eq.s32.totalorder %s23, 1
      %p110 = por %p108, %p109
      %p112 = scmp.ne.s32.totalorder %s95, %s111
      %p113 = scmp.eq.s32.totalorder %s23, 0
      %p114 = por %p112, %p113
      %s115 = ssub.s32 %s25, %s32
      %p116 = scmp.eq.s32.totalorder %s115, 0
      %s118 = sadd.s32 %s117, 1
      %s119 = scalar_select %p116, %s117, %s118
      %p122 = pneg %p116
      %p123 = scmp.eq.s32.totalorder %s17, 1
      %p124 = por %p122, %p123
      %p125 = scmp.ne.s32.totalorder %s117, %s120
      %p126 = scmp.eq.s32.totalorder %s17, 0
      %p127 = por %p125, %p126
      %p128 = scmp.ne.s32.totalorder %s117, %s120
      %p129 = scmp.eq.s32.totalorder %s22, 1
      %p130 = por %p128, %p129
      %p131 = scmp.ne.s32.totalorder %s120, %s121
      %p132 = scmp.eq.s32.totalorder %s22, 0
      %p133 = por %p131, %p132
      %p134 = scmp.ne.s32.totalorder %s120, %s121
      %p135 = scmp.eq.s32.totalorder %s23, 1
      %p136 = por %p134, %p135
      %p138 = scmp.ne.s32.totalorder %s121, %s137
      %p139 = scmp.eq.s32.totalorder %s23, 0
      %p140 = por %p138, %p139
      %s141 = ssub.s32 %s25, %s32
      %p142 = scmp.eq.s32.totalorder %s141, 0
      %s144 = sadd.s32 %s143, 1
      %s145 = scalar_select %p142, %s143, %s144
      %p148 = pneg %p142
      %p149 = scmp.eq.s32.totalorder %s17, 1
      %p150 = por %p148, %p149
      %p151 = scmp.ne.s32.totalorder %s143, %s146
      %p152 = scmp.eq.s32.totalorder %s17, 0
      %p153 = por %p151, %p152
      %p154 = scmp.ne.s32.totalorder %s143, %s146
      %p155 = scmp.eq.s32.totalorder %s22, 1
      %p156 = por %p154, %p155
      %p157 = scmp.ne.s32.totalorder %s146, %s147
      %p158 = scmp.eq.s32.totalorder %s22, 0
      %p159 = por %p157, %p158
      %p160 = scmp.ne.s32.totalorder %s146, %s147
      %p161 = scmp.eq.s32.totalorder %s23, 1
      %p162 = por %p160, %p161
      %p164 = scmp.ne.s32.totalorder %s147, %s163
      %p165 = scmp.eq.s32.totalorder %s23, 0
      %p166 = por %p164, %p165
      %s167 = ssub.s32 %s25, %s32
      %p168 = scmp.eq.s32.totalorder %s167, 0
      %s170 = sadd.s32 %s169, 1
      %s171 = scalar_select %p168, %s169, %s170
      %p174 = pneg %p168
      %p175 = scmp.eq.s32.totalorder %s17, 1
      %p176 = por %p174, %p175
      %p177 = scmp.ne.s32.totalorder %s169, %s172
      %p178 = scmp.eq.s32.totalorder %s17, 0
      %p179 = por %p177, %p178
      %p180 = scmp.ne.s32.totalorder %s169, %s172
      %p181 = scmp.eq.s32.totalorder %s22, 1
      %p182 = por %p180, %p181
      %p183 = scmp.ne.s32.totalorder %s172, %s173
      %p184 = scmp.eq.s32.totalorder %s22, 0
      %p185 = por %p183, %p184
      %p186 = scmp.ne.s32.totalorder %s172, %s173
      %p187 = scmp.eq.s32.totalorder %s23, 1
      %p188 = por %p186, %p187
      %p190 = scmp.ne.s32.totalorder %s173, %s189
      %p191 = scmp.eq.s32.totalorder %s23, 0
      %p192 = por %p190, %p191
      %s193 = ssub.s32 %s25, %s32
      %p194 = scmp.eq.s32.totalorder %s193, 0
      %s196 = sadd.s32 %s195, 1
      %s197 = scalar_select %p194, %s195, %s196
      %p200 = pneg %p194
      %p201 = scmp.eq.s32.totalorder %s17, 1
      %p202 = por %p200, %p201
      %p203 = scmp.ne.s32.totalorder %s195, %s198
      %p204 = scmp.eq.s32.totalorder %s17, 0
      %p205 = por %p203, %p204
      %p206 = scmp.ne.s32.totalorder %s195, %s198
      %p207 = scmp.eq.s32.totalorder %s22, 1
      %p208 = por %p206, %p207
      %p209 = scmp.ne.s32.totalorder %s198, %s199
      %p210 = scmp.eq.s32.totalorder %s22, 0
      %p211 = por %p209, %p210
      %p212 = scmp.ne.s32.totalorder %s198, %s199
      %p213 = scmp.eq.s32.totalorder %s23, 1
      %p214 = por %p212, %p213
      %p216 = scmp.ne.s32.totalorder %s199, %s215
      %p217 = scmp.eq.s32.totalorder %s23, 0
      %p218 = por %p216, %p217
      %s219 = ssub.s32 %s25, %s32
      %p220 = scmp.eq.s32.totalorder %s219, 0
      %s222 = sadd.s32 %s221, 1
      %s223 = scalar_select %p220, %s221, %s222
      %p226 = pneg %p220
      %p227 = scmp.eq.s32.totalorder %s17, 1
      %p228 = por %p226, %p227
      %p229 = scmp.ne.s32.totalorder %s221, %s224
      %p230 = scmp.eq.s32.totalorder %s17, 0
      %p231 = por %p229, %p230
      %p232 = scmp.ne.s32.totalorder %s221, %s224
      %p233 = scmp.eq.s32.totalorder %s22, 1
      %p234 = por %p232, %p233
      %p235 = scmp.ne.s32.totalorder %s224, %s225
      %p236 = scmp.eq.s32.totalorder %s22, 0
      %p237 = por %p235, %p236
      %p238 = scmp.ne.s32.totalorder %s224, %s225
      %p239 = scmp.eq.s32.totalorder %s23, 1
      %p240 = por %p238, %p239
      %p242 = scmp.ne.s32.totalorder %s225, %s241
      %p243 = scmp.eq.s32.totalorder %s23, 0
      %p244 = por %p242, %p243
      %s245 = ssub.s32 %s25, %s32
      %p246 = scmp.eq.s32.totalorder %s245, 0
      %s248 = sadd.s32 %s247, 1
      %s249 = scalar_select %p246, %s247, %s248
      %p252 = pneg %p246
      %p253 = scmp.eq.s32.totalorder %s17, 1
      %p254 = por %p252, %p253
      %p255 = scmp.ne.s32.totalorder %s247, %s250
      %p256 = scmp.eq.s32.totalorder %s17, 0
      %p257 = por %p255, %p256
      %p258 = scmp.ne.s32.totalorder %s247, %s250
      %p259 = scmp.eq.s32.totalorder %s22, 1
      %p260 = por %p258, %p259
      %p261 = scmp.ne.s32.totalorder %s250, %s251
      %p262 = scmp.eq.s32.totalorder %s22, 0
      %p263 = por %p261, %p262
      %p264 = scmp.ne.s32.totalorder %s250, %s251
      %p265 = scmp.eq.s32.totalorder %s23, 1
      %p266 = por %p264, %p265
      %p268 = scmp.ne.s32.totalorder %s251, %s267
      %p269 = scmp.eq.s32.totalorder %s23, 0
      %p270 = por %p268, %p269
      %s271 = ssub.s32 %s25, %s32
      %p272 = scmp.eq.s32.totalorder %s271, 0
      %s274 = sadd.s32 %s273, 1
      %s275 = scalar_select %p272, %s273, %s274
      %p278 = pneg %p272
      %p279 = scmp.eq.s32.totalorder %s17, 1
      %p280 = por %p278, %p279
      %p281 = scmp.ne.s32.totalorder %s273, %s276
      %p282 = scmp.eq.s32.totalorder %s17, 0
      %p283 = por %p281, %p282
      %p284 = scmp.ne.s32.totalorder %s273, %s276
      %p285 = scmp.eq.s32.totalorder %s22, 1
      %p286 = por %p284, %p285
      %p287 = scmp.ne.s32.totalorder %s276, %s277
      %p288 = scmp.eq.s32.totalorder %s22, 0
      %p289 = por %p287, %p288
      %p290 = scmp.ne.s32.totalorder %s276, %s277
      %p291 = scmp.eq.s32.totalorder %s23, 1
      %p292 = por %p290, %p291
      %p294 = scmp.ne.s32.totalorder %s277, %s293
      %p295 = scmp.eq.s32.totalorder %s23, 0
      %p296 = por %p294, %p295
      %s297 = ssub.s32 %s24, %s36
      %p298 = scmp.eq.s32.totalorder %s297, 0
      %s300 = sadd.s32 %s299, 1
      %s301 = scalar_select %p298, %s299, %s300
      %p304 = pneg %p298
      %p305 = scmp.eq.s32.totalorder %s17, 1
      %p306 = por %p304, %p305
      %p307 = scmp.ne.s32.totalorder %s299, %s302
      %p308 = scmp.eq.s32.totalorder %s17, 0
      %p309 = por %p307, %p308
      %p310 = scmp.ne.s32.totalorder %s299, %s302
      %p311 = scmp.eq.s32.totalorder %s22, 1
      %p312 = por %p310, %p311
      %p313 = scmp.ne.s32.totalorder %s302, %s303
      %p314 = scmp.eq.s32.totalorder %s22, 0
      %p315 = por %p313, %p314
      %p316 = scmp.ne.s32.totalorder %s302, %s303
      %p317 = scmp.eq.s32.totalorder %s23, 1
      %p318 = por %p316, %p317
      %p320 = scmp.ne.s32.totalorder %s303, %s319
      %p321 = scmp.eq.s32.totalorder %s23, 0
      %p322 = por %p320, %p321
      %p323 = scmp.le.s32.totalorder 1, %s17
      %p324 = scmp.lt.s32.totalorder %s17, 3
      %p325 = pnand %p323, %p324
      %p326 = pneg %p325
      // Predicated region
      $region9: #{tpu_custom_call.1} parent=5 // pred_check
        _
      $region10: #{tpu_custom_call.1} parent=5 // pred_check_branch
        %328 = sbr.rel (%p325) target = $region12
      $region11: #{tpu_custom_call.1} parent=5 // pred_region
        %s329 = ssub.s32 %s17, 1
        // Predicated region
        $region13: #{tpu_custom_call.1} parent=11 // pred_check
          %p330 = pneg %p55
        $region14: #{tpu_custom_call.1} parent=11 // pred_check_branch
          %332 = sbr.rel (%p330) target = $region16
        $region15: #{tpu_custom_call.1} parent=11 // pred_region
          %s333 = smul.u32 2, %s26
          %p334 = scmp.lt.s32.totalorder %s333, 1
          %s335 = scalar_select %p334, %s333, 1
          %s336 = smul.addr %s335, 8
          %s337 = scalar_lea.vmem %s0, %s336
          %s338 = smul.u32 2, %s26
        $region16: #{tpu_custom_call.1} parent=11 // pred_fallthru
          _
      $region12: #{tpu_custom_call.1} parent=5 // pred_fallthru
        _
      %p339 = scmp.lt.s32.totalorder %s17, 2
      // Predicated region
      $region17: #{tpu_custom_call.1} parent=5 // pred_check
        %p340 = pneg %p339
      $region18: #{tpu_custom_call.1} parent=5 // pred_check_branch
        %342 = sbr.rel (%p340) target = $region20
      $region19: #{tpu_custom_call.1} parent=5 // pred_region
        // Predicated region
        $region21: #{tpu_custom_call.1} parent=19 // pred_check
          %p343 = pneg %p75
        $region22: #{tpu_custom_call.1} parent=19 // pred_check_branch
          %345 = sbr.rel (%p343) target = $region24
        $region23: #{tpu_custom_call.1} parent=19 // pred_region
          %p346 = scmp.lt.s32.totalorder %s25, 1
          %s347 = scalar_select %p346, %s25, 1
          %s348 = smul.addr %s347, 16
          %s349 = smul.addr %s348, 4
          %s350 = scalar_lea.vmem %s1, %s349
        $region24: #{tpu_custom_call.1} parent=19 // pred_fallthru
          _
        // Predicated region
        $region25: #{tpu_custom_call.1} parent=19 // pred_check
          %p351 = pneg %p101
        $region26: #{tpu_custom_call.1} parent=19 // pred_check_branch
          %353 = sbr.rel (%p351) target = $region28
        $region27: #{tpu_custom_call.1} parent=19 // pred_region
          %p354 = scmp.lt.s32.totalorder %s25, 1
          %s355 = scalar_select %p354, %s25, 1
          %s356 = smul.addr %s355, 16
          %s357 = smul.addr %s356, 4
          %s358 = scalar_lea.vmem %s2, %s357
        $region28: #{tpu_custom_call.1} parent=19 // pred_fallthru
          _
        // Predicated region
        $region29: #{tpu_custom_call.1} parent=19 // pred_check
          %p359 = pneg %p127
        $region30: #{tpu_custom_call.1} parent=19 // pred_check_branch
          %361 = sbr.rel (%p359) target = $region32
        $region31: #{tpu_custom_call.1} parent=19 // pred_region
          %p362 = scmp.lt.s32.totalorder %s25, 1
          %s363 = scalar_select %p362, %s25, 1
          %s364 = smul.addr %s363, 16
          %s365 = smul.addr %s364, 4
          %s366 = scalar_lea.vmem %s3, %s365
        $region32: #{tpu_custom_call.1} parent=19 // pred_fallthru
          _
        // Predicated region
        $region33: #{tpu_custom_call.1} parent=19 // pred_check
          %p367 = pneg %p153
        $region34: #{tpu_custom_call.1} parent=19 // pred_check_branch
          %369 = sbr.rel (%p367) target = $region36
        $region35: #{tpu_custom_call.1} parent=19 // pred_region
          %p370 = scmp.lt.s32.totalorder %s25, 1
          %s371 = scalar_select %p370, %s25, 1
          %s372 = smul.addr %s371, 4
          %s373 = smul.addr %s372, 4
          %s374 = scalar_lea.vmem %s4, %s373
        $region36: #{tpu_custom_call.1} parent=19 // pred_fallthru
          _
        // Predicated region
        $region37: #{tpu_custom_call.1} parent=19 // pred_check
          %p375 = pneg %p179
        $region38: #{tpu_custom_call.1} parent=19 // pred_check_branch
          %377 = sbr.rel (%p375) target = $region40
        $region39: #{tpu_custom_call.1} parent=19 // pred_region
          %p378 = scmp.lt.s32.totalorder %s25, 1
          %s379 = scalar_select %p378, %s25, 1
          %s380 = smul.addr %s379, 4
          %s381 = smul.addr %s380, 4
          %s382 = scalar_lea.vmem %s5, %s381
        $region40: #{tpu_custom_call.1} parent=19 // pred_fallthru
          _
        // Predicated region
        $region41: #{tpu_custom_call.1} parent=19 // pred_check
          %p383 = pneg %p205
        $region42: #{tpu_custom_call.1} parent=19 // pred_check_branch
          %385 = sbr.rel (%p383) target = $region44
        $region43: #{tpu_custom_call.1} parent=19 // pred_region
          %p386 = scmp.lt.s32.totalorder %s25, 1
          %s387 = scalar_select %p386, %s25, 1
          %s388 = smul.addr %s387, 8
          %s389 = smul.addr %s388, 4
          %s390 = scalar_lea.vmem %s6, %s389
        $region44: #{tpu_custom_call.1} parent=19 // pred_fallthru
          _
        // Predicated region
        $region45: #{tpu_custom_call.1} parent=19 // pred_check
          %p391 = pneg %p231
        $region46: #{tpu_custom_call.1} parent=19 // pred_check_branch
          %393 = sbr.rel (%p391) target = $region48
        $region47: #{tpu_custom_call.1} parent=19 // pred_region
          %p394 = scmp.lt.s32.totalorder %s25, 1
          %s395 = scalar_select %p394, %s25, 1
          %s396 = smul.addr %s395, 4
          %s397 = smul.addr %s396, 4
          %s398 = scalar_lea.vmem %s7, %s397
        $region48: #{tpu_custom_call.1} parent=19 // pred_fallthru
          _
        // Predicated region
        $region49: #{tpu_custom_call.1} parent=19 // pred_check
          %p399 = pneg %p257
        $region50: #{tpu_custom_call.1} parent=19 // pred_check_branch
          %401 = sbr.rel (%p399) target = $region52
        $region51: #{tpu_custom_call.1} parent=19 // pred_region
          %p402 = scmp.lt.s32.totalorder %s25, 1
          %s403 = scalar_select %p402, %s25, 1
          %s404 = smul.addr %s403, 8
          %s405 = scalar_lea.vmem %s8, %s404
        $region52: #{tpu_custom_call.1} parent=19 // pred_fallthru
          _
        // Predicated region
        $region53: #{tpu_custom_call.1} parent=19 // pred_check
          %p406 = pneg %p283
        $region54: #{tpu_custom_call.1} parent=19 // pred_check_branch
          %408 = sbr.rel (%p406) target = $region56
        $region55: #{tpu_custom_call.1} parent=19 // pred_region
          %p409 = scmp.lt.s32.totalorder %s25, 1
          %s410 = scalar_select %p409, %s25, 1
          %s411 = scalar_lea.vmem %s9, %s410
        $region56: #{tpu_custom_call.1} parent=19 // pred_fallthru
          _
      $region20: #{tpu_custom_call.1} parent=5 // pred_fallthru
        _
      %p412 = scmp.le.s32.totalorder 1, %s17
      %p413 = scmp.lt.s32.totalorder %s17, 3
      %p414 = pnand %p412, %p413
      %p415 = pneg %p414
      // Predicated region
      $region57: #{tpu_custom_call.1} parent=5 // pred_check
        _
      $region58: #{tpu_custom_call.1} parent=5 // pred_check_branch
        %417 = sbr.rel (%p414) target = $region60
      $region59: #{tpu_custom_call.1} parent=5 // pred_region
        %s418 = ssub.s32 %s17, 1
        %s419 = smul.u32 2, %s26
        %p420 = scmp.lt.s32.totalorder %s419, 1
        %s421 = scalar_select %p420, %s419, 1
        %s422 = smul.addr %s421, 8
        %s423 = scalar_lea.vmem %s0, %s422
        %p424 = pneg %p55
        %p425 = pneg %p52
        %p426 = scmp.lt.s32.totalorder %s27, 1
        %s427 = scalar_select %p426, %s27, 1
        %s428 = smul.addr %s427, 16
        %s429 = smul.addr %s428, 4
        %s430 = scalar_lea.vmem %s1, %s429
        %p431 = pneg %p81
        %p432 = pneg %p78
        %p433 = scmp.lt.s32.totalorder %s27, 1
        %s434 = scalar_select %p433, %s27, 1
        %s435 = smul.addr %s434, 16
        %s436 = smul.addr %s435, 4
        %s437 = scalar_lea.vmem %s2, %s436
        %p438 = pneg %p107
        %p439 = pneg %p104
        %p440 = scmp.lt.s32.totalorder %s27, 1
        %s441 = scalar_select %p440, %s27, 1
        %s442 = smul.addr %s441, 16
        %s443 = smul.addr %s442, 4
        %s444 = scalar_lea.vmem %s3, %s443
        %p445 = pneg %p133
        %p446 = pneg %p130
        %p447 = scmp.lt.s32.totalorder %s27, 1
        %s448 = scalar_select %p447, %s27, 1
        %s449 = smul.addr %s448, 4
        %s450 = smul.addr %s449, 4
        %s451 = scalar_lea.vmem %s4, %s450
        %p452 = pneg %p159
        %p453 = pneg %p156
        %p454 = scmp.lt.s32.totalorder %s27, 1
        %s455 = scalar_select %p454, %s27, 1
        %s456 = smul.addr %s455, 4
        %s457 = smul.addr %s456, 4
        %s458 = scalar_lea.vmem %s5, %s457
        %p459 = pneg %p185
        %p460 = pneg %p182
        %p461 = scmp.lt.s32.totalorder %s27, 1
        %s462 = scalar_select %p461, %s27, 1
        %s463 = smul.addr %s462, 8
        %s464 = smul.addr %s463, 4
        %s465 = scalar_lea.vmem %s6, %s464
        %p466 = pneg %p211
        %p467 = pneg %p208
        %p468 = scmp.lt.s32.totalorder %s27, 1
        %s469 = scalar_select %p468, %s27, 1
        %s470 = smul.addr %s469, 4
        %s471 = smul.addr %s470, 4
        %s472 = scalar_lea.vmem %s7, %s471
        %p473 = pneg %p237
        %p474 = pneg %p234
        %p475 = scmp.lt.s32.totalorder %s27, 1
        %s476 = scalar_select %p475, %s27, 1
        %s477 = smul.addr %s476, 8
        %s478 = scalar_lea.vmem %s8, %s477
        %p479 = pneg %p263
        %p480 = pneg %p260
        %p481 = scmp.lt.s32.totalorder %s27, 1
        %s482 = scalar_select %p481, %s27, 1
        %s483 = scalar_lea.vmem %s9, %s482
        %p484 = pneg %p289
        %p485 = pneg %p286
        %p486 = pneg %p315
        %p487 = pneg %p312
        %s488 = smul.u32 2, %s26
        %p489 = scmp.lt.s32.totalorder %s488, 1
        %s490 = scalar_select %p489, %s488, 1
        %s491 = smul.addr %s490, 8
        %s492 = scalar_lea.vmem %s0, %s491
        %s493 = smul.u32 2, %s26
        %p494 = scmp.lt.s32.totalorder %s27, 1
        %s495 = scalar_select %p494, %s27, 1
        %s496 = smul.addr %s495, 16
        %s497 = smul.addr %s496, 4
        %s498 = scalar_lea.vmem %s1, %s497
        %p499 = scmp.lt.s32.totalorder %s27, 1
        %s500 = scalar_select %p499, %s27, 1
        %s501 = smul.addr %s500, 16
        %s502 = smul.addr %s501, 4
        %s503 = scalar_lea.vmem %s2, %s502
        %p504 = scmp.lt.s32.totalorder %s27, 1
        %s505 = scalar_select %p504, %s27, 1
        %s506 = smul.addr %s505, 16
        %s507 = smul.addr %s506, 4
        %s508 = scalar_lea.vmem %s3, %s507
        %p509 = scmp.lt.s32.totalorder %s27, 1
        %s510 = scalar_select %p509, %s27, 1
        %s511 = smul.addr %s510, 4
        %s512 = smul.addr %s511, 4
        %s513 = scalar_lea.vmem %s4, %s512
        %p514 = scmp.lt.s32.totalorder %s27, 1
        %s515 = scalar_select %p514, %s27, 1
        %s516 = smul.addr %s515, 4
        %s517 = smul.addr %s516, 4
        %s518 = scalar_lea.vmem %s5, %s517
        %p519 = scmp.lt.s32.totalorder %s27, 1
        %s520 = scalar_select %p519, %s27, 1
        %s521 = smul.addr %s520, 8
        %s522 = smul.addr %s521, 4
        %s523 = scalar_lea.vmem %s6, %s522
        %p524 = scmp.lt.s32.totalorder %s27, 1
        %s525 = scalar_select %p524, %s27, 1
        %s526 = smul.addr %s525, 4
        %s527 = smul.addr %s526, 4
        %s528 = scalar_lea.vmem %s7, %s527
        %p529 = scmp.lt.s32.totalorder %s27, 1
        %s530 = scalar_select %p529, %s27, 1
        %s531 = smul.addr %s530, 8
        %s532 = scalar_lea.vmem %s8, %s531
        %p533 = scmp.lt.s32.totalorder %s27, 1
        %s534 = scalar_select %p533, %s27, 1
        %s535 = scalar_lea.vmem %s9, %s534
        %s536 = smul.u32 2, %s26
        %p538 = scmp.eq.s32.totalorder %s27, 0
        // Predicated region
        $region61: #{tpu_custom_call.1} parent=59 // pred_check
          %p539 = pneg %p538
        $region62: #{tpu_custom_call.1} parent=59 // pred_check_branch
          %541 = sbr.rel (%p539) target = $region64
        $region63: #{tpu_custom_call.1} parent=59 // pred_region
          %v542 = vld [vmem:[%s492] sm:$0xff]
          %v543 = vld [vmem:[%s492 + $0x8] sm:$0xff]
          %vm544 = vcmask 261120
          %545 = vst.msk [vmem:[#allocation2] sm:$0xff] %vm544, %v542
          %546 = vst.msk [vmem:[#allocation2 + $0x8] sm:$0xff] %vm544, %v543
        $region64: #{tpu_custom_call.1} parent=59 // pred_fallthru
          _
        %v547 = vld [vmem:[#allocation2] sm:$0xff]
        %v548 = vld [vmem:[#allocation2 + $0x8] sm:$0xff]
        %v549 = vpack.c.bf16 %v548, %v547
        %v550 = vld [vmem:[%s532] sm:$0x3f]
        %v551 = vld [vmem:[%s528] sm:$0x7]
        %v552 = vld [vmem:[%s498] sm:$0xf]
        %v553 = vld [vmem:[%s498 + $0x4] sm:$0xf]
        %v554 = vld [vmem:[%s498 + $0x8] sm:$0xf]
        %v555 = vld [vmem:[%s498 + $0xc] sm:$0xf]
        %v556 = vlaneseq
        %v557 = vshrl.u32 %v556, 7
        %v558 = vsub.s32 0, %v557
        %v559 = vrot.slane %v551, %v558
        %v564 = vunpack.c.l.b16 %v552
        %v565 = vunpack.c.l.b16 %v553
        %v566 = vunpack.c.l.b16 %v554
        %v567 = vunpack.c.l.b16 %v555
        %v568 = vpack.c.b16 %v565, %v564
        %v569 = vpack.c.b16 %v567, %v566
        %vm572 = vcmask 261120
        %v574 = vsel %vm572, %v549, 0
        %576 = vmatprep.subr.bf16.mxu0 0
        %577 = vmatpush1.bf16.msra.mxu0 %v568
        %578 = vmatprep.subr.bf16.mxu0 0
        %579 = vmatpush1.bf16.msra.mxu0 %v569
        %580 = vmatprep.subr.bf16.mxu0 0
        %581 = vmatpush1.bf16.msra.mxu0 0
        %582 = vmatprep.subr.bf16.mxu0 0
        %583 = vmatpush1.bf16.msra.mxu0 0
        %584 = vmatprep.subr.bf16.mxu0 0
        %585 = vmatpush1.bf16.msra.mxu0 0
        %586 = vmatprep.subr.bf16.mxu0 0
        %587 = vmatpush1.bf16.msra.mxu0 0
        %588 = vmatprep.subr.bf16.mxu0 0
        %589 = vmatpush1.bf16.msra.mxu0 0
        %590 = vmatprep.subr.bf16.mxu0 0
        %591 = vmatpush1.bf16.msra.mxu0 0
        %592 = vmatprep.subr.bf16.mxu0 0
        %593 = vmatpush1.bf16.msra.mxu0 0
        %594 = vmatprep.subr.bf16.mxu0 0
        %595 = vmatpush1.bf16.msra.mxu0 0
        %596 = vmatprep.subr.bf16.mxu0 0
        %597 = vmatpush1.bf16.msra.mxu0 0
        %598 = vmatprep.subr.bf16.mxu0 0
        %599 = vmatpush1.bf16.msra.mxu0 0
        %600 = vmatprep.subr.bf16.mxu0 0
        %601 = vmatpush1.bf16.msra.mxu0 0
        %602 = vmatprep.subr.bf16.mxu0 0
        %603 = vmatpush1.bf16.msra.mxu0 0
        %604 = vmatprep.subr.bf16.mxu0 0
        %605 = vmatpush1.bf16.msra.mxu0 0
        %606 = vmatprep.subr.bf16.mxu0 0
        %607 = vmatpush1.bf16.msra.mxu0 0
        %608 = vmatprep.mubr.bf16.mxu0 0
        %609 = vmatmul.mubr.bf16.gmra.mrb[0].mxu0 %v574
        %v610 = vpop.f32.mrb[0].mxu0
        %v611 = vadd.f32 %v559, %v610
        %v612 = vpop.f32.mrb[0].mxu0
        %v613 = vpop.f32.mrb[0].mxu0
        %v614 = vadd.f32 %v559, %v613
        %v615 = vpop.f32.mrb[0].mxu0
        %616 = vdwg.mxu0
        %v617 = vld [vmem:[%s503] sm:$0xf]
        %v618 = vld [vmem:[%s503 + $0x4] sm:$0xf]
        %v619 = vld [vmem:[%s503 + $0x8] sm:$0xf]
        %v620 = vld [vmem:[%s503 + $0xc] sm:$0xf]
        %v621 = vlaneseq
        %v622 = vshrl.u32 %v621, 7
        %v623 = vsub.s32 1, %v622
        %v624 = vrot.slane %v551, %v623
        %v629 = vunpack.c.l.b16 %v617
        %v630 = vunpack.c.l.b16 %v618
        %v631 = vunpack.c.l.b16 %v619
        %v632 = vunpack.c.l.b16 %v620
        %v633 = vpack.c.b16 %v630, %v629
        %v634 = vpack.c.b16 %v632, %v631
        %637 = vmatprep.subr.bf16.mxu0 0
        %638 = vmatpush1.bf16.msra.mxu0 %v633
        %639 = vmatprep.subr.bf16.mxu0 0
        %640 = vmatpush1.bf16.msra.mxu0 %v634
        %641 = vmatprep.subr.bf16.mxu0 0
        %642 = vmatpush1.bf16.msra.mxu0 0
        %643 = vmatprep.subr.bf16.mxu0 0
        %644 = vmatpush1.bf16.msra.mxu0 0
        %645 = vmatprep.subr.bf16.mxu0 0
        %646 = vmatpush1.bf16.msra.mxu0 0
        %647 = vmatprep.subr.bf16.mxu0 0
        %648 = vmatpush1.bf16.msra.mxu0 0
        %649 = vmatprep.subr.bf16.mxu0 0
        %650 = vmatpush1.bf16.msra.mxu0 0
        %651 = vmatprep.subr.bf16.mxu0 0
        %652 = vmatpush1.bf16.msra.mxu0 0
        %653 = vmatprep.subr.bf16.mxu0 0
        %654 = vmatpush1.bf16.msra.mxu0 0
        %655 = vmatprep.subr.bf16.mxu0 0
        %656 = vmatpush1.bf16.msra.mxu0 0
        %657 = vmatprep.subr.bf16.mxu0 0
        %658 = vmatpush1.bf16.msra.mxu0 0
        %659 = vmatprep.subr.bf16.mxu0 0
        %660 = vmatpush1.bf16.msra.mxu0 0
        %661 = vmatprep.subr.bf16.mxu0 0
        %662 = vmatpush1.bf16.msra.mxu0 0
        %663 = vmatprep.subr.bf16.mxu0 0
        %664 = vmatpush1.bf16.msra.mxu0 0
        %665 = vmatprep.subr.bf16.mxu0 0
        %666 = vmatpush1.bf16.msra.mxu0 0
        %667 = vmatprep.subr.bf16.mxu0 0
        %668 = vmatpush1.bf16.msra.mxu0 0
        %669 = vmatprep.mubr.bf16.mxu0 0
        %670 = vmatmul.mubr.bf16.gmra.mrb[0].mxu0 %v574
        %v671 = vpop.f32.mrb[0].mxu0
        %v672 = vadd.f32 %v624, %v671
        %v673 = vpop.f32.mrb[0].mxu0
        %v674 = vpop.f32.mrb[0].mxu0
        %v675 = vadd.f32 %v624, %v674
        %v676 = vpop.f32.mrb[0].mxu0
        %677 = vdwg.mxu0
        %v678 = vld [vmem:[%s508] sm:$0xf]
        %v679 = vld [vmem:[%s508 + $0x4] sm:$0xf]
        %v680 = vld [vmem:[%s508 + $0x8] sm:$0xf]
        %v681 = vld [vmem:[%s508 + $0xc] sm:$0xf]
        %v682 = vlaneseq
        %v683 = vshrl.u32 %v682, 7
        %v684 = vsub.s32 2, %v683
        %v685 = vrot.slane %v551, %v684
        %v690 = vunpack.c.l.b16 %v678
        %v691 = vunpack.c.l.b16 %v679
        %v692 = vunpack.c.l.b16 %v680
        %v693 = vunpack.c.l.b16 %v681
        %v694 = vpack.c.b16 %v691, %v690
        %v695 = vpack.c.b16 %v693, %v692
        %698 = vmatprep.subr.bf16.mxu0 0
        %699 = vmatpush1.bf16.msra.mxu0 %v694
        %700 = vmatprep.subr.bf16.mxu0 0
        %701 = vmatpush1.bf16.msra.mxu0 %v695
        %702 = vmatprep.subr.bf16.mxu0 0
        %703 = vmatpush1.bf16.msra.mxu0 0
        %704 = vmatprep.subr.bf16.mxu0 0
        %705 = vmatpush1.bf16.msra.mxu0 0
        %706 = vmatprep.subr.bf16.mxu0 0
        %707 = vmatpush1.bf16.msra.mxu0 0
        %708 = vmatprep.subr.bf16.mxu0 0
        %709 = vmatpush1.bf16.msra.mxu0 0
        %710 = vmatprep.subr.bf16.mxu0 0
        %711 = vmatpush1.bf16.msra.mxu0 0
        %712 = vmatprep.subr.bf16.mxu0 0
        %713 = vmatpush1.bf16.msra.mxu0 0
        %714 = vmatprep.subr.bf16.mxu0 0
        %715 = vmatpush1.bf16.msra.mxu0 0
        %716 = vmatprep.subr.bf16.mxu0 0
        %717 = vmatpush1.bf16.msra.mxu0 0
        %718 = vmatprep.subr.bf16.mxu0 0
        %719 = vmatpush1.bf16.msra.mxu0 0
        %720 = vmatprep.subr.bf16.mxu0 0
        %721 = vmatpush1.bf16.msra.mxu0 0
        %722 = vmatprep.subr.bf16.mxu0 0
        %723 = vmatpush1.bf16.msra.mxu0 0
        %724 = vmatprep.subr.bf16.mxu0 0
        %725 = vmatpush1.bf16.msra.mxu0 0
        %726 = vmatprep.subr.bf16.mxu0 0
        %727 = vmatpush1.bf16.msra.mxu0 0
        %728 = vmatprep.subr.bf16.mxu0 0
        %729 = vmatpush1.bf16.msra.mxu0 0
        %730 = vmatprep.mubr.bf16.mxu0 0
        %731 = vmatmul.mubr.bf16.gmra.mrb[0].mxu0 %v574
        %v732 = vpop.f32.mrb[0].mxu0
        %v733 = vadd.f32 %v685, %v732
        %v734 = vpop.f32.mrb[0].mxu0
        %v735 = vpop.f32.mrb[0].mxu0
        %v736 = vadd.f32 %v685, %v735
        %v737 = vpop.f32.mrb[0].mxu0
        %738 = vdwg.mxu0
        %v739 = vpack.c.bf16 %v611, %v611
        %v740 = vpack.c.bf16 %v614, %v614
        %v741 = vpack.c.bf16 %v672, %v672
        %v742 = vpack.c.bf16 %v675, %v675
        %v743 = vpack.c.bf16 %v733, %v733
        %v744 = vpack.c.bf16 %v736, %v736
        %vm745 = vcmask 64512
        %v747 = vsel %vm745, %v739, 0
        %v750 = vsel %vm745, %v741, 0
        %752 = vmatprep.subr.bf16.mxu0 0
        %753 = vmatpush1.bf16.xpose.msra.mxu0 %v750
        %754 = vmatprep.subr.bf16.mxu0 0
        %755 = vmatpush1.bf16.xpose.msra.mxu0 0
        %756 = vmatprep.subr.bf16.mxu0 0
        %757 = vmatpush1.bf16.xpose.msra.mxu0 0
        %758 = vmatprep.subr.bf16.mxu0 0
        %759 = vmatpush1.bf16.xpose.msra.mxu0 0
        %760 = vmatprep.subr.bf16.mxu0 0
        %761 = vmatpush1.bf16.xpose.msra.mxu0 0
        %762 = vmatprep.subr.bf16.mxu0 0
        %763 = vmatpush1.bf16.xpose.msra.mxu0 0
        %764 = vmatprep.subr.bf16.mxu0 0
        %765 = vmatpush1.bf16.xpose.msra.mxu0 0
        %766 = vmatprep.subr.bf16.mxu0 0
        %767 = vmatpush1.bf16.xpose.msra.mxu0 0
        %768 = vmatprep.subr.bf16.mxu0 0
        %769 = vmatpush1.bf16.xpose.msra.mxu0 0
        %770 = vmatprep.subr.bf16.mxu0 0
        %771 = vmatpush1.bf16.xpose.msra.mxu0 0
        %772 = vmatprep.subr.bf16.mxu0 0
        %773 = vmatpush1.bf16.xpose.msra.mxu0 0
        %774 = vmatprep.subr.bf16.mxu0 0
        %775 = vmatpush1.bf16.xpose.msra.mxu0 0
        %776 = vmatprep.subr.bf16.mxu0 0
        %777 = vmatpush1.bf16.xpose.msra.mxu0 0
        %778 = vmatprep.subr.bf16.mxu0 0
        %779 = vmatpush1.bf16.xpose.msra.mxu0 0
        %780 = vmatprep.subr.bf16.mxu0 0
        %781 = vmatpush1.bf16.xpose.msra.mxu0 0
        %782 = vmatprep.subr.bf16.mxu0 0
        %783 = vmatpush1.bf16.xpose.msra.mxu0 0
        %784 = vmatprep.mubr.bf16.mxu0 0
        %785 = vmatmul.mubr.bf16.gmra.mrb[0].mxu0 %v747
        %v786 = vpop.f32.mrb[0].mxu0
        %v787 = vadd.f32 0.0, %v786
        %v788 = vpop.f32.mrb[0].mxu0
        %v789 = vpop.f32.mrb[0].mxu0
        %v790 = vpop.f32.mrb[0].mxu0
        %791 = vdwg.mxu0
        %v793 = vsel %vm745, %v740, 0
        %v796 = vsel %vm745, %v742, 0
        %798 = vmatprep.subr.bf16.mxu0 0
        %799 = vmatpush1.bf16.xpose.msra.mxu0 %v796
        %800 = vmatprep.subr.bf16.mxu0 0
        %801 = vmatpush1.bf16.xpose.msra.mxu0 0
        %802 = vmatprep.subr.bf16.mxu0 0
        %803 = vmatpush1.bf16.xpose.msra.mxu0 0
        %804 = vmatprep.subr.bf16.mxu0 0
        %805 = vmatpush1.bf16.xpose.msra.mxu0 0
        %806 = vmatprep.subr.bf16.mxu0 0
        %807 = vmatpush1.bf16.xpose.msra.mxu0 0
        %808 = vmatprep.subr.bf16.mxu0 0
        %809 = vmatpush1.bf16.xpose.msra.mxu0 0
        %810 = vmatprep.subr.bf16.mxu0 0
        %811 = vmatpush1.bf16.xpose.msra.mxu0 0
        %812 = vmatprep.subr.bf16.mxu0 0
        %813 = vmatpush1.bf16.xpose.msra.mxu0 0
        %814 = vmatprep.subr.bf16.mxu0 0
        %815 = vmatpush1.bf16.xpose.msra.mxu0 0
        %816 = vmatprep.subr.bf16.mxu0 0
        %817 = vmatpush1.bf16.xpose.msra.mxu0 0
        %818 = vmatprep.subr.bf16.mxu0 0
        %819 = vmatpush1.bf16.xpose.msra.mxu0 0
        %820 = vmatprep.subr.bf16.mxu0 0
        %821 = vmatpush1.bf16.xpose.msra.mxu0 0
        %822 = vmatprep.subr.bf16.mxu0 0
        %823 = vmatpush1.bf16.xpose.msra.mxu0 0
        %824 = vmatprep.subr.bf16.mxu0 0
        %825 = vmatpush1.bf16.xpose.msra.mxu0 0
        %826 = vmatprep.subr.bf16.mxu0 0
        %827 = vmatpush1.bf16.xpose.msra.mxu0 0
        %828 = vmatprep.subr.bf16.mxu0 0
        %829 = vmatpush1.bf16.xpose.msra.mxu0 0
        %830 = vmatprep.mubr.bf16.mxu0 0
        %831 = vmatmul.mubr.bf16.gmra.mrb[0].mxu0 %v793
        %v832 = vpop.f32.mrb[0].mxu0
        %v833 = vadd.f32 0.0, %v832
        %v834 = vpop.f32.mrb[0].mxu0
        %v835 = vpop.f32.mrb[0].mxu0
        %v836 = vpop.f32.mrb[0].mxu0
        %837 = vdwg.mxu0
        %v838 = vmul.f32 %v787, 0.35355338
        %v839 = vmul.f32 %v833, 0.35355338
        %v840 = vsel %vm745, %v838, -inf
        %841 = vmax.xlane.f32.xlu0 %v840
        %v842 = vpop.xlane.xlu0 %841
        %v843 = vsel %vm745, %v839, -inf
        %844 = vmax.xlane.f32.xlu0 %v843
        %v845 = vpop.xlane.xlu0 %844
        %v846 = vsub.f32 %v838, %v842
        %v847 = vsub.f32 %v839, %v845
        %v848 = vmul.f32 %v846, 1.442695
        %v849 = vpow.pop %v848
        %v850 = vmul.f32 %v847, 1.442695
        %v851 = vpow.pop %v850
        %v852 = vsel %vm745, %v849, 0.0
        %853 = vadd.xlane.f32.xlu0 %v852
        %v854 = vpop.xlane.xlu0 %853
        %v855 = vsel %vm745, %v851, 0.0
        %856 = vadd.xlane.f32.xlu0 %v855
        %v857 = vpop.xlane.xlu0 %856
        %v858 = vrcp.pop %v854
        %v859 = vrcp.pop %v857
        %v860 = vmul.f32 %v849, %v858
        %v861 = vmul.f32 %v851, %v859
        %v862 = vpack.c.bf16 %v860, %v860
        %v863 = vpack.c.bf16 %v861, %v861
        %v865 = vsel %vm745, %v862, 0
        %vm867 = vcmask 1043456
        %v869 = vsel %vm867, %v743, 0
        %871 = vmatprep.subr.bf16.mxu0 0
        %872 = vmatpush1.bf16.msra.mxu0 %v869
        %873 = vmatprep.subr.bf16.mxu0 0
        %874 = vmatpush1.bf16.msra.mxu0 0
        %875 = vmatprep.subr.bf16.mxu0 0
        %876 = vmatpush1.bf16.msra.mxu0 0
        %877 = vmatprep.subr.bf16.mxu0 0
        %878 = vmatpush1.bf16.msra.mxu0 0
        %879 = vmatprep.subr.bf16.mxu0 0
        %880 = vmatpush1.bf16.msra.mxu0 0
        %881 = vmatprep.subr.bf16.mxu0 0
        %882 = vmatpush1.bf16.msra.mxu0 0
        %883 = vmatprep.subr.bf16.mxu0 0
        %884 = vmatpush1.bf16.msra.mxu0 0
        %885 = vmatprep.subr.bf16.mxu0 0
        %886 = vmatpush1.bf16.msra.mxu0 0
        %887 = vmatprep.subr.bf16.mxu0 0
        %888 = vmatpush1.bf16.msra.mxu0 0
        %889 = vmatprep.subr.bf16.mxu0 0
        %890 = vmatpush1.bf16.msra.mxu0 0
        %891 = vmatprep.subr.bf16.mxu0 0
        %892 = vmatpush1.bf16.msra.mxu0 0
        %893 = vmatprep.subr.bf16.mxu0 0
        %894 = vmatpush1.bf16.msra.mxu0 0
        %895 = vmatprep.subr.bf16.mxu0 0
        %896 = vmatpush1.bf16.msra.mxu0 0
        %897 = vmatprep.subr.bf16.mxu0 0
        %898 = vmatpush1.bf16.msra.mxu0 0
        %899 = vmatprep.subr.bf16.mxu0 0
        %900 = vmatpush1.bf16.msra.mxu0 0
        %901 = vmatprep.subr.bf16.mxu0 0
        %902 = vmatpush1.bf16.msra.mxu0 0
        %903 = vmatprep.mubr.bf16.mxu0 0
        %904 = vmatmul.mubr.bf16.gmra.mrb[0].mxu0 %v865
        %v905 = vpop.f32.mrb[0].mxu0
        %v906 = vadd.f32 0.0, %v905
        %v907 = vpop.f32.mrb[0].mxu0
        %v908 = vpop.f32.mrb[0].mxu0
        %v909 = vpop.f32.mrb[0].mxu0
        %910 = vdwg.mxu0
        %v912 = vsel %vm745, %v863, 0
        %v915 = vsel %vm867, %v744, 0
        %917 = vmatprep.subr.bf16.mxu0 0
        %918 = vmatpush1.bf16.msra.mxu0 %v915
        %919 = vmatprep.subr.bf16.mxu0 0
        %920 = vmatpush1.bf16.msra.mxu0 0
        %921 = vmatprep.subr.bf16.mxu0 0
        %922 = vmatpush1.bf16.msra.mxu0 0
        %923 = vmatprep.subr.bf16.mxu0 0
        %924 = vmatpush1.bf16.msra.mxu0 0
        %925 = vmatprep.subr.bf16.mxu0 0
        %926 = vmatpush1.bf16.msra.mxu0 0
        %927 = vmatprep.subr.bf16.mxu0 0
        %928 = vmatpush1.bf16.msra.mxu0 0
        %929 = vmatprep.subr.bf16.mxu0 0
        %930 = vmatpush1.bf16.msra.mxu0 0
        %931 = vmatprep.subr.bf16.mxu0 0
        %932 = vmatpush1.bf16.msra.mxu0 0
        %933 = vmatprep.subr.bf16.mxu0 0
        %934 = vmatpush1.bf16.msra.mxu0 0
        %935 = vmatprep.subr.bf16.mxu0 0
        %936 = vmatpush1.bf16.msra.mxu0 0
        %937 = vmatprep.subr.bf16.mxu0 0
        %938 = vmatpush1.bf16.msra.mxu0 0
        %939 = vmatprep.subr.bf16.mxu0 0
        %940 = vmatpush1.bf16.msra.mxu0 0
        %941 = vmatprep.subr.bf16.mxu0 0
        %942 = vmatpush1.bf16.msra.mxu0 0
        %943 = vmatprep.subr.bf16.mxu0 0
        %944 = vmatpush1.bf16.msra.mxu0 0
        %945 = vmatprep.subr.bf16.mxu0 0
        %946 = vmatpush1.bf16.msra.mxu0 0
        %947 = vmatprep.subr.bf16.mxu0 0
        %948 = vmatpush1.bf16.msra.mxu0 0
        %949 = vmatprep.mubr.bf16.mxu0 0
        %950 = vmatmul.mubr.bf16.gmra.mrb[0].mxu0 %v912
        %v951 = vpop.f32.mrb[0].mxu0
        %v952 = vadd.f32 0.0, %v951
        %v953 = vpop.f32.mrb[0].mxu0
        %v954 = vpop.f32.mrb[0].mxu0
        %v955 = vpop.f32.mrb[0].mxu0
        %956 = vdwg.mxu0
        %v957 = vpack.c.bf16 %v952, %v906
        %v958 = vld [vmem:[%s513] sm:$0xf]
        %s959 = scalar_lea.vmem %s528, 4
        %v960 = vld [vmem:[%s959] sm:$0x7]
        %s961 = scalar_lea.vmem %s498, 16
        %v962 = vld [vmem:[%s961] sm:$0xf]
        %v963 = vld [vmem:[%s961 + $0x4] sm:$0xf]
        %v964 = vld [vmem:[%s961 + $0x8] sm:$0xf]
        %v965 = vld [vmem:[%s961 + $0xc] sm:$0xf]
        %v966 = vlaneseq
        %v967 = vshrl.u32 %v966, 7
        %v968 = vsub.s32 0, %v967
        %v969 = vrot.slane %v960, %v968
        %v974 = vunpack.c.l.b16 %v962
        %v975 = vunpack.c.l.b16 %v963
        %v976 = vunpack.c.l.b16 %v964
        %v977 = vunpack.c.l.b16 %v965
        %v978 = vpack.c.b16 %v975, %v974
        %v979 = vpack.c.b16 %v977, %v976
        %982 = vmatprep.subr.bf16.mxu0 0
        %983 = vmatpush1.bf16.msra.mxu0 %v978
        %984 = vmatprep.subr.bf16.mxu0 0
        %985 = vmatpush1.bf16.msra.mxu0 %v979
        %986 = vmatprep.subr.bf16.mxu0 0
        %987 = vmatpush1.bf16.msra.mxu0 0
        %988 = vmatprep.subr.bf16.mxu0 0
        %989 = vmatpush1.bf16.msra.mxu0 0
        %990 = vmatprep.subr.bf16.mxu0 0
        %991 = vmatpush1.bf16.msra.mxu0 0
        %992 = vmatprep.subr.bf16.mxu0 0
        %993 = vmatpush1.bf16.msra.mxu0 0
        %994 = vmatprep.subr.bf16.mxu0 0
        %995 = vmatpush1.bf16.msra.mxu0 0
        %996 = vmatprep.subr.bf16.mxu0 0
        %997 = vmatpush1.bf16.msra.mxu0 0
        %998 = vmatprep.subr.bf16.mxu0 0
        %999 = vmatpush1.bf16.msra.mxu0 0
        %1000 = vmatprep.subr.bf16.mxu0 0
        %1001 = vmatpush1.bf16.msra.mxu0 0
        %1002 = vmatprep.subr.bf16.mxu0 0
        %1003 = vmatpush1.bf16.msra.mxu0 0
        %1004 = vmatprep.subr.bf16.mxu0 0
        %1005 = vmatpush1.bf16.msra.mxu0 0
        %1006 = vmatprep.subr.bf16.mxu0 0
        %1007 = vmatpush1.bf16.msra.mxu0 0
        %1008 = vmatprep.subr.bf16.mxu0 0
        %1009 = vmatpush1.bf16.msra.mxu0 0
        %1010 = vmatprep.subr.bf16.mxu0 0
        %1011 = vmatpush1.bf16.msra.mxu0 0
        %1012 = vmatprep.subr.bf16.mxu0 0
        %1013 = vmatpush1.bf16.msra.mxu0 0
        %1014 = vmatprep.mubr.bf16.mxu0 0
        %1015 = vmatmul.mubr.bf16.gmra.mrb[0].mxu0 %v574
        %v1016 = vpop.f32.mrb[0].mxu0
        %v1017 = vadd.f32 %v969, %v1016
        %v1018 = vpop.f32.mrb[0].mxu0
        %v1019 = vpop.f32.mrb[0].mxu0
        %v1020 = vadd.f32 %v969, %v1019
        %v1021 = vpop.f32.mrb[0].mxu0
        %1022 = vdwg.mxu0
        %s1023 = scalar_lea.vmem %s503, 16
        %v1024 = vld [vmem:[%s1023] sm:$0xf]
        %v1025 = vld [vmem:[%s1023 + $0x4] sm:$0xf]
        %v1026 = vld [vmem:[%s1023 + $0x8] sm:$0xf]
        %v1027 = vld [vmem:[%s1023 + $0xc] sm:$0xf]
        %v1028 = vlaneseq
        %v1029 = vshrl.u32 %v1028, 7
        %v1030 = vsub.s32 1, %v1029
        %v1031 = vrot.slane %v960, %v1030
        %v1036 = vunpack.c.l.b16 %v1024
        %v1037 = vunpack.c.l.b16 %v1025
        %v1038 = vunpack.c.l.b16 %v1026
        %v1039 = vunpack.c.l.b16 %v1027
        %v1040 = vpack.c.b16 %v1037, %v1036
        %v1041 = vpack.c.b16 %v1039, %v1038
        %1044 = vmatprep.subr.bf16.mxu0 0
        %1045 = vmatpush1.bf16.msra.mxu0 %v1040
        %1046 = vmatprep.subr.bf16.mxu0 0
        %1047 = vmatpush1.bf16.msra.mxu0 %v1041
        %1048 = vmatprep.subr.bf16.mxu0 0
        %1049 = vmatpush1.bf16.msra.mxu0 0
        %1050 = vmatprep.subr.bf16.mxu0 0
        %1051 = vmatpush1.bf16.msra.mxu0 0
        %1052 = vmatprep.subr.bf16.mxu0 0
        %1053 = vmatpush1.bf16.msra.mxu0 0
        %1054 = vmatprep.subr.bf16.mxu0 0
        %1055 = vmatpush1.bf16.msra.mxu0 0
        %1056 = vmatprep.subr.bf16.mxu0 0
        %1057 = vmatpush1.bf16.msra.mxu0 0
        %1058 = vmatprep.subr.bf16.mxu0 0
        %1059 = vmatpush1.bf16.msra.mxu0 0
        %1060 = vmatprep.subr.bf16.mxu0 0
        %1061 = vmatpush1.bf16.msra.mxu0 0
        %1062 = vmatprep.subr.bf16.mxu0 0
        %1063 = vmatpush1.bf16.msra.mxu0 0
        %1064 = vmatprep.subr.bf16.mxu0 0
        %1065 = vmatpush1.bf16.msra.mxu0 0
        %1066 = vmatprep.subr.bf16.mxu0 0
        %1067 = vmatpush1.bf16.msra.mxu0 0
        %1068 = vmatprep.subr.bf16.mxu0 0
        %1069 = vmatpush1.bf16.msra.mxu0 0
        %1070 = vmatprep.subr.bf16.mxu0 0
        %1071 = vmatpush1.bf16.msra.mxu0 0
        %1072 = vmatprep.subr.bf16.mxu0 0
        %1073 = vmatpush1.bf16.msra.mxu0 0
        %1074 = vmatprep.subr.bf16.mxu0 0
        %1075 = vmatpush1.bf16.msra.mxu0 0
        %1076 = vmatprep.mubr.bf16.mxu0 0
        %1077 = vmatmul.mubr.bf16.gmra.mrb[0].mxu0 %v574
        %v1078 = vpop.f32.mrb[0].mxu0
        %v1079 = vadd.f32 %v1031, %v1078
        %v1080 = vpop.f32.mrb[0].mxu0
        %v1081 = vpop.f32.mrb[0].mxu0
        %v1082 = vadd.f32 %v1031, %v1081
        %v1083 = vpop.f32.mrb[0].mxu0
        %1084 = vdwg.mxu0
        %s1085 = scalar_lea.vmem %s508, 16
        %v1086 = vld [vmem:[%s1085] sm:$0xf]
        %v1087 = vld [vmem:[%s1085 + $0x4] sm:$0xf]
        %v1088 = vld [vmem:[%s1085 + $0x8] sm:$0xf]
        %v1089 = vld [vmem:[%s1085 + $0xc] sm:$0xf]
        %v1090 = vlaneseq
        %v1091 = vshrl.u32 %v1090, 7
        %v1092 = vsub.s32 2, %v1091
        %v1093 = vrot.slane %v960, %v1092
        %v1098 = vunpack.c.l.b16 %v1086
        %v1099 = vunpack.c.l.b16 %v1087
        %v1100 = vunpack.c.l.b16 %v1088
        %v1101 = vunpack.c.l.b16 %v1089
        %v1102 = vpack.c.b16 %v1099, %v1098
        %v1103 = vpack.c.b16 %v1101, %v1100
        %1106 = vmatprep.subr.bf16.mxu0 0
        %1107 = vmatpush1.bf16.msra.mxu0 %v1102
        %1108 = vmatprep.subr.bf16.mxu0 0
        %1109 = vmatpush1.bf16.msra.mxu0 %v1103
        %1110 = vmatprep.subr.bf16.mxu0 0
        %1111 = vmatpush1.bf16.msra.mxu0 0
        %1112 = vmatprep.subr.bf16.mxu0 0
        %1113 = vmatpush1.bf16.msra.mxu0 0
        %1114 = vmatprep.subr.bf16.mxu0 0
        %1115 = vmatpush1.bf16.msra.mxu0 0
        %1116 = vmatprep.subr.bf16.mxu0 0
        %1117 = vmatpush1.bf16.msra.mxu0 0
        %1118 = vmatprep.subr.bf16.mxu0 0
        %1119 = vmatpush1.bf16.msra.mxu0 0
        %1120 = vmatprep.subr.bf16.mxu0 0
        %1121 = vmatpush1.bf16.msra.mxu0 0
        %1122 = vmatprep.subr.bf16.mxu0 0
        %1123 = vmatpush1.bf16.msra.mxu0 0
        %1124 = vmatprep.subr.bf16.mxu0 0
        %1125 = vmatpush1.bf16.msra.mxu0 0
        %1126 = vmatprep.subr.bf16.mxu0 0
        %1127 = vmatpush1.bf16.msra.mxu0 0
        %1128 = vmatprep.subr.bf16.mxu0 0
        %1129 = vmatpush1.bf16.msra.mxu0 0
        %1130 = vmatprep.subr.bf16.mxu0 0
        %1131 = vmatpush1.bf16.msra.mxu0 0
        %1132 = vmatprep.subr.bf16.mxu0 0
        %1133 = vmatpush1.bf16.msra.mxu0 0
        %1134 = vmatprep.subr.bf16.mxu0 0
        %1135 = vmatpush1.bf16.msra.mxu0 0
        %1136 = vmatprep.subr.bf16.mxu0 0
        %1137 = vmatpush1.bf16.msra.mxu0 0
        %1138 = vmatprep.mubr.bf16.mxu0 0
        %1139 = vmatmul.mubr.bf16.gmra.mrb[0].mxu0 %v574
        %v1140 = vpop.f32.mrb[0].mxu0
        %v1141 = vadd.f32 %v1093, %v1140
        %v1142 = vpop.f32.mrb[0].mxu0
        %v1143 = vpop.f32.mrb[0].mxu0
        %v1144 = vadd.f32 %v1093, %v1143
        %v1145 = vpop.f32.mrb[0].mxu0
        %1146 = vdwg.mxu0
        %v1147 = vpack.c.bf16 %v1017, %v1017
        %v1148 = vpack.c.bf16 %v1020, %v1020
        %v1149 = vpack.c.bf16 %v1079, %v1079
        %v1150 = vpack.c.bf16 %v1082, %v1082
        %v1151 = vpack.c.bf16 %v1141, %v1141
        %v1152 = vpack.c.bf16 %v1144, %v1144
        %v1154 = vsel %vm745, %v1147, 0
        %v1157 = vsel %vm745, %v1149, 0
        %1159 = vmatprep.subr.bf16.mxu0 0
        %1160 = vmatpush1.bf16.xpose.msra.mxu0 %v1157
        %1161 = vmatprep.subr.bf16.mxu0 0
        %1162 = vmatpush1.bf16.xpose.msra.mxu0 0
        %1163 = vmatprep.subr.bf16.mxu0 0
        %1164 = vmatpush1.bf16.xpose.msra.mxu0 0
        %1165 = vmatprep.subr.bf16.mxu0 0
        %1166 = vmatpush1.bf16.xpose.msra.mxu0 0
        %1167 = vmatprep.subr.bf16.mxu0 0
        %1168 = vmatpush1.bf16.xpose.msra.mxu0 0
        %1169 = vmatprep.subr.bf16.mxu0 0
        %1170 = vmatpush1.bf16.xpose.msra.mxu0 0
        %1171 = vmatprep.subr.bf16.mxu0 0
        %1172 = vmatpush1.bf16.xpose.msra.mxu0 0
        %1173 = vmatprep.subr.bf16.mxu0 0
        %1174 = vmatpush1.bf16.xpose.msra.mxu0 0
        %1175 = vmatprep.subr.bf16.mxu0 0
        %1176 = vmatpush1.bf16.xpose.msra.mxu0 0
        %1177 = vmatprep.subr.bf16.mxu0 0
        %1178 = vmatpush1.bf16.xpose.msra.mxu0 0
        %1179 = vmatprep.subr.bf16.mxu0 0
        %1180 = vmatpush1.bf16.xpose.msra.mxu0 0
        %1181 = vmatprep.subr.bf16.mxu0 0
        %1182 = vmatpush1.bf16.xpose.msra.mxu0 0
        %1183 = vmatprep.subr.bf16.mxu0 0
        %1184 = vmatpush1.bf16.xpose.msra.mxu0 0
        %1185 = vmatprep.subr.bf16.mxu0 0
        %1186 = vmatpush1.bf16.xpose.msra.mxu0 0
        %1187 = vmatprep.subr.bf16.mxu0 0
        %1188 = vmatpush1.bf16.xpose.msra.mxu0 0
        %1189 = vmatprep.subr.bf16.mxu0 0
        %1190 = vmatpush1.bf16.xpose.msra.mxu0 0
        %1191 = vmatprep.mubr.bf16.mxu0 0
        %1192 = vmatmul.mubr.bf16.gmra.mrb[0].mxu0 %v1154
        %v1193 = vpop.f32.mrb[0].mxu0
        %v1194 = vadd.f32 0.0, %v1193
        %v1195 = vpop.f32.mrb[0].mxu0
        %v1196 = vpop.f32.mrb[0].mxu0
        %v1197 = vpop.f32.mrb[0].mxu0
        %1198 = vdwg.mxu0
        %v1200 = vsel %vm745, %v1148, 0
        %v1203 = vsel %vm745, %v1150, 0
        %1205 = vmatprep.subr.bf16.mxu0 0
        %1206 = vmatpush1.bf16.xpose.msra.mxu0 %v1203
        %1207 = vmatprep.subr.bf16.mxu0 0
        %1208 = vmatpush1.bf16.xpose.msra.mxu0 0
        %1209 = vmatprep.subr.bf16.mxu0 0
        %1210 = vmatpush1.bf16.xpose.msra.mxu0 0
        %1211 = vmatprep.subr.bf16.mxu0 0
        %1212 = vmatpush1.bf16.xpose.msra.mxu0 0
        %1213 = vmatprep.subr.bf16.mxu0 0
        %1214 = vmatpush1.bf16.xpose.msra.mxu0 0
        %1215 = vmatprep.subr.bf16.mxu0 0
        %1216 = vmatpush1.bf16.xpose.msra.mxu0 0
        %1217 = vmatprep.subr.bf16.mxu0 0
        %1218 = vmatpush1.bf16.xpose.msra.mxu0 0
        %1219 = vmatprep.subr.bf16.mxu0 0
        %1220 = vmatpush1.bf16.xpose.msra.mxu0 0
        %1221 = vmatprep.subr.bf16.mxu0 0
        %1222 = vmatpush1.bf16.xpose.msra.mxu0 0
        %1223 = vmatprep.subr.bf16.mxu0 0
        %1224 = vmatpush1.bf16.xpose.msra.mxu0 0
        %1225 = vmatprep.subr.bf16.mxu0 0
        %1226 = vmatpush1.bf16.xpose.msra.mxu0 0
        %1227 = vmatprep.subr.bf16.mxu0 0
        %1228 = vmatpush1.bf16.xpose.msra.mxu0 0
        %1229 = vmatprep.subr.bf16.mxu0 0
        %1230 = vmatpush1.bf16.xpose.msra.mxu0 0
        %1231 = vmatprep.subr.bf16.mxu0 0
        %1232 = vmatpush1.bf16.xpose.msra.mxu0 0
        %1233 = vmatprep.subr.bf16.mxu0 0
        %1234 = vmatpush1.bf16.xpose.msra.mxu0 0
        %1235 = vmatprep.subr.bf16.mxu0 0
        %1236 = vmatpush1.bf16.xpose.msra.mxu0 0
        %1237 = vmatprep.mubr.bf16.mxu0 0
        %1238 = vmatmul.mubr.bf16.gmra.mrb[0].mxu0 %v1200
        %v1239 = vpop.f32.mrb[0].mxu0
        %v1240 = vadd.f32 0.0, %v1239
        %v1241 = vpop.f32.mrb[0].mxu0
        %v1242 = vpop.f32.mrb[0].mxu0
        %v1243 = vpop.f32.mrb[0].mxu0
        %1244 = vdwg.mxu0
        %v1245 = vmul.f32 %v1194, 0.35355338
        %v1246 = vmul.f32 %v1240, 0.35355338
        %v1247 = vsel %vm745, %v1245, -inf
        %1248 = vmax.xlane.f32.xlu0 %v1247
        %v1249 = vpop.xlane.xlu0 %1248
        %v1250 = vsel %vm745, %v1246, -inf
        %1251 = vmax.xlane.f32.xlu0 %v1250
        %v1252 = vpop.xlane.xlu0 %1251
        %v1253 = vsub.f32 %v1245, %v1249
        %v1254 = vsub.f32 %v1246, %v1252
        %v1255 = vmul.f32 %v1253, 1.442695
        %v1256 = vpow.pop %v1255
        %v1257 = vmul.f32 %v1254, 1.442695
        %v1258 = vpow.pop %v1257
        %v1259 = vsel %vm745, %v1256, 0.0
        %1260 = vadd.xlane.f32.xlu0 %v1259
        %v1261 = vpop.xlane.xlu0 %1260
        %v1262 = vsel %vm745, %v1258, 0.0
        %1263 = vadd.xlane.f32.xlu0 %v1262
        %v1264 = vpop.xlane.xlu0 %1263
        %v1265 = vrcp.pop %v1261
        %v1266 = vrcp.pop %v1264
        %v1267 = vmul.f32 %v1256, %v1265
        %v1268 = vmul.f32 %v1258, %v1266
        %v1269 = vpack.c.bf16 %v1267, %v1267
        %v1270 = vpack.c.bf16 %v1268, %v1268
        %v1272 = vsel %vm745, %v1269, 0
        %v1275 = vsel %vm867, %v1151, 0
        %1277 = vmatprep.subr.bf16.mxu0 0
        %1278 = vmatpush1.bf16.msra.mxu0 %v1275
        %1279 = vmatprep.subr.bf16.mxu0 0
        %1280 = vmatpush1.bf16.msra.mxu0 0
        %1281 = vmatprep.subr.bf16.mxu0 0
        %1282 = vmatpush1.bf16.msra.mxu0 0
        %1283 = vmatprep.subr.bf16.mxu0 0
        %1284 = vmatpush1.bf16.msra.mxu0 0
        %1285 = vmatprep.subr.bf16.mxu0 0
        %1286 = vmatpush1.bf16.msra.mxu0 0
        %1287 = vmatprep.subr.bf16.mxu0 0
        %1288 = vmatpush1.bf16.msra.mxu0 0
        %1289 = vmatprep.subr.bf16.mxu0 0
        %1290 = vmatpush1.bf16.msra.mxu0 0
        %1291 = vmatprep.subr.bf16.mxu0 0
        %1292 = vmatpush1.bf16.msra.mxu0 0
        %1293 = vmatprep.subr.bf16.mxu0 0
        %1294 = vmatpush1.bf16.msra.mxu0 0
        %1295 = vmatprep.subr.bf16.mxu0 0
        %1296 = vmatpush1.bf16.msra.mxu0 0
        %1297 = vmatprep.subr.bf16.mxu0 0
        %1298 = vmatpush1.bf16.msra.mxu0 0
        %1299 = vmatprep.subr.bf16.mxu0 0
        %1300 = vmatpush1.bf16.msra.mxu0 0
        %1301 = vmatprep.subr.bf16.mxu0 0
        %1302 = vmatpush1.bf16.msra.mxu0 0
        %1303 = vmatprep.subr.bf16.mxu0 0
        %1304 = vmatpush1.bf16.msra.mxu0 0
        %1305 = vmatprep.subr.bf16.mxu0 0
        %1306 = vmatpush1.bf16.msra.mxu0 0
        %1307 = vmatprep.subr.bf16.mxu0 0
        %1308 = vmatpush1.bf16.msra.mxu0 0
        %1309 = vmatprep.mubr.bf16.mxu0 0
        %1310 = vmatmul.mubr.bf16.gmra.mrb[0].mxu0 %v1272
        %v1311 = vpop.f32.mrb[0].mxu0
        %v1312 = vadd.f32 0.0, %v1311
        %v1313 = vpop.f32.mrb[0].mxu0
        %v1314 = vpop.f32.mrb[0].mxu0
        %v1315 = vpop.f32.mrb[0].mxu0
        %1316 = vdwg.mxu0
        %v1318 = vsel %vm745, %v1270, 0
        %v1321 = vsel %vm867, %v1152, 0
        %1323 = vmatprep.subr.bf16.mxu0 0
        %1324 = vmatpush1.bf16.msra.mxu0 %v1321
        %1325 = vmatprep.subr.bf16.mxu0 0
        %1326 = vmatpush1.bf16.msra.mxu0 0
        %1327 = vmatprep.subr.bf16.mxu0 0
        %1328 = vmatpush1.bf16.msra.mxu0 0
        %1329 = vmatprep.subr.bf16.mxu0 0
        %1330 = vmatpush1.bf16.msra.mxu0 0
        %1331 = vmatprep.subr.bf16.mxu0 0
        %1332 = vmatpush1.bf16.msra.mxu0 0
        %1333 = vmatprep.subr.bf16.mxu0 0
        %1334 = vmatpush1.bf16.msra.mxu0 0
        %1335 = vmatprep.subr.bf16.mxu0 0
        %1336 = vmatpush1.bf16.msra.mxu0 0
        %1337 = vmatprep.subr.bf16.mxu0 0
        %1338 = vmatpush1.bf16.msra.mxu0 0
        %1339 = vmatprep.subr.bf16.mxu0 0
        %1340 = vmatpush1.bf16.msra.mxu0 0
        %1341 = vmatprep.subr.bf16.mxu0 0
        %1342 = vmatpush1.bf16.msra.mxu0 0
        %1343 = vmatprep.subr.bf16.mxu0 0
        %1344 = vmatpush1.bf16.msra.mxu0 0
        %1345 = vmatprep.subr.bf16.mxu0 0
        %1346 = vmatpush1.bf16.msra.mxu0 0
        %1347 = vmatprep.subr.bf16.mxu0 0
        %1348 = vmatpush1.bf16.msra.mxu0 0
        %1349 = vmatprep.subr.bf16.mxu0 0
        %1350 = vmatpush1.bf16.msra.mxu0 0
        %1351 = vmatprep.subr.bf16.mxu0 0
        %1352 = vmatpush1.bf16.msra.mxu0 0
        %1353 = vmatprep.subr.bf16.mxu0 0
        %1354 = vmatpush1.bf16.msra.mxu0 0
        %1355 = vmatprep.mubr.bf16.mxu0 0
        %1356 = vmatmul.mubr.bf16.gmra.mrb[0].mxu0 %v1318
        %v1357 = vpop.f32.mrb[0].mxu0
        %v1358 = vadd.f32 0.0, %v1357
        %v1359 = vpop.f32.mrb[0].mxu0
        %v1360 = vpop.f32.mrb[0].mxu0
        %v1361 = vpop.f32.mrb[0].mxu0
        %1362 = vdwg.mxu0
        %v1363 = vpack.c.bf16 %v1358, %v1312
        %s1364 = scalar_lea.vmem %s513, 4
        %v1365 = vld [vmem:[%s1364] sm:$0xf]
        %v1367 = vsel %vm745, %v1363, 0
        %v1370 = vsel %vm867, %v1365, 0
        %1372 = vmatprep.subr.bf16.mxu0 0
        %1373 = vmatpush1.bf16.msra.mxu0 %v1370
        %1374 = vmatprep.subr.bf16.mxu0 0
        %1375 = vmatpush1.bf16.msra.mxu0 0
        %1376 = vmatprep.subr.bf16.mxu0 0
        %1377 = vmatpush1.bf16.msra.mxu0 0
        %1378 = vmatprep.subr.bf16.mxu0 0
        %1379 = vmatpush1.bf16.msra.mxu0 0
        %1380 = vmatprep.subr.bf16.mxu0 0
        %1381 = vmatpush1.bf16.msra.mxu0 0
        %1382 = vmatprep.subr.bf16.mxu0 0
        %1383 = vmatpush1.bf16.msra.mxu0 0
        %1384 = vmatprep.subr.bf16.mxu0 0
        %1385 = vmatpush1.bf16.msra.mxu0 0
        %1386 = vmatprep.subr.bf16.mxu0 0
        %1387 = vmatpush1.bf16.msra.mxu0 0
        %1388 = vmatprep.subr.bf16.mxu0 0
        %1389 = vmatpush1.bf16.msra.mxu0 0
        %1390 = vmatprep.subr.bf16.mxu0 0
        %1391 = vmatpush1.bf16.msra.mxu0 0
        %1392 = vmatprep.subr.bf16.mxu0 0
        %1393 = vmatpush1.bf16.msra.mxu0 0
        %1394 = vmatprep.subr.bf16.mxu0 0
        %1395 = vmatpush1.bf16.msra.mxu0 0
        %1396 = vmatprep.subr.bf16.mxu0 0
        %1397 = vmatpush1.bf16.msra.mxu0 0
        %1398 = vmatprep.subr.bf16.mxu0 0
        %1399 = vmatpush1.bf16.msra.mxu0 0
        %1400 = vmatprep.subr.bf16.mxu0 0
        %1401 = vmatpush1.bf16.msra.mxu0 0
        %1402 = vmatprep.subr.bf16.mxu0 0
        %1403 = vmatpush1.bf16.msra.mxu0 0
        %1404 = vmatprep.mubr.bf16.mxu0 0
        %1405 = vmatmul.mubr.bf16.gmra.mrb[0].mxu0 %v1367
        %v1406 = vpop.f32.mrb[0].mxu0
        %v1407 = vadd.f32 0.0, %v1406
        %v1408 = vpop.f32.mrb[0].mxu0
        %v1409 = vpop.f32.mrb[0].mxu0
        %v1410 = vadd.f32 0.0, %v1409
        %v1411 = vpop.f32.mrb[0].mxu0
        %1412 = vdwg.mxu0
        %v1414 = vsel %vm745, %v957, 0
        %v1417 = vsel %vm867, %v958, 0
        %1419 = vmatprep.subr.bf16.mxu0 0
        %1420 = vmatpush1.bf16.msra.mxu0 %v1417
        %1421 = vmatprep.subr.bf16.mxu0 0
        %1422 = vmatpush1.bf16.msra.mxu0 0
        %1423 = vmatprep.subr.bf16.mxu0 0
        %1424 = vmatpush1.bf16.msra.mxu0 0
        %1425 = vmatprep.subr.bf16.mxu0 0
        %1426 = vmatpush1.bf16.msra.mxu0 0
        %1427 = vmatprep.subr.bf16.mxu0 0
        %1428 = vmatpush1.bf16.msra.mxu0 0
        %1429 = vmatprep.subr.bf16.mxu0 0
        %1430 = vmatpush1.bf16.msra.mxu0 0
        %1431 = vmatprep.subr.bf16.mxu0 0
        %1432 = vmatpush1.bf16.msra.mxu0 0
        %1433 = vmatprep.subr.bf16.mxu0 0
        %1434 = vmatpush1.bf16.msra.mxu0 0
        %1435 = vmatprep.subr.bf16.mxu0 0
        %1436 = vmatpush1.bf16.msra.mxu0 0
        %1437 = vmatprep.subr.bf16.mxu0 0
        %1438 = vmatpush1.bf16.msra.mxu0 0
        %1439 = vmatprep.subr.bf16.mxu0 0
        %1440 = vmatpush1.bf16.msra.mxu0 0
        %1441 = vmatprep.subr.bf16.mxu0 0
        %1442 = vmatpush1.bf16.msra.mxu0 0
        %1443 = vmatprep.subr.bf16.mxu0 0
        %1444 = vmatpush1.bf16.msra.mxu0 0
        %1445 = vmatprep.subr.bf16.mxu0 0
        %1446 = vmatpush1.bf16.msra.mxu0 0
        %1447 = vmatprep.subr.bf16.mxu0 0
        %1448 = vmatpush1.bf16.msra.mxu0 0
        %1449 = vmatprep.subr.bf16.mxu0 0
        %1450 = vmatpush1.bf16.msra.mxu0 0
        %1451 = vmatprep.mubr.bf16.mxu0 0
        %1452 = vmatmul.mubr.bf16.gmra.mrb[0].mxu0 %v1414
        %v1453 = vpop.f32.mrb[0].mxu0
        %v1454 = vadd.f32 %v1407, %v1453
        %v1455 = vpop.f32.mrb[0].mxu0
        %v1456 = vpop.f32.mrb[0].mxu0
        %v1457 = vadd.f32 %v1410, %v1456
        %v1458 = vpop.f32.mrb[0].mxu0
        %1459 = vdwg.mxu0
        %s1460 = scalar_lea.vmem %s528, 8
        %v1461 = vld [vmem:[%s1460] sm:$0x7]
        %s1462 = scalar_lea.vmem %s498, 32
        %v1463 = vld [vmem:[%s1462] sm:$0xf]
        %v1464 = vld [vmem:[%s1462 + $0x4] sm:$0xf]
        %v1465 = vld [vmem:[%s1462 + $0x8] sm:$0xf]
        %v1466 = vld [vmem:[%s1462 + $0xc] sm:$0xf]
        %v1467 = vlaneseq
        %v1468 = vshrl.u32 %v1467, 7
        %v1469 = vsub.s32 0, %v1468
        %v1470 = vrot.slane %v1461, %v1469
        %v1475 = vunpack.c.l.b16 %v1463
        %v1476 = vunpack.c.l.b16 %v1464
        %v1477 = vunpack.c.l.b16 %v1465
        %v1478 = vunpack.c.l.b16 %v1466
        %v1479 = vpack.c.b16 %v1476, %v1475
        %v1480 = vpack.c.b16 %v1478, %v1477
        %1483 = vmatprep.subr.bf16.mxu0 0
        %1484 = vmatpush1.bf16.msra.mxu0 %v1479
        %1485 = vmatprep.subr.bf16.mxu0 0
        %1486 = vmatpush1.bf16.msra.mxu0 %v1480
        %1487 = vmatprep.subr.bf16.mxu0 0
        %1488 = vmatpush1.bf16.msra.mxu0 0
        %1489 = vmatprep.subr.bf16.mxu0 0
        %1490 = vmatpush1.bf16.msra.mxu0 0
        %1491 = vmatprep.subr.bf16.mxu0 0
        %1492 = vmatpush1.bf16.msra.mxu0 0
        %1493 = vmatprep.subr.bf16.mxu0 0
        %1494 = vmatpush1.bf16.msra.mxu0 0
        %1495 = vmatprep.subr.bf16.mxu0 0
        %1496 = vmatpush1.bf16.msra.mxu0 0
        %1497 = vmatprep.subr.bf16.mxu0 0
        %1498 = vmatpush1.bf16.msra.mxu0 0
        %1499 = vmatprep.subr.bf16.mxu0 0
        %1500 = vmatpush1.bf16.msra.mxu0 0
        %1501 = vmatprep.subr.bf16.mxu0 0
        %1502 = vmatpush1.bf16.msra.mxu0 0
        %1503 = vmatprep.subr.bf16.mxu0 0
        %1504 = vmatpush1.bf16.msra.mxu0 0
        %1505 = vmatprep.subr.bf16.mxu0 0
        %1506 = vmatpush1.bf16.msra.mxu0 0
        %1507 = vmatprep.subr.bf16.mxu0 0
        %1508 = vmatpush1.bf16.msra.mxu0 0
        %1509 = vmatprep.subr.bf16.mxu0 0
        %1510 = vmatpush1.bf16.msra.mxu0 0
        %1511 = vmatprep.subr.bf16.mxu0 0
        %1512 = vmatpush1.bf16.msra.mxu0 0
        %1513 = vmatprep.subr.bf16.mxu0 0
        %1514 = vmatpush1.bf16.msra.mxu0 0
        %1515 = vmatprep.mubr.bf16.mxu0 0
        %1516 = vmatmul.mubr.bf16.gmra.mrb[0].mxu0 %v574
        %v1517 = vpop.f32.mrb[0].mxu0
        %v1518 = vadd.f32 %v1470, %v1517
        %v1519 = vpop.f32.mrb[0].mxu0
        %v1520 = vpop.f32.mrb[0].mxu0
        %v1521 = vadd.f32 %v1470, %v1520
        %v1522 = vpop.f32.mrb[0].mxu0
        %1523 = vdwg.mxu0
        %s1524 = scalar_lea.vmem %s503, 32
        %v1525 = vld [vmem:[%s1524] sm:$0xf]
        %v1526 = vld [vmem:[%s1524 + $0x4] sm:$0xf]
        %v1527 = vld [vmem:[%s1524 + $0x8] sm:$0xf]
        %v1528 = vld [vmem:[%s1524 + $0xc] sm:$0xf]
        %v1529 = vlaneseq
        %v1530 = vshrl.u32 %v1529, 7
        %v1531 = vsub.s32 1, %v1530
        %v1532 = vrot.slane %v1461, %v1531
        %v1537 = vunpack.c.l.b16 %v1525
        %v1538 = vunpack.c.l.b16 %v1526
        %v1539 = vunpack.c.l.b16 %v1527
        %v1540 = vunpack.c.l.b16 %v1528
        %v1541 = vpack.c.b16 %v1538, %v1537
        %v1542 = vpack.c.b16 %v1540, %v1539
        %1545 = vmatprep.subr.bf16.mxu0 0
        %1546 = vmatpush1.bf16.msra.mxu0 %v1541
        %1547 = vmatprep.subr.bf16.mxu0 0
        %1548 = vmatpush1.bf16.msra.mxu0 %v1542
        %1549 = vmatprep.subr.bf16.mxu0 0
        %1550 = vmatpush1.bf16.msra.mxu0 0
        %1551 = vmatprep.subr.bf16.mxu0 0
        %1552 = vmatpush1.bf16.msra.mxu0 0
        %1553 = vmatprep.subr.bf16.mxu0 0
        %1554 = vmatpush1.bf16.msra.mxu0 0
        %1555 = vmatprep.subr.bf16.mxu0 0
        %1556 = vmatpush1.bf16.msra.mxu0 0
        %1557 = vmatprep.subr.bf16.mxu0 0
        %1558 = vmatpush1.bf16.msra.mxu0 0
        %1559 = vmatprep.subr.bf16.mxu0 0
        %1560 = vmatpush1.bf16.msra.mxu0 0
        %1561 = vmatprep.subr.bf16.mxu0 0
        %1562 = vmatpush1.bf16.msra.mxu0 0
        %1563 = vmatprep.subr.bf16.mxu0 0
        %1564 = vmatpush1.bf16.msra.mxu0 0
        %1565 = vmatprep.subr.bf16.mxu0 0
        %1566 = vmatpush1.bf16.msra.mxu0 0
        %1567 = vmatprep.subr.bf16.mxu0 0
        %1568 = vmatpush1.bf16.msra.mxu0 0
        %1569 = vmatprep.subr.bf16.mxu0 0
        %1570 = vmatpush1.bf16.msra.mxu0 0
        %1571 = vmatprep.subr.bf16.mxu0 0
        %1572 = vmatpush1.bf16.msra.mxu0 0
        %1573 = vmatprep.subr.bf16.mxu0 0
        %1574 = vmatpush1.bf16.msra.mxu0 0
        %1575 = vmatprep.subr.bf16.mxu0 0
        %1576 = vmatpush1.bf16.msra.mxu0 0
        %1577 = vmatprep.mubr.bf16.mxu0 0
        %1578 = vmatmul.mubr.bf16.gmra.mrb[0].mxu0 %v574
        %v1579 = vpop.f32.mrb[0].mxu0
        %v1580 = vadd.f32 %v1532, %v1579
        %v1581 = vpop.f32.mrb[0].mxu0
        %v1582 = vpop.f32.mrb[0].mxu0
        %v1583 = vadd.f32 %v1532, %v1582
        %v1584 = vpop.f32.mrb[0].mxu0
        %1585 = vdwg.mxu0
        %s1586 = scalar_lea.vmem %s508, 32
        %v1587 = vld [vmem:[%s1586] sm:$0xf]
        %v1588 = vld [vmem:[%s1586 + $0x4] sm:$0xf]
        %v1589 = vld [vmem:[%s1586 + $0x8] sm:$0xf]
        %v1590 = vld [vmem:[%s1586 + $0xc] sm:$0xf]
        %v1591 = vlaneseq
        %v1592 = vshrl.u32 %v1591, 7
        %v1593 = vsub.s32 2, %v1592
        %v1594 = vrot.slane %v1461, %v1593
        %v1599 = vunpack.c.l.b16 %v1587
        %v1600 = vunpack.c.l.b16 %v1588
        %v1601 = vunpack.c.l.b16 %v1589
        %v1602 = vunpack.c.l.b16 %v1590
        %v1603 = vpack.c.b16 %v1600, %v1599
        %v1604 = vpack.c.b16 %v1602, %v1601
        %1607 = vmatprep.subr.bf16.mxu0 0
        %1608 = vmatpush1.bf16.msra.mxu0 %v1603
        %1609 = vmatprep.subr.bf16.mxu0 0
        %1610 = vmatpush1.bf16.msra.mxu0 %v1604
        %1611 = vmatprep.subr.bf16.mxu0 0
        %1612 = vmatpush1.bf16.msra.mxu0 0
        %1613 = vmatprep.subr.bf16.mxu0 0
        %1614 = vmatpush1.bf16.msra.mxu0 0
        %1615 = vmatprep.subr.bf16.mxu0 0
        %1616 = vmatpush1.bf16.msra.mxu0 0
        %1617 = vmatprep.subr.bf16.mxu0 0
        %1618 = vmatpush1.bf16.msra.mxu0 0
        %1619 = vmatprep.subr.bf16.mxu0 0
        %1620 = vmatpush1.bf16.msra.mxu0 0
        %1621 = vmatprep.subr.bf16.mxu0 0
        %1622 = vmatpush1.bf16.msra.mxu0 0
        %1623 = vmatprep.subr.bf16.mxu0 0
        %1624 = vmatpush1.bf16.msra.mxu0 0
        %1625 = vmatprep.subr.bf16.mxu0 0
        %1626 = vmatpush1.bf16.msra.mxu0 0
        %1627 = vmatprep.subr.bf16.mxu0 0
        %1628 = vmatpush1.bf16.msra.mxu0 0
        %1629 = vmatprep.subr.bf16.mxu0 0
        %1630 = vmatpush1.bf16.msra.mxu0 0
        %1631 = vmatprep.subr.bf16.mxu0 0
        %1632 = vmatpush1.bf16.msra.mxu0 0
        %1633 = vmatprep.subr.bf16.mxu0 0
        %1634 = vmatpush1.bf16.msra.mxu0 0
        %1635 = vmatprep.subr.bf16.mxu0 0
        %1636 = vmatpush1.bf16.msra.mxu0 0
        %1637 = vmatprep.subr.bf16.mxu0 0
        %1638 = vmatpush1.bf16.msra.mxu0 0
        %1639 = vmatprep.mubr.bf16.mxu0 0
        %1640 = vmatmul.mubr.bf16.gmra.mrb[0].mxu0 %v574
        %v1641 = vpop.f32.mrb[0].mxu0
        %v1642 = vadd.f32 %v1594, %v1641
        %v1643 = vpop.f32.mrb[0].mxu0
        %v1644 = vpop.f32.mrb[0].mxu0
        %v1645 = vadd.f32 %v1594, %v1644
        %v1646 = vpop.f32.mrb[0].mxu0
        %1647 = vdwg.mxu0
        %v1648 = vpack.c.bf16 %v1518, %v1518
        %v1649 = vpack.c.bf16 %v1521, %v1521
        %v1650 = vpack.c.bf16 %v1580, %v1580
        %v1651 = vpack.c.bf16 %v1583, %v1583
        %v1652 = vpack.c.bf16 %v1642, %v1642
        %v1653 = vpack.c.bf16 %v1645, %v1645
        %v1655 = vsel %vm745, %v1648, 0
        %v1658 = vsel %vm745, %v1650, 0
        %1660 = vmatprep.subr.bf16.mxu0 0
        %1661 = vmatpush1.bf16.xpose.msra.mxu0 %v1658
        %1662 = vmatprep.subr.bf16.mxu0 0
        %1663 = vmatpush1.bf16.xpose.msra.mxu0 0
        %1664 = vmatprep.subr.bf16.mxu0 0
        %1665 = vmatpush1.bf16.xpose.msra.mxu0 0
        %1666 = vmatprep.subr.bf16.mxu0 0
        %1667 = vmatpush1.bf16.xpose.msra.mxu0 0
        %1668 = vmatprep.subr.bf16.mxu0 0
        %1669 = vmatpush1.bf16.xpose.msra.mxu0 0
        %1670 = vmatprep.subr.bf16.mxu0 0
        %1671 = vmatpush1.bf16.xpose.msra.mxu0 0
        %1672 = vmatprep.subr.bf16.mxu0 0
        %1673 = vmatpush1.bf16.xpose.msra.mxu0 0
        %1674 = vmatprep.subr.bf16.mxu0 0
        %1675 = vmatpush1.bf16.xpose.msra.mxu0 0
        %1676 = vmatprep.subr.bf16.mxu0 0
        %1677 = vmatpush1.bf16.xpose.msra.mxu0 0
        %1678 = vmatprep.subr.bf16.mxu0 0
        %1679 = vmatpush1.bf16.xpose.msra.mxu0 0
        %1680 = vmatprep.subr.bf16.mxu0 0
        %1681 = vmatpush1.bf16.xpose.msra.mxu0 0
        %1682 = vmatprep.subr.bf16.mxu0 0
        %1683 = vmatpush1.bf16.xpose.msra.mxu0 0
        %1684 = vmatprep.subr.bf16.mxu0 0
        %1685 = vmatpush1.bf16.xpose.msra.mxu0 0
        %1686 = vmatprep.subr.bf16.mxu0 0
        %1687 = vmatpush1.bf16.xpose.msra.mxu0 0
        %1688 = vmatprep.subr.bf16.mxu0 0
        %1689 = vmatpush1.bf16.xpose.msra.mxu0 0
        %1690 = vmatprep.subr.bf16.mxu0 0
        %1691 = vmatpush1.bf16.xpose.msra.mxu0 0
        %1692 = vmatprep.mubr.bf16.mxu0 0
        %1693 = vmatmul.mubr.bf16.gmra.mrb[0].mxu0 %v1655
        %v1694 = vpop.f32.mrb[0].mxu0
        %v1695 = vadd.f32 0.0, %v1694
        %v1696 = vpop.f32.mrb[0].mxu0
        %v1697 = vpop.f32.mrb[0].mxu0
        %v1698 = vpop.f32.mrb[0].mxu0
        %1699 = vdwg.mxu0
        %v1701 = vsel %vm745, %v1649, 0
        %v1704 = vsel %vm745, %v1651, 0
        %1706 = vmatprep.subr.bf16.mxu0 0
        %1707 = vmatpush1.bf16.xpose.msra.mxu0 %v1704
        %1708 = vmatprep.subr.bf16.mxu0 0
        %1709 = vmatpush1.bf16.xpose.msra.mxu0 0
        %1710 = vmatprep.subr.bf16.mxu0 0
        %1711 = vmatpush1.bf16.xpose.msra.mxu0 0
        %1712 = vmatprep.subr.bf16.mxu0 0
        %1713 = vmatpush1.bf16.xpose.msra.mxu0 0
        %1714 = vmatprep.subr.bf16.mxu0 0
        %1715 = vmatpush1.bf16.xpose.msra.mxu0 0
        %1716 = vmatprep.subr.bf16.mxu0 0
        %1717 = vmatpush1.bf16.xpose.msra.mxu0 0
        %1718 = vmatprep.subr.bf16.mxu0 0
        %1719 = vmatpush1.bf16.xpose.msra.mxu0 0
        %1720 = vmatprep.subr.bf16.mxu0 0
        %1721 = vmatpush1.bf16.xpose.msra.mxu0 0
        %1722 = vmatprep.subr.bf16.mxu0 0
        %1723 = vmatpush1.bf16.xpose.msra.mxu0 0
        %1724 = vmatprep.subr.bf16.mxu0 0
        %1725 = vmatpush1.bf16.xpose.msra.mxu0 0
        %1726 = vmatprep.subr.bf16.mxu0 0
        %1727 = vmatpush1.bf16.xpose.msra.mxu0 0
        %1728 = vmatprep.subr.bf16.mxu0 0
        %1729 = vmatpush1.bf16.xpose.msra.mxu0 0
        %1730 = vmatprep.subr.bf16.mxu0 0
        %1731 = vmatpush1.bf16.xpose.msra.mxu0 0
        %1732 = vmatprep.subr.bf16.mxu0 0
        %1733 = vmatpush1.bf16.xpose.msra.mxu0 0
        %1734 = vmatprep.subr.bf16.mxu0 0
        %1735 = vmatpush1.bf16.xpose.msra.mxu0 0
        %1736 = vmatprep.subr.bf16.mxu0 0
        %1737 = vmatpush1.bf16.xpose.msra.mxu0 0
        %1738 = vmatprep.mubr.bf16.mxu0 0
        %1739 = vmatmul.mubr.bf16.gmra.mrb[0].mxu0 %v1701
        %v1740 = vpop.f32.mrb[0].mxu0
        %v1741 = vadd.f32 0.0, %v1740
        %v1742 = vpop.f32.mrb[0].mxu0
        %v1743 = vpop.f32.mrb[0].mxu0
        %v1744 = vpop.f32.mrb[0].mxu0
        %1745 = vdwg.mxu0
        %v1746 = vmul.f32 %v1695, 0.35355338
        %v1747 = vmul.f32 %v1741, 0.35355338
        %v1748 = vsel %vm745, %v1746, -inf
        %1749 = vmax.xlane.f32.xlu0 %v1748
        %v1750 = vpop.xlane.xlu0 %1749
        %v1751 = vsel %vm745, %v1747, -inf
        %1752 = vmax.xlane.f32.xlu0 %v1751
        %v1753 = vpop.xlane.xlu0 %1752
        %v1754 = vsub.f32 %v1746, %v1750
        %v1755 = vsub.f32 %v1747, %v1753
        %v1756 = vmul.f32 %v1754, 1.442695
        %v1757 = vpow.pop %v1756
        %v1758 = vmul.f32 %v1755, 1.442695
        %v1759 = vpow.pop %v1758
        %v1760 = vsel %vm745, %v1757, 0.0
        %1761 = vadd.xlane.f32.xlu0 %v1760
        %v1762 = vpop.xlane.xlu0 %1761
        %v1763 = vsel %vm745, %v1759, 0.0
        %1764 = vadd.xlane.f32.xlu0 %v1763
        %v1765 = vpop.xlane.xlu0 %1764
        %v1766 = vrcp.pop %v1762
        %v1767 = vrcp.pop %v1765
        %v1768 = vmul.f32 %v1757, %v1766
        %v1769 = vmul.f32 %v1759, %v1767
        %v1770 = vpack.c.bf16 %v1768, %v1768
        %v1771 = vpack.c.bf16 %v1769, %v1769
        %v1773 = vsel %vm745, %v1770, 0
        %v1776 = vsel %vm867, %v1652, 0
        %1778 = vmatprep.subr.bf16.mxu0 0
        %1779 = vmatpush1.bf16.msra.mxu0 %v1776
        %1780 = vmatprep.subr.bf16.mxu0 0
        %1781 = vmatpush1.bf16.msra.mxu0 0
        %1782 = vmatprep.subr.bf16.mxu0 0
        %1783 = vmatpush1.bf16.msra.mxu0 0
        %1784 = vmatprep.subr.bf16.mxu0 0
        %1785 = vmatpush1.bf16.msra.mxu0 0
        %1786 = vmatprep.subr.bf16.mxu0 0
        %1787 = vmatpush1.bf16.msra.mxu0 0
        %1788 = vmatprep.subr.bf16.mxu0 0
        %1789 = vmatpush1.bf16.msra.mxu0 0
        %1790 = vmatprep.subr.bf16.mxu0 0
        %1791 = vmatpush1.bf16.msra.mxu0 0
        %1792 = vmatprep.subr.bf16.mxu0 0
        %1793 = vmatpush1.bf16.msra.mxu0 0
        %1794 = vmatprep.subr.bf16.mxu0 0
        %1795 = vmatpush1.bf16.msra.mxu0 0
        %1796 = vmatprep.subr.bf16.mxu0 0
        %1797 = vmatpush1.bf16.msra.mxu0 0
        %1798 = vmatprep.subr.bf16.mxu0 0
        %1799 = vmatpush1.bf16.msra.mxu0 0
        %1800 = vmatprep.subr.bf16.mxu0 0
        %1801 = vmatpush1.bf16.msra.mxu0 0
        %1802 = vmatprep.subr.bf16.mxu0 0
        %1803 = vmatpush1.bf16.msra.mxu0 0
        %1804 = vmatprep.subr.bf16.mxu0 0
        %1805 = vmatpush1.bf16.msra.mxu0 0
        %1806 = vmatprep.subr.bf16.mxu0 0
        %1807 = vmatpush1.bf16.msra.mxu0 0
        %1808 = vmatprep.subr.bf16.mxu0 0
        %1809 = vmatpush1.bf16.msra.mxu0 0
        %1810 = vmatprep.mubr.bf16.mxu0 0
        %1811 = vmatmul.mubr.bf16.gmra.mrb[0].mxu0 %v1773
        %v1812 = vpop.f32.mrb[0].mxu0
        %v1813 = vadd.f32 0.0, %v1812
        %v1814 = vpop.f32.mrb[0].mxu0
        %v1815 = vpop.f32.mrb[0].mxu0
        %v1816 = vpop.f32.mrb[0].mxu0
        %1817 = vdwg.mxu0
        %v1819 = vsel %vm745, %v1771, 0
        %v1822 = vsel %vm867, %v1653, 0
        %1824 = vmatprep.subr.bf16.mxu0 0
        %1825 = vmatpush1.bf16.msra.mxu0 %v1822
        %1826 = vmatprep.subr.bf16.mxu0 0
        %1827 = vmatpush1.bf16.msra.mxu0 0
        %1828 = vmatprep.subr.bf16.mxu0 0
        %1829 = vmatpush1.bf16.msra.mxu0 0
        %1830 = vmatprep.subr.bf16.mxu0 0
        %1831 = vmatpush1.bf16.msra.mxu0 0
        %1832 = vmatprep.subr.bf16.mxu0 0
        %1833 = vmatpush1.bf16.msra.mxu0 0
        %1834 = vmatprep.subr.bf16.mxu0 0
        %1835 = vmatpush1.bf16.msra.mxu0 0
        %1836 = vmatprep.subr.bf16.mxu0 0
        %1837 = vmatpush1.bf16.msra.mxu0 0
        %1838 = vmatprep.subr.bf16.mxu0 0
        %1839 = vmatpush1.bf16.msra.mxu0 0
        %1840 = vmatprep.subr.bf16.mxu0 0
        %1841 = vmatpush1.bf16.msra.mxu0 0
        %1842 = vmatprep.subr.bf16.mxu0 0
        %1843 = vmatpush1.bf16.msra.mxu0 0
        %1844 = vmatprep.subr.bf16.mxu0 0
        %1845 = vmatpush1.bf16.msra.mxu0 0
        %1846 = vmatprep.subr.bf16.mxu0 0
        %1847 = vmatpush1.bf16.msra.mxu0 0
        %1848 = vmatprep.subr.bf16.mxu0 0
        %1849 = vmatpush1.bf16.msra.mxu0 0
        %1850 = vmatprep.subr.bf16.mxu0 0
        %1851 = vmatpush1.bf16.msra.mxu0 0
        %1852 = vmatprep.subr.bf16.mxu0 0
        %1853 = vmatpush1.bf16.msra.mxu0 0
        %1854 = vmatprep.subr.bf16.mxu0 0
        %1855 = vmatpush1.bf16.msra.mxu0 0
        %1856 = vmatprep.mubr.bf16.mxu0 0
        %1857 = vmatmul.mubr.bf16.gmra.mrb[0].mxu0 %v1819
        %v1858 = vpop.f32.mrb[0].mxu0
        %v1859 = vadd.f32 0.0, %v1858
        %v1860 = vpop.f32.mrb[0].mxu0
        %v1861 = vpop.f32.mrb[0].mxu0
        %v1862 = vpop.f32.mrb[0].mxu0
        %1863 = vdwg.mxu0
        %v1864 = vpack.c.bf16 %v1859, %v1813
        %s1865 = scalar_lea.vmem %s513, 8
        %v1866 = vld [vmem:[%s1865] sm:$0xf]
        %v1868 = vsel %vm745, %v1864, 0
        %v1871 = vsel %vm867, %v1866, 0
        %1873 = vmatprep.subr.bf16.mxu0 0
        %1874 = vmatpush1.bf16.msra.mxu0 %v1871
        %1875 = vmatprep.subr.bf16.mxu0 0
        %1876 = vmatpush1.bf16.msra.mxu0 0
        %1877 = vmatprep.subr.bf16.mxu0 0
        %1878 = vmatpush1.bf16.msra.mxu0 0
        %1879 = vmatprep.subr.bf16.mxu0 0
        %1880 = vmatpush1.bf16.msra.mxu0 0
        %1881 = vmatprep.subr.bf16.mxu0 0
        %1882 = vmatpush1.bf16.msra.mxu0 0
        %1883 = vmatprep.subr.bf16.mxu0 0
        %1884 = vmatpush1.bf16.msra.mxu0 0
        %1885 = vmatprep.subr.bf16.mxu0 0
        %1886 = vmatpush1.bf16.msra.mxu0 0
        %1887 = vmatprep.subr.bf16.mxu0 0
        %1888 = vmatpush1.bf16.msra.mxu0 0
        %1889 = vmatprep.subr.bf16.mxu0 0
        %1890 = vmatpush1.bf16.msra.mxu0 0
        %1891 = vmatprep.subr.bf16.mxu0 0
        %1892 = vmatpush1.bf16.msra.mxu0 0
        %1893 = vmatprep.subr.bf16.mxu0 0
        %1894 = vmatpush1.bf16.msra.mxu0 0
        %1895 = vmatprep.subr.bf16.mxu0 0
        %1896 = vmatpush1.bf16.msra.mxu0 0
        %1897 = vmatprep.subr.bf16.mxu0 0
        %1898 = vmatpush1.bf16.msra.mxu0 0
        %1899 = vmatprep.subr.bf16.mxu0 0
        %1900 = vmatpush1.bf16.msra.mxu0 0
        %1901 = vmatprep.subr.bf16.mxu0 0
        %1902 = vmatpush1.bf16.msra.mxu0 0
        %1903 = vmatprep.subr.bf16.mxu0 0
        %1904 = vmatpush1.bf16.msra.mxu0 0
        %1905 = vmatprep.mubr.bf16.mxu0 0
        %1906 = vmatmul.mubr.bf16.gmra.mrb[0].mxu0 %v1868
        %v1907 = vpop.f32.mrb[0].mxu0
        %v1908 = vadd.f32 0.0, %v1907
        %v1909 = vpop.f32.mrb[0].mxu0
        %v1910 = vpop.f32.mrb[0].mxu0
        %v1911 = vadd.f32 0.0, %v1910
        %v1912 = vpop.f32.mrb[0].mxu0
        %1913 = vdwg.mxu0
        %v1914 = vadd.f32 %v1454, %v1908
        %v1915 = vadd.f32 %v1457, %v1911
        %s1916 = scalar_lea.vmem %s528, 12
        %v1917 = vld [vmem:[%s1916] sm:$0x7]
        %s1918 = scalar_lea.vmem %s498, 48
        %v1919 = vld [vmem:[%s1918] sm:$0xf]
        %v1920 = vld [vmem:[%s1918 + $0x4] sm:$0xf]
        %v1921 = vld [vmem:[%s1918 + $0x8] sm:$0xf]
        %v1922 = vld [vmem:[%s1918 + $0xc] sm:$0xf]
        %v1923 = vlaneseq
        %v1924 = vshrl.u32 %v1923, 7
        %v1925 = vsub.s32 0, %v1924
        %v1926 = vrot.slane %v1917, %v1925
        %v1931 = vunpack.c.l.b16 %v1919
        %v1932 = vunpack.c.l.b16 %v1920
        %v1933 = vunpack.c.l.b16 %v1921
        %v1934 = vunpack.c.l.b16 %v1922
        %v1935 = vpack.c.b16 %v1932, %v1931
        %v1936 = vpack.c.b16 %v1934, %v1933
        %1939 = vmatprep.subr.bf16.mxu0 0
        %1940 = vmatpush1.bf16.msra.mxu0 %v1935
        %1941 = vmatprep.subr.bf16.mxu0 0
        %1942 = vmatpush1.bf16.msra.mxu0 %v1936
        %1943 = vmatprep.subr.bf16.mxu0 0
        %1944 = vmatpush1.bf16.msra.mxu0 0
        %1945 = vmatprep.subr.bf16.mxu0 0
        %1946 = vmatpush1.bf16.msra.mxu0 0
        %1947 = vmatprep.subr.bf16.mxu0 0
        %1948 = vmatpush1.bf16.msra.mxu0 0
        %1949 = vmatprep.subr.bf16.mxu0 0
        %1950 = vmatpush1.bf16.msra.mxu0 0
        %1951 = vmatprep.subr.bf16.mxu0 0
        %1952 = vmatpush1.bf16.msra.mxu0 0
        %1953 = vmatprep.subr.bf16.mxu0 0
        %1954 = vmatpush1.bf16.msra.mxu0 0
        %1955 = vmatprep.subr.bf16.mxu0 0
        %1956 = vmatpush1.bf16.msra.mxu0 0
        %1957 = vmatprep.subr.bf16.mxu0 0
        %1958 = vmatpush1.bf16.msra.mxu0 0
        %1959 = vmatprep.subr.bf16.mxu0 0
        %1960 = vmatpush1.bf16.msra.mxu0 0
        %1961 = vmatprep.subr.bf16.mxu0 0
        %1962 = vmatpush1.bf16.msra.mxu0 0
        %1963 = vmatprep.subr.bf16.mxu0 0
        %1964 = vmatpush1.bf16.msra.mxu0 0
        %1965 = vmatprep.subr.bf16.mxu0 0
        %1966 = vmatpush1.bf16.msra.mxu0 0
        %1967 = vmatprep.subr.bf16.mxu0 0
        %1968 = vmatpush1.bf16.msra.mxu0 0
        %1969 = vmatprep.subr.bf16.mxu0 0
        %1970 = vmatpush1.bf16.msra.mxu0 0
        %1971 = vmatprep.mubr.bf16.mxu0 0
        %1972 = vmatmul.mubr.bf16.gmra.mrb[0].mxu0 %v574
        %v1973 = vpop.f32.mrb[0].mxu0
        %v1974 = vadd.f32 %v1926, %v1973
        %v1975 = vpop.f32.mrb[0].mxu0
        %v1976 = vpop.f32.mrb[0].mxu0
        %v1977 = vadd.f32 %v1926, %v1976
        %v1978 = vpop.f32.mrb[0].mxu0
        %1979 = vdwg.mxu0
        %s1980 = scalar_lea.vmem %s503, 48
        %v1981 = vld [vmem:[%s1980] sm:$0xf]
        %v1982 = vld [vmem:[%s1980 + $0x4] sm:$0xf]
        %v1983 = vld [vmem:[%s1980 + $0x8] sm:$0xf]
        %v1984 = vld [vmem:[%s1980 + $0xc] sm:$0xf]
        %v1985 = vlaneseq
        %v1986 = vshrl.u32 %v1985, 7
        %v1987 = vsub.s32 1, %v1986
        %v1988 = vrot.slane %v1917, %v1987
        %v1993 = vunpack.c.l.b16 %v1981
        %v1994 = vunpack.c.l.b16 %v1982
        %v1995 = vunpack.c.l.b16 %v1983
        %v1996 = vunpack.c.l.b16 %v1984
        %v1997 = vpack.c.b16 %v1994, %v1993
        %v1998 = vpack.c.b16 %v1996, %v1995
        %2001 = vmatprep.subr.bf16.mxu0 0
        %2002 = vmatpush1.bf16.msra.mxu0 %v1997
        %2003 = vmatprep.subr.bf16.mxu0 0
        %2004 = vmatpush1.bf16.msra.mxu0 %v1998
        %2005 = vmatprep.subr.bf16.mxu0 0
        %2006 = vmatpush1.bf16.msra.mxu0 0
        %2007 = vmatprep.subr.bf16.mxu0 0
        %2008 = vmatpush1.bf16.msra.mxu0 0
        %2009 = vmatprep.subr.bf16.mxu0 0
        %2010 = vmatpush1.bf16.msra.mxu0 0
        %2011 = vmatprep.subr.bf16.mxu0 0
        %2012 = vmatpush1.bf16.msra.mxu0 0
        %2013 = vmatprep.subr.bf16.mxu0 0
        %2014 = vmatpush1.bf16.msra.mxu0 0
        %2015 = vmatprep.subr.bf16.mxu0 0
        %2016 = vmatpush1.bf16.msra.mxu0 0
        %2017 = vmatprep.subr.bf16.mxu0 0
        %2018 = vmatpush1.bf16.msra.mxu0 0
        %2019 = vmatprep.subr.bf16.mxu0 0
        %2020 = vmatpush1.bf16.msra.mxu0 0
        %2021 = vmatprep.subr.bf16.mxu0 0
        %2022 = vmatpush1.bf16.msra.mxu0 0
        %2023 = vmatprep.subr.bf16.mxu0 0
        %2024 = vmatpush1.bf16.msra.mxu0 0
        %2025 = vmatprep.subr.bf16.mxu0 0
        %2026 = vmatpush1.bf16.msra.mxu0 0
        %2027 = vmatprep.subr.bf16.mxu0 0
        %2028 = vmatpush1.bf16.msra.mxu0 0
        %2029 = vmatprep.subr.bf16.mxu0 0
        %2030 = vmatpush1.bf16.msra.mxu0 0
        %2031 = vmatprep.subr.bf16.mxu0 0
        %2032 = vmatpush1.bf16.msra.mxu0 0
        %2033 = vmatprep.mubr.bf16.mxu0 0
        %2034 = vmatmul.mubr.bf16.gmra.mrb[0].mxu0 %v574
        %v2035 = vpop.f32.mrb[0].mxu0
        %v2036 = vadd.f32 %v1988, %v2035
        %v2037 = vpop.f32.mrb[0].mxu0
        %v2038 = vpop.f32.mrb[0].mxu0
        %v2039 = vadd.f32 %v1988, %v2038
        %v2040 = vpop.f32.mrb[0].mxu0
        %2041 = vdwg.mxu0
        %s2042 = scalar_lea.vmem %s508, 48
        %v2043 = vld [vmem:[%s2042] sm:$0xf]
        %v2044 = vld [vmem:[%s2042 + $0x4] sm:$0xf]
        %v2045 = vld [vmem:[%s2042 + $0x8] sm:$0xf]
        %v2046 = vld [vmem:[%s2042 + $0xc] sm:$0xf]
        %v2047 = vlaneseq
        %v2048 = vshrl.u32 %v2047, 7
        %v2049 = vsub.s32 2, %v2048
        %v2050 = vrot.slane %v1917, %v2049
        %v2055 = vunpack.c.l.b16 %v2043
        %v2056 = vunpack.c.l.b16 %v2044
        %v2057 = vunpack.c.l.b16 %v2045
        %v2058 = vunpack.c.l.b16 %v2046
        %v2059 = vpack.c.b16 %v2056, %v2055
        %v2060 = vpack.c.b16 %v2058, %v2057
        %2063 = vmatprep.subr.bf16.mxu0 0
        %2064 = vmatpush1.bf16.msra.mxu0 %v2059
        %2065 = vmatprep.subr.bf16.mxu0 0
        %2066 = vmatpush1.bf16.msra.mxu0 %v2060
        %2067 = vmatprep.subr.bf16.mxu0 0
        %2068 = vmatpush1.bf16.msra.mxu0 0
        %2069 = vmatprep.subr.bf16.mxu0 0
        %2070 = vmatpush1.bf16.msra.mxu0 0
        %2071 = vmatprep.subr.bf16.mxu0 0
        %2072 = vmatpush1.bf16.msra.mxu0 0
        %2073 = vmatprep.subr.bf16.mxu0 0
        %2074 = vmatpush1.bf16.msra.mxu0 0
        %2075 = vmatprep.subr.bf16.mxu0 0
        %2076 = vmatpush1.bf16.msra.mxu0 0
        %2077 = vmatprep.subr.bf16.mxu0 0
        %2078 = vmatpush1.bf16.msra.mxu0 0
        %2079 = vmatprep.subr.bf16.mxu0 0
        %2080 = vmatpush1.bf16.msra.mxu0 0
        %2081 = vmatprep.subr.bf16.mxu0 0
        %2082 = vmatpush1.bf16.msra.mxu0 0
        %2083 = vmatprep.subr.bf16.mxu0 0
        %2084 = vmatpush1.bf16.msra.mxu0 0
        %2085 = vmatprep.subr.bf16.mxu0 0
        %2086 = vmatpush1.bf16.msra.mxu0 0
        %2087 = vmatprep.subr.bf16.mxu0 0
        %2088 = vmatpush1.bf16.msra.mxu0 0
        %2089 = vmatprep.subr.bf16.mxu0 0
        %2090 = vmatpush1.bf16.msra.mxu0 0
        %2091 = vmatprep.subr.bf16.mxu0 0
        %2092 = vmatpush1.bf16.msra.mxu0 0
        %2093 = vmatprep.subr.bf16.mxu0 0
        %2094 = vmatpush1.bf16.msra.mxu0 0
        %2095 = vmatprep.mubr.bf16.mxu0 0
        %2096 = vmatmul.mubr.bf16.gmra.mrb[0].mxu0 %v574
        %v2097 = vpop.f32.mrb[0].mxu0
        %v2098 = vadd.f32 %v2050, %v2097
        %v2099 = vpop.f32.mrb[0].mxu0
        %v2100 = vpop.f32.mrb[0].mxu0
        %v2101 = vadd.f32 %v2050, %v2100
        %v2102 = vpop.f32.mrb[0].mxu0
        %2103 = vdwg.mxu0
        %v2104 = vpack.c.bf16 %v1974, %v1974
        %v2105 = vpack.c.bf16 %v1977, %v1977
        %v2106 = vpack.c.bf16 %v2036, %v2036
        %v2107 = vpack.c.bf16 %v2039, %v2039
        %v2108 = vpack.c.bf16 %v2098, %v2098
        %v2109 = vpack.c.bf16 %v2101, %v2101
        %v2111 = vsel %vm745, %v2104, 0
        %v2114 = vsel %vm745, %v2106, 0
        %2116 = vmatprep.subr.bf16.mxu0 0
        %2117 = vmatpush1.bf16.xpose.msra.mxu0 %v2114
        %2118 = vmatprep.subr.bf16.mxu0 0
        %2119 = vmatpush1.bf16.xpose.msra.mxu0 0
        %2120 = vmatprep.subr.bf16.mxu0 0
        %2121 = vmatpush1.bf16.xpose.msra.mxu0 0
        %2122 = vmatprep.subr.bf16.mxu0 0
        %2123 = vmatpush1.bf16.xpose.msra.mxu0 0
        %2124 = vmatprep.subr.bf16.mxu0 0
        %2125 = vmatpush1.bf16.xpose.msra.mxu0 0
        %2126 = vmatprep.subr.bf16.mxu0 0
        %2127 = vmatpush1.bf16.xpose.msra.mxu0 0
        %2128 = vmatprep.subr.bf16.mxu0 0
        %2129 = vmatpush1.bf16.xpose.msra.mxu0 0
        %2130 = vmatprep.subr.bf16.mxu0 0
        %2131 = vmatpush1.bf16.xpose.msra.mxu0 0
        %2132 = vmatprep.subr.bf16.mxu0 0
        %2133 = vmatpush1.bf16.xpose.msra.mxu0 0
        %2134 = vmatprep.subr.bf16.mxu0 0
        %2135 = vmatpush1.bf16.xpose.msra.mxu0 0
        %2136 = vmatprep.subr.bf16.mxu0 0
        %2137 = vmatpush1.bf16.xpose.msra.mxu0 0
        %2138 = vmatprep.subr.bf16.mxu0 0
        %2139 = vmatpush1.bf16.xpose.msra.mxu0 0
        %2140 = vmatprep.subr.bf16.mxu0 0
        %2141 = vmatpush1.bf16.xpose.msra.mxu0 0
        %2142 = vmatprep.subr.bf16.mxu0 0
        %2143 = vmatpush1.bf16.xpose.msra.mxu0 0
        %2144 = vmatprep.subr.bf16.mxu0 0
        %2145 = vmatpush1.bf16.xpose.msra.mxu0 0
        %2146 = vmatprep.subr.bf16.mxu0 0
        %2147 = vmatpush1.bf16.xpose.msra.mxu0 0
        %2148 = vmatprep.mubr.bf16.mxu0 0
        %2149 = vmatmul.mubr.bf16.gmra.mrb[0].mxu0 %v2111
        %v2150 = vpop.f32.mrb[0].mxu0
        %v2151 = vadd.f32 0.0, %v2150
        %v2152 = vpop.f32.mrb[0].mxu0
        %v2153 = vpop.f32.mrb[0].mxu0
        %v2154 = vpop.f32.mrb[0].mxu0
        %2155 = vdwg.mxu0
        %v2157 = vsel %vm745, %v2105, 0
        %v2160 = vsel %vm745, %v2107, 0
        %2162 = vmatprep.subr.bf16.mxu0 0
        %2163 = vmatpush1.bf16.xpose.msra.mxu0 %v2160
        %2164 = vmatprep.subr.bf16.mxu0 0
        %2165 = vmatpush1.bf16.xpose.msra.mxu0 0
        %2166 = vmatprep.subr.bf16.mxu0 0
        %2167 = vmatpush1.bf16.xpose.msra.mxu0 0
        %2168 = vmatprep.subr.bf16.mxu0 0
        %2169 = vmatpush1.bf16.xpose.msra.mxu0 0
        %2170 = vmatprep.subr.bf16.mxu0 0
        %2171 = vmatpush1.bf16.xpose.msra.mxu0 0
        %2172 = vmatprep.subr.bf16.mxu0 0
        %2173 = vmatpush1.bf16.xpose.msra.mxu0 0
        %2174 = vmatprep.subr.bf16.mxu0 0
        %2175 = vmatpush1.bf16.xpose.msra.mxu0 0
        %2176 = vmatprep.subr.bf16.mxu0 0
        %2177 = vmatpush1.bf16.xpose.msra.mxu0 0
        %2178 = vmatprep.subr.bf16.mxu0 0
        %2179 = vmatpush1.bf16.xpose.msra.mxu0 0
        %2180 = vmatprep.subr.bf16.mxu0 0
        %2181 = vmatpush1.bf16.xpose.msra.mxu0 0
        %2182 = vmatprep.subr.bf16.mxu0 0
        %2183 = vmatpush1.bf16.xpose.msra.mxu0 0
        %2184 = vmatprep.subr.bf16.mxu0 0
        %2185 = vmatpush1.bf16.xpose.msra.mxu0 0
        %2186 = vmatprep.subr.bf16.mxu0 0
        %2187 = vmatpush1.bf16.xpose.msra.mxu0 0
        %2188 = vmatprep.subr.bf16.mxu0 0
        %2189 = vmatpush1.bf16.xpose.msra.mxu0 0
        %2190 = vmatprep.subr.bf16.mxu0 0
        %2191 = vmatpush1.bf16.xpose.msra.mxu0 0
        %2192 = vmatprep.subr.bf16.mxu0 0
        %2193 = vmatpush1.bf16.xpose.msra.mxu0 0
        %2194 = vmatprep.mubr.bf16.mxu0 0
        %2195 = vmatmul.mubr.bf16.gmra.mrb[0].mxu0 %v2157
        %v2196 = vpop.f32.mrb[0].mxu0
        %v2197 = vadd.f32 0.0, %v2196
        %v2198 = vpop.f32.mrb[0].mxu0
        %v2199 = vpop.f32.mrb[0].mxu0
        %v2200 = vpop.f32.mrb[0].mxu0
        %2201 = vdwg.mxu0
        %v2202 = vmul.f32 %v2151, 0.35355338
        %v2203 = vmul.f32 %v2197, 0.35355338
        %v2204 = vsel %vm745, %v2202, -inf
        %2205 = vmax.xlane.f32.xlu0 %v2204
        %v2206 = vpop.xlane.xlu0 %2205
        %v2207 = vsel %vm745, %v2203, -inf
        %2208 = vmax.xlane.f32.xlu0 %v2207
        %v2209 = vpop.xlane.xlu0 %2208
        %v2210 = vsub.f32 %v2202, %v2206
        %v2211 = vsub.f32 %v2203, %v2209
        %v2212 = vmul.f32 %v2210, 1.442695
        %v2213 = vpow.pop %v2212
        %v2214 = vmul.f32 %v2211, 1.442695
        %v2215 = vpow.pop %v2214
        %v2216 = vsel %vm745, %v2213, 0.0
        %2217 = vadd.xlane.f32.xlu0 %v2216
        %v2218 = vpop.xlane.xlu0 %2217
        %v2219 = vsel %vm745, %v2215, 0.0
        %2220 = vadd.xlane.f32.xlu0 %v2219
        %v2221 = vpop.xlane.xlu0 %2220
        %v2222 = vrcp.pop %v2218
        %v2223 = vrcp.pop %v2221
        %v2224 = vmul.f32 %v2213, %v2222
        %v2225 = vmul.f32 %v2215, %v2223
        %v2226 = vpack.c.bf16 %v2224, %v2224
        %v2227 = vpack.c.bf16 %v2225, %v2225
        %v2229 = vsel %vm745, %v2226, 0
        %v2232 = vsel %vm867, %v2108, 0
        %2234 = vmatprep.subr.bf16.mxu0 0
        %2235 = vmatpush1.bf16.msra.mxu0 %v2232
        %2236 = vmatprep.subr.bf16.mxu0 0
        %2237 = vmatpush1.bf16.msra.mxu0 0
        %2238 = vmatprep.subr.bf16.mxu0 0
        %2239 = vmatpush1.bf16.msra.mxu0 0
        %2240 = vmatprep.subr.bf16.mxu0 0
        %2241 = vmatpush1.bf16.msra.mxu0 0
        %2242 = vmatprep.subr.bf16.mxu0 0
        %2243 = vmatpush1.bf16.msra.mxu0 0
        %2244 = vmatprep.subr.bf16.mxu0 0
        %2245 = vmatpush1.bf16.msra.mxu0 0
        %2246 = vmatprep.subr.bf16.mxu0 0
        %2247 = vmatpush1.bf16.msra.mxu0 0
        %2248 = vmatprep.subr.bf16.mxu0 0
        %2249 = vmatpush1.bf16.msra.mxu0 0
        %2250 = vmatprep.subr.bf16.mxu0 0
        %2251 = vmatpush1.bf16.msra.mxu0 0
        %2252 = vmatprep.subr.bf16.mxu0 0
        %2253 = vmatpush1.bf16.msra.mxu0 0
        %2254 = vmatprep.subr.bf16.mxu0 0
        %2255 = vmatpush1.bf16.msra.mxu0 0
        %2256 = vmatprep.subr.bf16.mxu0 0
        %2257 = vmatpush1.bf16.msra.mxu0 0
        %2258 = vmatprep.subr.bf16.mxu0 0
        %2259 = vmatpush1.bf16.msra.mxu0 0
        %2260 = vmatprep.subr.bf16.mxu0 0
        %2261 = vmatpush1.bf16.msra.mxu0 0
        %2262 = vmatprep.subr.bf16.mxu0 0
        %2263 = vmatpush1.bf16.msra.mxu0 0
        %2264 = vmatprep.subr.bf16.mxu0 0
        %2265 = vmatpush1.bf16.msra.mxu0 0
        %2266 = vmatprep.mubr.bf16.mxu0 0
        %2267 = vmatmul.mubr.bf16.gmra.mrb[0].mxu0 %v2229
        %v2268 = vpop.f32.mrb[0].mxu0
        %v2269 = vadd.f32 0.0, %v2268
        %v2270 = vpop.f32.mrb[0].mxu0
        %v2271 = vpop.f32.mrb[0].mxu0
        %v2272 = vpop.f32.mrb[0].mxu0
        %2273 = vdwg.mxu0
        %v2275 = vsel %vm745, %v2227, 0
        %v2278 = vsel %vm867, %v2109, 0
        %2280 = vmatprep.subr.bf16.mxu0 0
        %2281 = vmatpush1.bf16.msra.mxu0 %v2278
        %2282 = vmatprep.subr.bf16.mxu0 0
        %2283 = vmatpush1.bf16.msra.mxu0 0
        %2284 = vmatprep.subr.bf16.mxu0 0
        %2285 = vmatpush1.bf16.msra.mxu0 0
        %2286 = vmatprep.subr.bf16.mxu0 0
        %2287 = vmatpush1.bf16.msra.mxu0 0
        %2288 = vmatprep.subr.bf16.mxu0 0
        %2289 = vmatpush1.bf16.msra.mxu0 0
        %2290 = vmatprep.subr.bf16.mxu0 0
        %2291 = vmatpush1.bf16.msra.mxu0 0
        %2292 = vmatprep.subr.bf16.mxu0 0
        %2293 = vmatpush1.bf16.msra.mxu0 0
        %2294 = vmatprep.subr.bf16.mxu0 0
        %2295 = vmatpush1.bf16.msra.mxu0 0
        %2296 = vmatprep.subr.bf16.mxu0 0
        %2297 = vmatpush1.bf16.msra.mxu0 0
        %2298 = vmatprep.subr.bf16.mxu0 0
        %2299 = vmatpush1.bf16.msra.mxu0 0
        %2300 = vmatprep.subr.bf16.mxu0 0
        %2301 = vmatpush1.bf16.msra.mxu0 0
        %2302 = vmatprep.subr.bf16.mxu0 0
        %2303 = vmatpush1.bf16.msra.mxu0 0
        %2304 = vmatprep.subr.bf16.mxu0 0
        %2305 = vmatpush1.bf16.msra.mxu0 0
        %2306 = vmatprep.subr.bf16.mxu0 0
        %2307 = vmatpush1.bf16.msra.mxu0 0
        %2308 = vmatprep.subr.bf16.mxu0 0
        %2309 = vmatpush1.bf16.msra.mxu0 0
        %2310 = vmatprep.subr.bf16.mxu0 0
        %2311 = vmatpush1.bf16.msra.mxu0 0
        %2312 = vmatprep.mubr.bf16.mxu0 0
        %2313 = vmatmul.mubr.bf16.gmra.mrb[0].mxu0 %v2275
        %v2314 = vpop.f32.mrb[0].mxu0
        %v2315 = vadd.f32 0.0, %v2314
        %v2316 = vpop.f32.mrb[0].mxu0
        %v2317 = vpop.f32.mrb[0].mxu0
        %v2318 = vpop.f32.mrb[0].mxu0
        %2319 = vdwg.mxu0
        %v2320 = vpack.c.bf16 %v2315, %v2269
        %s2321 = scalar_lea.vmem %s513, 12
        %v2322 = vld [vmem:[%s2321] sm:$0xf]
        %v2324 = vsel %vm745, %v2320, 0
        %v2327 = vsel %vm867, %v2322, 0
        %2329 = vmatprep.subr.bf16.mxu0 0
        %2330 = vmatpush1.bf16.msra.mxu0 %v2327
        %2331 = vmatprep.subr.bf16.mxu0 0
        %2332 = vmatpush1.bf16.msra.mxu0 0
        %2333 = vmatprep.subr.bf16.mxu0 0
        %2334 = vmatpush1.bf16.msra.mxu0 0
        %2335 = vmatprep.subr.bf16.mxu0 0
        %2336 = vmatpush1.bf16.msra.mxu0 0
        %2337 = vmatprep.subr.bf16.mxu0 0
        %2338 = vmatpush1.bf16.msra.mxu0 0
        %2339 = vmatprep.subr.bf16.mxu0 0
        %2340 = vmatpush1.bf16.msra.mxu0 0
        %2341 = vmatprep.subr.bf16.mxu0 0
        %2342 = vmatpush1.bf16.msra.mxu0 0
        %2343 = vmatprep.subr.bf16.mxu0 0
        %2344 = vmatpush1.bf16.msra.mxu0 0
        %2345 = vmatprep.subr.bf16.mxu0 0
        %2346 = vmatpush1.bf16.msra.mxu0 0
        %2347 = vmatprep.subr.bf16.mxu0 0
        %2348 = vmatpush1.bf16.msra.mxu0 0
        %2349 = vmatprep.subr.bf16.mxu0 0
        %2350 = vmatpush1.bf16.msra.mxu0 0
        %2351 = vmatprep.subr.bf16.mxu0 0
        %2352 = vmatpush1.bf16.msra.mxu0 0
        %2353 = vmatprep.subr.bf16.mxu0 0
        %2354 = vmatpush1.bf16.msra.mxu0 0
        %2355 = vmatprep.subr.bf16.mxu0 0
        %2356 = vmatpush1.bf16.msra.mxu0 0
        %2357 = vmatprep.subr.bf16.mxu0 0
        %2358 = vmatpush1.bf16.msra.mxu0 0
        %2359 = vmatprep.subr.bf16.mxu0 0
        %2360 = vmatpush1.bf16.msra.mxu0 0
        %2361 = vmatprep.mubr.bf16.mxu0 0
        %2362 = vmatmul.mubr.bf16.gmra.mrb[0].mxu0 %v2324
        %v2363 = vpop.f32.mrb[0].mxu0
        %v2364 = vadd.f32 0.0, %v2363
        %v2365 = vpop.f32.mrb[0].mxu0
        %v2366 = vpop.f32.mrb[0].mxu0
        %v2367 = vadd.f32 0.0, %v2366
        %v2368 = vpop.f32.mrb[0].mxu0
        %2369 = vdwg.mxu0
        %v2370 = vadd.f32 %v1914, %v2364
        %v2371 = vadd.f32 %v1915, %v2367
        %v2372 = vlaneseq
        %v2373 = vshrl.u32 %v2372, 7
        %v2374 = vsub.s32 0, %v2373
        %v2375 = vrot.slane %v550, %v2374
        %v2376 = vadd.f32 %v2370, %v2375
        %v2377 = vadd.f32 %v2371, %v2375
        %v2378 = vadd.f32 %v547, %v2376
        %v2379 = vadd.f32 %v548, %v2377
        %v2380 = vsel %vm572, %v2378, 0.0
        %2381 = vadd.xlane.f32.xlu0 %v2380
        %v2382 = vpop.xlane.xlu0 %2381
        %v2383 = vsel %vm572, %v2379, 0.0
        %2384 = vadd.xlane.f32.xlu0 %v2383
        %v2385 = vpop.xlane.xlu0 %2384
        %v2386 = vrcp.pop 32.0
        %v2387 = vmul.f32 %v2382, %v2386
        %v2388 = vmul.f32 %v2385, %v2386
        %v2389 = vsub.f32 %v2378, %v2387
        %v2390 = vsub.f32 %v2379, %v2388
        %v2391 = vmul.f32 %v2389, %v2389
        %v2392 = vmul.f32 %v2390, %v2390
        %v2393 = vsel %vm572, %v2391, 0.0
        %2394 = vadd.xlane.f32.xlu0 %v2393
        %v2395 = vpop.xlane.xlu0 %2394
        %v2396 = vsel %vm572, %v2392, 0.0
        %2397 = vadd.xlane.f32.xlu0 %v2396
        %v2398 = vpop.xlane.xlu0 %2397
        %v2399 = vmul.f32 %v2395, %v2386
        %v2400 = vmul.f32 %v2398, %v2386
        %v2401 = vadd.f32 %v2399, 1e-05
        %v2402 = vadd.f32 %v2400, 1e-05
        %v2403 = vrsqrt.pop %v2401
        %v2404 = vrsqrt.pop %v2402
        %v2405 = vmul.f32 %v2389, %v2403
        %v2406 = vmul.f32 %v2390, %v2404
        %v2407 = vlaneseq
        %v2408 = vshrl.u32 %v2407, 7
        %v2409 = vsub.s32 1, %v2408
        %v2410 = vrot.slane %v550, %v2409
        %v2411 = vmul.f32 %v2405, %v2410
        %v2412 = vmul.f32 %v2406, %v2410
        %v2413 = vlaneseq
        %v2414 = vshrl.u32 %v2413, 7
        %v2415 = vsub.s32 2, %v2414
        %v2416 = vrot.slane %v550, %v2415
        %v2417 = vadd.f32 %v2411, %v2416
        %v2418 = vadd.f32 %v2412, %v2416
        %v2419 = vpack.c.bf16 %v2418, %v2417
        %v2420 = vld [vmem:[%s518] sm:$0xf]
        %v2421 = vld [vmem:[%s518 + $0x4] sm:$0xf]
        %v2422 = vld [vmem:[%s518 + $0x8] sm:$0xf]
        %v2423 = vld [vmem:[%s518 + $0xc] sm:$0xf]
        %v2424 = vld [vmem:[%s535] sm:$0x1]
        %v2426 = vlaneseq
        %v2427 = vshrl.u32 %v2426, 7
        %v2428 = vsub.s32 0, %v2427
        %v2429 = vrot.slane %v2424, %v2428
        %v2435 = vunpack.c.l.b16 %v2420
        %v2436 = vunpack.c.l.b16 %v2421
        %v2437 = vunpack.c.l.b16 %v2422
        %v2438 = vunpack.c.l.b16 %v2423
        %v2439 = vpack.c.b16 %v2436, %v2435
        %v2440 = vpack.c.b16 %v2438, %v2437
        %v2444 = vsel %vm572, %v2419, 0
        %2446 = vmatprep.subr.bf16.mxu0 0
        %2447 = vmatpush1.bf16.msra.mxu0 %v2439
        %2448 = vmatprep.subr.bf16.mxu0 0
        %2449 = vmatpush1.bf16.msra.mxu0 %v2440
        %2450 = vmatprep.subr.bf16.mxu0 0
        %2451 = vmatpush1.bf16.msra.mxu0 0
        %2452 = vmatprep.subr.bf16.mxu0 0
        %2453 = vmatpush1.bf16.msra.mxu0 0
        %2454 = vmatprep.subr.bf16.mxu0 0
        %2455 = vmatpush1.bf16.msra.mxu0 0
        %2456 = vmatprep.subr.bf16.mxu0 0
        %2457 = vmatpush1.bf16.msra.mxu0 0
        %2458 = vmatprep.subr.bf16.mxu0 0
        %2459 = vmatpush1.bf16.msra.mxu0 0
        %2460 = vmatprep.subr.bf16.mxu0 0
        %2461 = vmatpush1.bf16.msra.mxu0 0
        %2462 = vmatprep.subr.bf16.mxu0 0
        %2463 = vmatpush1.bf16.msra.mxu0 0
        %2464 = vmatprep.subr.bf16.mxu0 0
        %2465 = vmatpush1.bf16.msra.mxu0 0
        %2466 = vmatprep.subr.bf16.mxu0 0
        %2467 = vmatpush1.bf16.msra.mxu0 0
        %2468 = vmatprep.subr.bf16.mxu0 0
        %2469 = vmatpush1.bf16.msra.mxu0 0
        %2470 = vmatprep.subr.bf16.mxu0 0
        %2471 = vmatpush1.bf16.msra.mxu0 0
        %2472 = vmatprep.subr.bf16.mxu0 0
        %2473 = vmatpush1.bf16.msra.mxu0 0
        %2474 = vmatprep.subr.bf16.mxu0 0
        %2475 = vmatpush1.bf16.msra.mxu0 0
        %2476 = vmatprep.subr.bf16.mxu0 0
        %2477 = vmatpush1.bf16.msra.mxu0 0
        %2478 = vmatprep.mubr.bf16.mxu0 0
        %2479 = vmatmul.mubr.bf16.gmra.mrb[0].mxu0 %v2444
        %v2480 = vpop.f32.mrb[0].mxu0
        %v2481 = vadd.f32 %v2429, %v2480
        %v2482 = vpop.f32.mrb[0].mxu0
        %v2483 = vpop.f32.mrb[0].mxu0
        %v2484 = vadd.f32 %v2429, %v2483
        %v2485 = vpop.f32.mrb[0].mxu0
        %2486 = vdwg.mxu0
        %v2487 = vmax.f32 %v2481, 0.0
        %v2488 = vmax.f32 %v2484, 0.0
        %v2489 = vpack.c.bf16 %v2488, %v2487
        %v2490 = vld [vmem:[%s523] sm:$0xf]
        %v2491 = vld [vmem:[%s523 + $0x4] sm:$0xf]
        %v2492 = vld [vmem:[%s523 + $0x8] sm:$0xf]
        %v2493 = vld [vmem:[%s523 + $0xc] sm:$0xf]
        %v2494 = vld [vmem:[%s523 + $0x10] sm:$0xf]
        %v2495 = vld [vmem:[%s523 + $0x14] sm:$0xf]
        %v2496 = vld [vmem:[%s523 + $0x18] sm:$0xf]
        %v2497 = vld [vmem:[%s523 + $0x1c] sm:$0xf]
        %v2498 = vlaneseq
        %v2499 = vshrl.u32 %v2498, 7
        %v2500 = vsub.s32 3, %v2499
        %v2501 = vrot.slane %v550, %v2500
        %v2510 = vunpack.c.l.b16 %v2490
        %v2511 = vunpack.c.l.b16 %v2491
        %v2512 = vunpack.c.l.b16 %v2492
        %v2513 = vunpack.c.l.b16 %v2493
        %v2514 = vunpack.c.l.b16 %v2494
        %v2515 = vunpack.c.l.b16 %v2495
        %v2516 = vunpack.c.l.b16 %v2496
        %v2517 = vunpack.c.l.b16 %v2497
        %v2518 = vpack.c.b16 %v2511, %v2510
        %v2519 = vpack.c.b16 %v2513, %v2512
        %v2520 = vpack.c.b16 %v2515, %v2514
        %v2521 = vpack.c.b16 %v2517, %v2516
        %vm2526 = vcmask 523264
        %v2528 = vsel %vm2526, %v2489, 0
        %2530 = vmatprep.subr.bf16.mxu0 0
        %2531 = vmatpush1.bf16.msra.mxu0 %v2518
        %2532 = vmatprep.subr.bf16.mxu0 0
        %2533 = vmatpush1.bf16.msra.mxu0 %v2519
        %2534 = vmatprep.subr.bf16.mxu0 0
        %2535 = vmatpush1.bf16.msra.mxu0 %v2520
        %2536 = vmatprep.subr.bf16.mxu0 0
        %2537 = vmatpush1.bf16.msra.mxu0 %v2521
        %2538 = vmatprep.subr.bf16.mxu0 0
        %2539 = vmatpush1.bf16.msra.mxu0 0
        %2540 = vmatprep.subr.bf16.mxu0 0
        %2541 = vmatpush1.bf16.msra.mxu0 0
        %2542 = vmatprep.subr.bf16.mxu0 0
        %2543 = vmatpush1.bf16.msra.mxu0 0
        %2544 = vmatprep.subr.bf16.mxu0 0
        %2545 = vmatpush1.bf16.msra.mxu0 0
        %2546 = vmatprep.subr.bf16.mxu0 0
        %2547 = vmatpush1.bf16.msra.mxu0 0
        %2548 = vmatprep.subr.bf16.mxu0 0
        %2549 = vmatpush1.bf16.msra.mxu0 0
        %2550 = vmatprep.subr.bf16.mxu0 0
        %2551 = vmatpush1.bf16.msra.mxu0 0
        %2552 = vmatprep.subr.bf16.mxu0 0
        %2553 = vmatpush1.bf16.msra.mxu0 0
        %2554 = vmatprep.subr.bf16.mxu0 0
        %2555 = vmatpush1.bf16.msra.mxu0 0
        %2556 = vmatprep.subr.bf16.mxu0 0
        %2557 = vmatpush1.bf16.msra.mxu0 0
        %2558 = vmatprep.subr.bf16.mxu0 0
        %2559 = vmatpush1.bf16.msra.mxu0 0
        %2560 = vmatprep.subr.bf16.mxu0 0
        %2561 = vmatpush1.bf16.msra.mxu0 0
        %2562 = vmatprep.mubr.bf16.mxu0 0
        %2563 = vmatmul.mubr.bf16.gmra.mrb[0].mxu0 %v2528
        %v2564 = vpop.f32.mrb[0].mxu0
        %v2565 = vadd.f32 %v2501, %v2564
        %v2566 = vpop.f32.mrb[0].mxu0
        %v2567 = vpop.f32.mrb[0].mxu0
        %v2568 = vadd.f32 %v2501, %v2567
        %v2569 = vpop.f32.mrb[0].mxu0
        %2570 = vdwg.mxu0
        %v2571 = vadd.f32 %v2417, %v2565
        %v2572 = vadd.f32 %v2418, %v2568
        %v2573 = vsel %vm572, %v2571, 0.0
        %2574 = vadd.xlane.f32.xlu0 %v2573
        %v2575 = vpop.xlane.xlu0 %2574
        %v2576 = vsel %vm572, %v2572, 0.0
        %2577 = vadd.xlane.f32.xlu0 %v2576
        %v2578 = vpop.xlane.xlu0 %2577
        %v2579 = vmul.f32 %v2575, %v2386
        %v2580 = vmul.f32 %v2578, %v2386
        %v2581 = vsub.f32 %v2571, %v2579
        %v2582 = vsub.f32 %v2572, %v2580
        %v2583 = vmul.f32 %v2581, %v2581
        %v2584 = vmul.f32 %v2582, %v2582
        %v2585 = vsel %vm572, %v2583, 0.0
        %2586 = vadd.xlane.f32.xlu0 %v2585
        %v2587 = vpop.xlane.xlu0 %2586
        %v2588 = vsel %vm572, %v2584, 0.0
        %2589 = vadd.xlane.f32.xlu0 %v2588
        %v2590 = vpop.xlane.xlu0 %2589
        %v2591 = vmul.f32 %v2587, %v2386
        %v2592 = vmul.f32 %v2590, %v2386
        %v2593 = vadd.f32 %v2591, 1e-05
        %v2594 = vadd.f32 %v2592, 1e-05
        %v2595 = vrsqrt.pop %v2593
        %v2596 = vrsqrt.pop %v2594
        %v2597 = vmul.f32 %v2581, %v2595
        %v2598 = vmul.f32 %v2582, %v2596
        %v2599 = vlaneseq
        %v2600 = vshrl.u32 %v2599, 7
        %v2601 = vsub.s32 4, %v2600
        %v2602 = vrot.slane %v550, %v2601
        %v2603 = vmul.f32 %v2597, %v2602
        %v2604 = vmul.f32 %v2598, %v2602
        %v2605 = vlaneseq
        %v2606 = vshrl.u32 %v2605, 7
        %v2607 = vsub.s32 5, %v2606
        %v2608 = vrot.slane %v550, %v2607
        %v2609 = vadd.f32 %v2603, %v2608
        %v2610 = vadd.f32 %v2604, %v2608
        %2611 = vst.msk [vmem:[#allocation2] sm:$0xff] %vm572, %v2609
        %2612 = vst.msk [vmem:[#allocation2 + $0x8] sm:$0xff] %vm572, %v2610
        %p2613 = scmp.eq.s32.totalorder %s27, 1
        // Predicated region
        $region65: #{tpu_custom_call.1} parent=59 // pred_check
          %p2614 = pneg %p2613
        $region66: #{tpu_custom_call.1} parent=59 // pred_check_branch
          %2616 = sbr.rel (%p2614) target = $region68
        $region67: #{tpu_custom_call.1} parent=59 // pred_region
          %2617 = vst.msk [vmem:[#allocation3] sm:$0xff] %vm572, %v2609
          %2618 = vst.msk [vmem:[#allocation3 + $0x8] sm:$0xff] %vm572, %v2610
        $region68: #{tpu_custom_call.1} parent=59 // pred_fallthru
          _
        // Predicated region
        $region69: #{tpu_custom_call.1} parent=59 // pred_check
          %p2619 = pneg %p312
        $region70: #{tpu_custom_call.1} parent=59 // pred_check_branch
          %2621 = sbr.rel (%p2619) target = $region72
        $region71: #{tpu_custom_call.1} parent=59 // pred_region
          %s2622 = smul.u32 2, %s26
          %s2624 = ssub.s32 256, 256
          %2625 = vsyncadd [#allocation4], %s2624
          %s2626 = smul.addr %s2622, 128
          %s2627 = scalar_lea.hbm %s10, %s2626
          %s2628 = sshll.u32 [#allocation3], 4
          %s2629 = int_to_ptr.vmem [resolvable:$true] %s2628
          %2634 = dma.vmem_to_hbm [thread:$0]  %s2629, 256, %s2627, [#allocation4], 128, 128, 8
        $region72: #{tpu_custom_call.1} parent=59 // pred_fallthru
          _
        // Predicated region
        $region73: #{tpu_custom_call.1} parent=59 // pred_check
          %p2635 = pneg %p312
        $region74: #{tpu_custom_call.1} parent=59 // pred_check_branch
          %2637 = sbr.rel (%p2635) target = $region76
        $region75: #{tpu_custom_call.1} parent=59 // pred_region
          %2638 = dma.done [#allocation4], 256
        $region76: #{tpu_custom_call.1} parent=59 // pred_fallthru
          _
      $region60: #{tpu_custom_call.1} parent=5 // pred_fallthru
        _
      %p2639 = scmp.le.s32.totalorder 2, %s17
      // Predicated region
      $region77: #{tpu_custom_call.1} parent=5 // pred_check
        %p2640 = pneg %p2639
      $region78: #{tpu_custom_call.1} parent=5 // pred_check_branch
        %2642 = sbr.rel (%p2640) target = $region80
      $region79: #{tpu_custom_call.1} parent=5 // pred_region
        %s2643 = ssub.s32 %s17, 2
      $region80: #{tpu_custom_call.1} parent=5 // pred_fallthru
        _
    $region6: #{tpu_custom_call.1} parent=1 // loop_footer
      %s21 = sadd.s32 1, %s17
    $region7: #{tpu_custom_call.1} parent=1 // loop_footer_branch
      %16 = sbr.rel target = $region3
    $region8: #{tpu_custom_call.1} parent=1 // loop_exit
      _
    %2644 = vsyncpa [#allocation4], 1
    %s2645 = scalar_lea.sflag [#allocation4], 1
    %2646 = vsyncpa %s2645, 1

</llo_original>
